<compile_context>
chip_gen: v6e
topology: v6e:2x2x1
jax: 0.10.0
libtpu: 0.0.40
codegen_flags: <defaults>
</compile_context>

<pallas_src>
import jax
import jax.numpy as jnp
from jax.experimental import pallas as pl
from jax.experimental.pallas import tpu as pltpu


# ---------------------------------------------------------------------------
# Kernel: one grid step == one phase bank.  theta-embed MLP runs at step 0.
# ---------------------------------------------------------------------------
def _phase_dnn_kernel(
    t_ref,      # (B, 1)             f32
    theta_ref,  # (B, 15)            f32
    We1_ref,    # (15, 128)          bf16  theta-embed layer 1 (BN folded)
    Wemb_ref,   # (4, 128, 128)      bf16  [l2, res.fc1, res.fc2, out]
    embB_ref,   # (5, 128)           f32   [be1, b2, br1, br2, b_out]
    W1e_ref,    # (1, 128, 256)      bf16  this bank's layer-1, emb part (BN folded)
    Wh_ref,     # (1, 9, 256, 256)   bf16  this bank: [l2,r2a,r2b, l3,r3a,r3b, l4,r4a,r4b]
    bankF_ref,  # (1, 13, 256)       f32   [w1t, b1, bh0..bh8, wo, bo(pad)]
    o_ref,      # (B, 1)             f32   resident accumulator across the bank axis
    emb_ref,    # (B, 128)           f32   VMEM scratch, persists across grid steps
):
    f32 = jnp.float32

    def mm(x, w):
        # MXU matmul: bf16 operands, f32 accumulation.
        return jnp.dot(x.astype(jnp.bfloat16), w, preferred_element_type=f32)

    bank = pl.program_id(0)

    # ---- theta embedding MLP: 15 -> 128 -> 128 (+residual block) -> 128 ----
    @pl.when(bank == 0)
    def _():
        h = jnp.maximum(mm(theta_ref[...], We1_ref[...]) + embB_ref[0], 0.0)
        h = jnp.maximum(mm(h, Wemb_ref[0]) + embB_ref[1], 0.0)
        r = jnp.maximum(mm(h, Wemb_ref[1]) + embB_ref[2], 0.0)
        r = jnp.maximum(mm(r, Wemb_ref[2]) + embB_ref[3], 0.0)
        h = r + h
        emb_ref[...] = mm(h, Wemb_ref[3]) + embB_ref[4]      # Identity head
        o_ref[...] = jnp.zeros(o_ref.shape, o_ref.dtype)     # init dphi accumulator

    # ---- this bank's phase subnet -------------------------------------------
    emb = emb_ref[...]                                        # (B, 128)
    t = t_ref[...]                                            # (B, 1)
    w1t = bankF_ref[0, 0]                                     # (256,)
    b1 = bankF_ref[0, 1]                                      # (256,)

    # layer 1 of x = [t_norm, emb]: K=128 matmul + rank-1 time term (VPU)
    g = jnp.maximum(mm(emb, W1e_ref[0]) + t * w1t + b1, 0.0)

    n_res_groups = Wh_ref.shape[1] // 3
    for blk in range(n_res_groups):
        j = 3 * blk
        gn = jnp.maximum(mm(g, Wh_ref[0, j]) + bankF_ref[0, 2 + j], 0.0)
        r1 = jnp.maximum(mm(gn, Wh_ref[0, j + 1]) + bankF_ref[0, 3 + j], 0.0)
        r2 = jnp.maximum(mm(r1, Wh_ref[0, j + 2]) + bankF_ref[0, 4 + j], 0.0)
        g = r2 + gn                                           # residual add

    # 256 -> 1 head as VPU multiply + lane reduction; accumulate into dphi
    wo = bankF_ref[0, 11]                                     # (256,)
    bo = bankF_ref[0, 12, 0:1]                                # (1,)  bias scalar
    o_ref[...] += jnp.sum(g * wo, axis=-1, keepdims=True) + bo


# ---------------------------------------------------------------------------
# pallas_call wrapper: bank-axis grid, per-bank blocked weights, resident output
# ---------------------------------------------------------------------------
@jax.jit
def phase_dnn_forward(t_norm, theta, params):
    B = t_norm.shape[0]
    P = theta.shape[1]
    n_banks, n_hidden, H, _ = params["Wh"].shape
    emb_dim = params["Wemb"].shape[-1]
    n_f32_rows = params["bankF"].shape[1]

    in_specs = [
        pl.BlockSpec((B, 1), lambda b: (0, 0)),                       # t_norm
        pl.BlockSpec((B, P), lambda b: (0, 0)),                       # theta
        pl.BlockSpec(params["We1"].shape, lambda b: (0, 0)),          # We1
        pl.BlockSpec(params["Wemb"].shape, lambda b: (0, 0, 0)),      # Wemb
        pl.BlockSpec(params["embB"].shape, lambda b: (0, 0)),         # embed biases
        pl.BlockSpec((1, emb_dim, H), lambda b: (b, 0, 0)),           # W1e  (per bank)
        pl.BlockSpec((1, n_hidden, H, H), lambda b: (b, 0, 0, 0)),    # Wh   (per bank)
        pl.BlockSpec((1, n_f32_rows, H), lambda b: (b, 0, 0)),        # f32 slab (per bank)
    ]
    out_spec = pl.BlockSpec((B, 1), lambda b: (0, 0))                 # resident accumulator

    return pl.pallas_call(
        _phase_dnn_kernel,
        out_shape=jax.ShapeDtypeStruct((B, 1), jnp.float32),
        grid_spec=pltpu.PrefetchScalarGridSpec(
            num_scalar_prefetch=0,
            grid=(n_banks,),
            in_specs=in_specs,
            out_specs=out_spec,
            scratch_shapes=[pltpu.VMEM((B, emb_dim), jnp.float32)],   # emb, persists
        ),
        compiler_params=pltpu.CompilerParams(
            # bank axis carries the emb scratch + dphi accumulator -> arbitrary
            dimension_semantics=("arbitrary",),
            # plan needs ~3 MB (double-buffered Wh slab + resident embed weights)
            vmem_limit_bytes=16 * 1024 * 1024,
        ),
    )(t_norm, theta, params["We1"], params["Wemb"], params["embB"],
      params["W1e"], params["Wh"], params["bankF"])


# ---------------------------------------------------------------------------
# Deterministic parameter init (eval-mode BatchNorm folded into the Linears)
# ---------------------------------------------------------------------------
def _folded_linear(key, in_dim, out_dim, bn=True):
    """Linear (W:(in,out), b:(out,)) with eval-mode BN folded in."""
    ks = jax.random.split(key, 6)
    W = jax.random.normal(ks[0], (in_dim, out_dim), jnp.float32) / jnp.sqrt(in_dim)
    b = 0.01 * jax.random.normal(ks[1], (out_dim,), jnp.float32)
    if bn:
        gamma = 1.0 + 0.1 * jax.random.normal(ks[2], (out_dim,), jnp.float32)
        beta = 0.1 * jax.random.normal(ks[3], (out_dim,), jnp.float32)
        rmean = 0.1 * jax.random.normal(ks[4], (out_dim,), jnp.float32)
        rvar = 1.0 + 0.1 * jnp.abs(jax.random.normal(ks[5], (out_dim,), jnp.float32))
        scale = gamma * jax.lax.rsqrt(rvar + 1e-5)
        shift = beta - rmean * scale
        W = W * scale[None, :]
        b = b * scale + shift
    return W, b


def init_phase_dnn_params(
    key,
    param_dim=15,
    time_dim=1,
    emb_hidden=(128, 128),
    emb_dim=128,
    phase_hidden=(256, 256, 256, 256),
    n_banks=3,
):
    # Packing below assumes the default PhaseDNN_Full architecture
    # (residual block after every hidden layer except the first).
    assert emb_hidden[0] == emb_hidden[1] == emb_dim
    assert all(h == phase_hidden[0] for h in phase_hidden)
    H = phase_hidden[0]

    keys = jax.random.split(key, 1 + n_banks)

    # theta_embed MLP: 15 -> 128 -> 128 (+ResidualBlock) -> Linear(128,128)
    ke = jax.random.split(keys[0], 5)
    We1, be1 = _folded_linear(ke[0], param_dim, emb_hidden[0])
    W2, b2 = _folded_linear(ke[1], emb_hidden[0], emb_hidden[1])
    Wr1, br1 = _folded_linear(ke[2], emb_hidden[1], emb_hidden[1])
    Wr2, br2 = _folded_linear(ke[3], emb_hidden[1], emb_hidden[1])
    Wo, bo_e = _folded_linear(ke[4], emb_hidden[1], emb_dim, bn=False)
    Wemb = jnp.stack([W2, Wr1, Wr2, Wo])            # (4, 128, 128)
    embB = jnp.stack([be1, b2, br1, br2, bo_e])     # (5, 128)  packed f32 biases

    # Phase subnets: [t_norm, emb] (129) -> 256 -> 256(+res) x3 -> 1
    in_dim = time_dim + emb_dim
    W1e_l, Wh_l, bankF_l = [], [], []
    for i in range(n_banks):
        kk = jax.random.split(keys[1 + i], 2 + 3 * (len(phase_hidden) - 1))
        W1, b1 = _folded_linear(kk[0], in_dim, H)
        # PyTorch concat order is [t_norm, theta_emb]: row 0 multiplies t_norm.
        w1t = W1[0, :]                               # (256,)
        W1e_l.append(W1[1:, :])                      # (128, 256)
        Whs, bhs = [], []
        idx = 1
        for j in range(1, len(phase_hidden)):
            Wl, bl = _folded_linear(kk[idx], H, H); idx += 1
            Wa, ba = _folded_linear(kk[idx], H, H); idx += 1
            Wb, bb = _folded_linear(kk[idx], H, H); idx += 1
            Whs += [Wl, Wa, Wb]
            bhs += [bl, ba, bb]
        Wh_l.append(jnp.stack(Whs))                  # (9, 256, 256)
        Wout, bout = _folded_linear(kk[idx], H, 1, bn=False)
        wo = Wout[:, 0]                              # (256,)
        bo_row = jnp.zeros((H,), jnp.float32).at[0].set(bout[0])
        # packed f32 slab per bank: [w1t, b1, bh0..bh8, wo, bo(pad)] -> (13, 256)
        bankF_l.append(jnp.stack([w1t, b1] + bhs + [wo, bo_row]))

    return dict(
        We1=We1.astype(jnp.bfloat16),                # (15, 128)
        Wemb=Wemb.astype(jnp.bfloat16),              # (4, 128, 128)
        embB=embB,                                   # (5, 128)      f32
        W1e=jnp.stack(W1e_l).astype(jnp.bfloat16),   # (3, 128, 256)
        Wh=jnp.stack(Wh_l).astype(jnp.bfloat16),     # (3, 9, 256, 256)
        bankF=jnp.stack(bankF_l),                    # (3, 13, 256)  f32
    )


# ---------------------------------------------------------------------------
if __name__ == "__main__":
    # Note: throughput scales nearly for free with B up to the MXU row height
    # (128 on v5e, 256 on v6e/v7x); B=8 kept small for this example.
    B = 8
    key = jax.random.PRNGKey(0)
    k_params, k_t, k_theta = jax.random.split(key, 3)

    params = init_phase_dnn_params(k_params)
    t_norm = jax.random.uniform(k_t, (B, 1), jnp.float32)
    theta = jax.random.normal(k_theta, (B, 15), jnp.float32)

    dphi = phase_dnn_forward(t_norm, theta, params)
    dphi = jax.block_until_ready(dphi)

    assert dphi.shape == (B, 1) and dphi.dtype == jnp.float32
    assert bool(jnp.all(jnp.isfinite(dphi)))
    print("KERNEL_OK")
</pallas_src>

<mosaic_0001>
module attributes {stable_mosaic.version = 11 : i64} {
  func.func @_phase_dnn_kernel(%arg0: i32, %arg1: memref<8x1xf32, #tpu.memory_space<vmem>>, %arg2: memref<8x15xf32, #tpu.memory_space<vmem>>, %arg3: memref<15x128xbf16, #tpu.memory_space<vmem>>, %arg4: memref<4x128x128xbf16, #tpu.memory_space<vmem>>, %arg5: memref<5x128xf32, #tpu.memory_space<vmem>>, %arg6: memref<1x128x256xbf16, #tpu.memory_space<vmem>>, %arg7: memref<1x9x256x256xbf16, #tpu.memory_space<vmem>>, %arg8: memref<1x13x256xf32, #tpu.memory_space<vmem>>, %arg9: memref<8x1xf32, #tpu.memory_space<vmem>>, %arg10: memref<8x128xf32, #tpu.memory_space<vmem>>) attributes {dimension_semantics = [#tpu.dimension_semantics<arbitrary>], iteration_bounds = array<i64: 3>, scalar_prefetch = 0 : i64, scratch_operands = 1 : i64, tpu.core_type = #tpu.core_type<tc>, window_params = [{pipeline_mode = #tpu.pipeline_mode<synchronous>, transform_indices = @transform_0, window_bounds = array<i64: 8, 1>}, {pipeline_mode = #tpu.pipeline_mode<synchronous>, transform_indices = @transform_1, window_bounds = array<i64: 8, 15>}, {pipeline_mode = #tpu.pipeline_mode<synchronous>, transform_indices = @transform_2, window_bounds = array<i64: 15, 128>}, {pipeline_mode = #tpu.pipeline_mode<synchronous>, transform_indices = @transform_3, window_bounds = array<i64: 4, 128, 128>}, {pipeline_mode = #tpu.pipeline_mode<synchronous>, transform_indices = @transform_4, window_bounds = array<i64: 5, 128>}, {transform_indices = @transform_5, window_bounds = array<i64: 1, 128, 256>}, {transform_indices = @transform_6, window_bounds = array<i64: 1, 9, 256, 256>}, {transform_indices = @transform_7, window_bounds = array<i64: 1, 13, 256>}, {pipeline_mode = #tpu.pipeline_mode<synchronous>, transform_indices = @transform_8, window_bounds = array<i64: 8, 1>}]} {
    %c0_i32 = arith.constant 0 : i32
    %0 = arith.cmpi eq, %arg0, %c0_i32 : i32
    %1 = arith.extui %0 : i1 to i32
    %c0_i32_0 = arith.constant 0 : i32
    %2 = arith.cmpi ne, %1, %c0_i32_0 : i32
    scf.if %2 {
      %c0_94 = arith.constant 0 : index
      %c0_95 = arith.constant 0 : index
      %140 = vector.load %arg2[%c0_94, %c0_95] : memref<8x15xf32, #tpu.memory_space<vmem>>, vector<8x15xf32>
      %c0_96 = arith.constant 0 : index
      %c0_97 = arith.constant 0 : index
      %141 = vector.load %arg3[%c0_96, %c0_97] : memref<15x128xbf16, #tpu.memory_space<vmem>>, vector<15x128xbf16>
      %142 = arith.truncf %140 : vector<8x15xf32> to vector<8x15xbf16>
      %cst_98 = arith.constant dense<0.000000e+00> : vector<8x128xf32>
      %143 = tpu.matmul %142, %141, %cst_98 {dimension_numbers = #tpu.dot_dimension_numbers<[1], [0], [0], [1], [0, 0, 1, 1], [], []>} : vector<8x15xbf16>, vector<15x128xbf16>, vector<8x128xf32> -> vector<8x128xf32>
      %c0_99 = arith.constant 0 : index
      %c0_100 = arith.constant 0 : index
      %144 = vector.load %arg5[%c0_99, %c0_100] : memref<5x128xf32, #tpu.memory_space<vmem>>, vector<1x128xf32>
      %145 = vector.shape_cast %144 : vector<1x128xf32> to vector<128xf32>
      %146 = vector.shape_cast %145 : vector<128xf32> to vector<1x128xf32>
      %147 = vector.broadcast %146 : vector<1x128xf32> to vector<8x128xf32>
      %148 = arith.addf %143, %147 : vector<8x128xf32>
      %cst_101 = arith.constant 0.000000e+00 : f32
      %149 = vector.broadcast %cst_101 : f32 to vector<8x128xf32>
      %150 = arith.maximumf %148, %149 : vector<8x128xf32>
      %c0_102 = arith.constant 0 : index
      %c0_103 = arith.constant 0 : index
      %c0_104 = arith.constant 0 : index
      %151 = vector.load %arg4[%c0_102, %c0_103, %c0_104] : memref<4x128x128xbf16, #tpu.memory_space<vmem>>, vector<1x128x128xbf16>
      %152 = vector.shape_cast %151 : vector<1x128x128xbf16> to vector<128x128xbf16>
      %153 = arith.truncf %150 : vector<8x128xf32> to vector<8x128xbf16>
      %cst_105 = arith.constant dense<0.000000e+00> : vector<8x128xf32>
      %154 = tpu.matmul %153, %152, %cst_105 {dimension_numbers = #tpu.dot_dimension_numbers<[1], [0], [0], [1], [0, 0, 1, 1], [], []>} : vector<8x128xbf16>, vector<128x128xbf16>, vector<8x128xf32> -> vector<8x128xf32>
      %c1_106 = arith.constant 1 : index
      %c0_107 = arith.constant 0 : index
      %155 = vector.load %arg5[%c1_106, %c0_107] : memref<5x128xf32, #tpu.memory_space<vmem>>, vector<1x128xf32>
      %156 = vector.shape_cast %155 : vector<1x128xf32> to vector<128xf32>
      %157 = vector.shape_cast %156 : vector<128xf32> to vector<1x128xf32>
      %158 = vector.broadcast %157 : vector<1x128xf32> to vector<8x128xf32>
      %159 = arith.addf %154, %158 : vector<8x128xf32>
      %cst_108 = arith.constant 0.000000e+00 : f32
      %160 = vector.broadcast %cst_108 : f32 to vector<8x128xf32>
      %161 = arith.maximumf %159, %160 : vector<8x128xf32>
      %c1_109 = arith.constant 1 : index
      %c0_110 = arith.constant 0 : index
      %c0_111 = arith.constant 0 : index
      %162 = vector.load %arg4[%c1_109, %c0_110, %c0_111] : memref<4x128x128xbf16, #tpu.memory_space<vmem>>, vector<1x128x128xbf16>
      %163 = vector.shape_cast %162 : vector<1x128x128xbf16> to vector<128x128xbf16>
      %164 = arith.truncf %161 : vector<8x128xf32> to vector<8x128xbf16>
      %cst_112 = arith.constant dense<0.000000e+00> : vector<8x128xf32>
      %165 = tpu.matmul %164, %163, %cst_112 {dimension_numbers = #tpu.dot_dimension_numbers<[1], [0], [0], [1], [0, 0, 1, 1], [], []>} : vector<8x128xbf16>, vector<128x128xbf16>, vector<8x128xf32> -> vector<8x128xf32>
      %c2_113 = arith.constant 2 : index
      %c0_114 = arith.constant 0 : index
      %166 = vector.load %arg5[%c2_113, %c0_114] : memref<5x128xf32, #tpu.memory_space<vmem>>, vector<1x128xf32>
      %167 = vector.shape_cast %166 : vector<1x128xf32> to vector<128xf32>
      %168 = vector.shape_cast %167 : vector<128xf32> to vector<1x128xf32>
      %169 = vector.broadcast %168 : vector<1x128xf32> to vector<8x128xf32>
      %170 = arith.addf %165, %169 : vector<8x128xf32>
      %cst_115 = arith.constant 0.000000e+00 : f32
      %171 = vector.broadcast %cst_115 : f32 to vector<8x128xf32>
      %172 = arith.maximumf %170, %171 : vector<8x128xf32>
      %c2_116 = arith.constant 2 : index
      %c0_117 = arith.constant 0 : index
      %c0_118 = arith.constant 0 : index
      %173 = vector.load %arg4[%c2_116, %c0_117, %c0_118] : memref<4x128x128xbf16, #tpu.memory_space<vmem>>, vector<1x128x128xbf16>
      %174 = vector.shape_cast %173 : vector<1x128x128xbf16> to vector<128x128xbf16>
      %175 = arith.truncf %172 : vector<8x128xf32> to vector<8x128xbf16>
      %cst_119 = arith.constant dense<0.000000e+00> : vector<8x128xf32>
      %176 = tpu.matmul %175, %174, %cst_119 {dimension_numbers = #tpu.dot_dimension_numbers<[1], [0], [0], [1], [0, 0, 1, 1], [], []>} : vector<8x128xbf16>, vector<128x128xbf16>, vector<8x128xf32> -> vector<8x128xf32>
      %c3_120 = arith.constant 3 : index
      %c0_121 = arith.constant 0 : index
      %177 = vector.load %arg5[%c3_120, %c0_121] : memref<5x128xf32, #tpu.memory_space<vmem>>, vector<1x128xf32>
      %178 = vector.shape_cast %177 : vector<1x128xf32> to vector<128xf32>
      %179 = vector.shape_cast %178 : vector<128xf32> to vector<1x128xf32>
      %180 = vector.broadcast %179 : vector<1x128xf32> to vector<8x128xf32>
      %181 = arith.addf %176, %180 : vector<8x128xf32>
      %cst_122 = arith.constant 0.000000e+00 : f32
      %182 = vector.broadcast %cst_122 : f32 to vector<8x128xf32>
      %183 = arith.maximumf %181, %182 : vector<8x128xf32>
      %184 = arith.addf %183, %161 : vector<8x128xf32>
      %c3_123 = arith.constant 3 : index
      %c0_124 = arith.constant 0 : index
      %c0_125 = arith.constant 0 : index
      %185 = vector.load %arg4[%c3_123, %c0_124, %c0_125] : memref<4x128x128xbf16, #tpu.memory_space<vmem>>, vector<1x128x128xbf16>
      %186 = vector.shape_cast %185 : vector<1x128x128xbf16> to vector<128x128xbf16>
      %187 = arith.truncf %184 : vector<8x128xf32> to vector<8x128xbf16>
      %cst_126 = arith.constant dense<0.000000e+00> : vector<8x128xf32>
      %188 = tpu.matmul %187, %186, %cst_126 {dimension_numbers = #tpu.dot_dimension_numbers<[1], [0], [0], [1], [0, 0, 1, 1], [], []>} : vector<8x128xbf16>, vector<128x128xbf16>, vector<8x128xf32> -> vector<8x128xf32>
      %c4_127 = arith.constant 4 : index
      %c0_128 = arith.constant 0 : index
      %189 = vector.load %arg5[%c4_127, %c0_128] : memref<5x128xf32, #tpu.memory_space<vmem>>, vector<1x128xf32>
      %190 = vector.shape_cast %189 : vector<1x128xf32> to vector<128xf32>
      %191 = vector.shape_cast %190 : vector<128xf32> to vector<1x128xf32>
      %192 = vector.broadcast %191 : vector<1x128xf32> to vector<8x128xf32>
      %193 = arith.addf %188, %192 : vector<8x128xf32>
      %c0_129 = arith.constant 0 : index
      %c0_130 = arith.constant 0 : index
      %194 = vector.load %arg10[%c0_129, %c0_130] : memref<8x128xf32, #tpu.memory_space<vmem>>, vector<8x128xf32>
      tpu.vector_store %arg10[%c0_129, %c0_130], %193 {strides = array<i32>} : memref<8x128xf32, #tpu.memory_space<vmem>>, vector<8x128xf32>,
      %cst_131 = arith.constant 0.000000e+00 : f32
      %195 = vector.broadcast %cst_131 : f32 to vector<8x1xf32>
      %c0_132 = arith.constant 0 : index
      %c0_133 = arith.constant 0 : index
      %196 = vector.load %arg9[%c0_132, %c0_133] : memref<8x1xf32, #tpu.memory_space<vmem>>, vector<8x1xf32>
      tpu.vector_store %arg9[%c0_132, %c0_133], %195 {strides = array<i32>} : memref<8x1xf32, #tpu.memory_space<vmem>>, vector<8x1xf32>,
    } else {
    }
    %c0 = arith.constant 0 : index
    %c0_1 = arith.constant 0 : index
    %3 = vector.load %arg10[%c0, %c0_1] : memref<8x128xf32, #tpu.memory_space<vmem>>, vector<8x128xf32>
    %c0_2 = arith.constant 0 : index
    %c0_3 = arith.constant 0 : index
    %4 = vector.load %arg1[%c0_2, %c0_3] : memref<8x1xf32, #tpu.memory_space<vmem>>, vector<8x1xf32>
    %c0_4 = arith.constant 0 : index
    %c0_5 = arith.constant 0 : index
    %c0_6 = arith.constant 0 : index
    %5 = vector.load %arg8[%c0_4, %c0_5, %c0_6] : memref<1x13x256xf32, #tpu.memory_space<vmem>>, vector<1x1x256xf32>
    %6 = vector.shape_cast %5 : vector<1x1x256xf32> to vector<256xf32>
    %c0_7 = arith.constant 0 : index
    %c1 = arith.constant 1 : index
    %c0_8 = arith.constant 0 : index
    %7 = vector.load %arg8[%c0_7, %c1, %c0_8] : memref<1x13x256xf32, #tpu.memory_space<vmem>>, vector<1x1x256xf32>
    %8 = vector.shape_cast %7 : vector<1x1x256xf32> to vector<256xf32>
    %c0_9 = arith.constant 0 : index
    %c0_10 = arith.constant 0 : index
    %c0_11 = arith.constant 0 : index
    %9 = vector.load %arg6[%c0_9, %c0_10, %c0_11] : memref<1x128x256xbf16, #tpu.memory_space<vmem>>, vector<1x128x256xbf16>
    %10 = vector.shape_cast %9 : vector<1x128x256xbf16> to vector<128x256xbf16>
    %11 = arith.truncf %3 : vector<8x128xf32> to vector<8x128xbf16>
    %cst = arith.constant dense<0.000000e+00> : vector<8x256xf32>
    %12 = tpu.matmul %11, %10, %cst {dimension_numbers = #tpu.dot_dimension_numbers<[1], [0], [0], [1], [0, 0, 1, 1], [], []>} : vector<8x128xbf16>, vector<128x256xbf16>, vector<8x256xf32> -> vector<8x256xf32>
    %13 = vector.shape_cast %6 : vector<256xf32> to vector<1x256xf32>
    %14 = vector.broadcast %4 : vector<8x1xf32> to vector<8x256xf32>
    %15 = vector.broadcast %13 : vector<1x256xf32> to vector<8x256xf32>
    %16 = arith.mulf %14, %15 : vector<8x256xf32>
    %17 = arith.addf %12, %16 : vector<8x256xf32>
    %18 = vector.shape_cast %8 : vector<256xf32> to vector<1x256xf32>
    %19 = vector.broadcast %18 : vector<1x256xf32> to vector<8x256xf32>
    %20 = arith.addf %17, %19 : vector<8x256xf32>
    %cst_12 = arith.constant 0.000000e+00 : f32
    %21 = vector.broadcast %cst_12 : f32 to vector<8x256xf32>
    %22 = arith.maximumf %20, %21 : vector<8x256xf32>
    %c0_13 = arith.constant 0 : index
    %c0_14 = arith.constant 0 : index
    %c0_15 = arith.constant 0 : index
    %c0_16 = arith.constant 0 : index
    %23 = vector.load %arg7[%c0_13, %c0_14, %c0_15, %c0_16] : memref<1x9x256x256xbf16, #tpu.memory_space<vmem>>, vector<1x1x256x256xbf16>
    %24 = vector.shape_cast %23 : vector<1x1x256x256xbf16> to vector<256x256xbf16>
    %25 = arith.truncf %22 : vector<8x256xf32> to vector<8x256xbf16>
    %cst_17 = arith.constant dense<0.000000e+00> : vector<8x256xf32>
    %26 = tpu.matmul %25, %24, %cst_17 {dimension_numbers = #tpu.dot_dimension_numbers<[1], [0], [0], [1], [0, 0, 1, 1], [], []>} : vector<8x256xbf16>, vector<256x256xbf16>, vector<8x256xf32> -> vector<8x256xf32>
    %c0_18 = arith.constant 0 : index
    %c2 = arith.constant 2 : index
    %c0_19 = arith.constant 0 : index
    %27 = vector.load %arg8[%c0_18, %c2, %c0_19] : memref<1x13x256xf32, #tpu.memory_space<vmem>>, vector<1x1x256xf32>
    %28 = vector.shape_cast %27 : vector<1x1x256xf32> to vector<256xf32>
    %29 = vector.shape_cast %28 : vector<256xf32> to vector<1x256xf32>
    %30 = vector.broadcast %29 : vector<1x256xf32> to vector<8x256xf32>
    %31 = arith.addf %26, %30 : vector<8x256xf32>
    %cst_20 = arith.constant 0.000000e+00 : f32
    %32 = vector.broadcast %cst_20 : f32 to vector<8x256xf32>
    %33 = arith.maximumf %31, %32 : vector<8x256xf32>
    %c0_21 = arith.constant 0 : index
    %c1_22 = arith.constant 1 : index
    %c0_23 = arith.constant 0 : index
    %c0_24 = arith.constant 0 : index
    %34 = vector.load %arg7[%c0_21, %c1_22, %c0_23, %c0_24] : memref<1x9x256x256xbf16, #tpu.memory_space<vmem>>, vector<1x1x256x256xbf16>
    %35 = vector.shape_cast %34 : vector<1x1x256x256xbf16> to vector<256x256xbf16>
    %36 = arith.truncf %33 : vector<8x256xf32> to vector<8x256xbf16>
    %cst_25 = arith.constant dense<0.000000e+00> : vector<8x256xf32>
    %37 = tpu.matmul %36, %35, %cst_25 {dimension_numbers = #tpu.dot_dimension_numbers<[1], [0], [0], [1], [0, 0, 1, 1], [], []>} : vector<8x256xbf16>, vector<256x256xbf16>, vector<8x256xf32> -> vector<8x256xf32>
    %c0_26 = arith.constant 0 : index
    %c3 = arith.constant 3 : index
    %c0_27 = arith.constant 0 : index
    %38 = vector.load %arg8[%c0_26, %c3, %c0_27] : memref<1x13x256xf32, #tpu.memory_space<vmem>>, vector<1x1x256xf32>
    %39 = vector.shape_cast %38 : vector<1x1x256xf32> to vector<256xf32>
    %40 = vector.shape_cast %39 : vector<256xf32> to vector<1x256xf32>
    %41 = vector.broadcast %40 : vector<1x256xf32> to vector<8x256xf32>
    %42 = arith.addf %37, %41 : vector<8x256xf32>
    %cst_28 = arith.constant 0.000000e+00 : f32
    %43 = vector.broadcast %cst_28 : f32 to vector<8x256xf32>
    %44 = arith.maximumf %42, %43 : vector<8x256xf32>
    %c0_29 = arith.constant 0 : index
    %c2_30 = arith.constant 2 : index
    %c0_31 = arith.constant 0 : index
    %c0_32 = arith.constant 0 : index
    %45 = vector.load %arg7[%c0_29, %c2_30, %c0_31, %c0_32] : memref<1x9x256x256xbf16, #tpu.memory_space<vmem>>, vector<1x1x256x256xbf16>
    %46 = vector.shape_cast %45 : vector<1x1x256x256xbf16> to vector<256x256xbf16>
    %47 = arith.truncf %44 : vector<8x256xf32> to vector<8x256xbf16>
    %cst_33 = arith.constant dense<0.000000e+00> : vector<8x256xf32>
    %48 = tpu.matmul %47, %46, %cst_33 {dimension_numbers = #tpu.dot_dimension_numbers<[1], [0], [0], [1], [0, 0, 1, 1], [], []>} : vector<8x256xbf16>, vector<256x256xbf16>, vector<8x256xf32> -> vector<8x256xf32>
    %c0_34 = arith.constant 0 : index
    %c4 = arith.constant 4 : index
    %c0_35 = arith.constant 0 : index
    %49 = vector.load %arg8[%c0_34, %c4, %c0_35] : memref<1x13x256xf32, #tpu.memory_space<vmem>>, vector<1x1x256xf32>
    %50 = vector.shape_cast %49 : vector<1x1x256xf32> to vector<256xf32>
    %51 = vector.shape_cast %50 : vector<256xf32> to vector<1x256xf32>
    %52 = vector.broadcast %51 : vector<1x256xf32> to vector<8x256xf32>
    %53 = arith.addf %48, %52 : vector<8x256xf32>
    %cst_36 = arith.constant 0.000000e+00 : f32
    %54 = vector.broadcast %cst_36 : f32 to vector<8x256xf32>
    %55 = arith.maximumf %53, %54 : vector<8x256xf32>
    %56 = arith.addf %55, %33 : vector<8x256xf32>
    %c0_37 = arith.constant 0 : index
    %c3_38 = arith.constant 3 : index
    %c0_39 = arith.constant 0 : index
    %c0_40 = arith.constant 0 : index
    %57 = vector.load %arg7[%c0_37, %c3_38, %c0_39, %c0_40] : memref<1x9x256x256xbf16, #tpu.memory_space<vmem>>, vector<1x1x256x256xbf16>
    %58 = vector.shape_cast %57 : vector<1x1x256x256xbf16> to vector<256x256xbf16>
    %59 = arith.truncf %56 : vector<8x256xf32> to vector<8x256xbf16>
    %cst_41 = arith.constant dense<0.000000e+00> : vector<8x256xf32>
    %60 = tpu.matmul %59, %58, %cst_41 {dimension_numbers = #tpu.dot_dimension_numbers<[1], [0], [0], [1], [0, 0, 1, 1], [], []>} : vector<8x256xbf16>, vector<256x256xbf16>, vector<8x256xf32> -> vector<8x256xf32>
    %c0_42 = arith.constant 0 : index
    %c5 = arith.constant 5 : index
    %c0_43 = arith.constant 0 : index
    %61 = vector.load %arg8[%c0_42, %c5, %c0_43] : memref<1x13x256xf32, #tpu.memory_space<vmem>>, vector<1x1x256xf32>
    %62 = vector.shape_cast %61 : vector<1x1x256xf32> to vector<256xf32>
    %63 = vector.shape_cast %62 : vector<256xf32> to vector<1x256xf32>
    %64 = vector.broadcast %63 : vector<1x256xf32> to vector<8x256xf32>
    %65 = arith.addf %60, %64 : vector<8x256xf32>
    %cst_44 = arith.constant 0.000000e+00 : f32
    %66 = vector.broadcast %cst_44 : f32 to vector<8x256xf32>
    %67 = arith.maximumf %65, %66 : vector<8x256xf32>
    %c0_45 = arith.constant 0 : index
    %c4_46 = arith.constant 4 : index
    %c0_47 = arith.constant 0 : index
    %c0_48 = arith.constant 0 : index
    %68 = vector.load %arg7[%c0_45, %c4_46, %c0_47, %c0_48] : memref<1x9x256x256xbf16, #tpu.memory_space<vmem>>, vector<1x1x256x256xbf16>
    %69 = vector.shape_cast %68 : vector<1x1x256x256xbf16> to vector<256x256xbf16>
    %70 = arith.truncf %67 : vector<8x256xf32> to vector<8x256xbf16>
    %cst_49 = arith.constant dense<0.000000e+00> : vector<8x256xf32>
    %71 = tpu.matmul %70, %69, %cst_49 {dimension_numbers = #tpu.dot_dimension_numbers<[1], [0], [0], [1], [0, 0, 1, 1], [], []>} : vector<8x256xbf16>, vector<256x256xbf16>, vector<8x256xf32> -> vector<8x256xf32>
    %c0_50 = arith.constant 0 : index
    %c6 = arith.constant 6 : index
    %c0_51 = arith.constant 0 : index
    %72 = vector.load %arg8[%c0_50, %c6, %c0_51] : memref<1x13x256xf32, #tpu.memory_space<vmem>>, vector<1x1x256xf32>
    %73 = vector.shape_cast %72 : vector<1x1x256xf32> to vector<256xf32>
    %74 = vector.shape_cast %73 : vector<256xf32> to vector<1x256xf32>
    %75 = vector.broadcast %74 : vector<1x256xf32> to vector<8x256xf32>
    %76 = arith.addf %71, %75 : vector<8x256xf32>
    %cst_52 = arith.constant 0.000000e+00 : f32
    %77 = vector.broadcast %cst_52 : f32 to vector<8x256xf32>
    %78 = arith.maximumf %76, %77 : vector<8x256xf32>
    %c0_53 = arith.constant 0 : index
    %c5_54 = arith.constant 5 : index
    %c0_55 = arith.constant 0 : index
    %c0_56 = arith.constant 0 : index
    %79 = vector.load %arg7[%c0_53, %c5_54, %c0_55, %c0_56] : memref<1x9x256x256xbf16, #tpu.memory_space<vmem>>, vector<1x1x256x256xbf16>
    %80 = vector.shape_cast %79 : vector<1x1x256x256xbf16> to vector<256x256xbf16>
    %81 = arith.truncf %78 : vector<8x256xf32> to vector<8x256xbf16>
    %cst_57 = arith.constant dense<0.000000e+00> : vector<8x256xf32>
    %82 = tpu.matmul %81, %80, %cst_57 {dimension_numbers = #tpu.dot_dimension_numbers<[1], [0], [0], [1], [0, 0, 1, 1], [], []>} : vector<8x256xbf16>, vector<256x256xbf16>, vector<8x256xf32> -> vector<8x256xf32>
    %c0_58 = arith.constant 0 : index
    %c7 = arith.constant 7 : index
    %c0_59 = arith.constant 0 : index
    %83 = vector.load %arg8[%c0_58, %c7, %c0_59] : memref<1x13x256xf32, #tpu.memory_space<vmem>>, vector<1x1x256xf32>
    %84 = vector.shape_cast %83 : vector<1x1x256xf32> to vector<256xf32>
    %85 = vector.shape_cast %84 : vector<256xf32> to vector<1x256xf32>
    %86 = vector.broadcast %85 : vector<1x256xf32> to vector<8x256xf32>
    %87 = arith.addf %82, %86 : vector<8x256xf32>
    %cst_60 = arith.constant 0.000000e+00 : f32
    %88 = vector.broadcast %cst_60 : f32 to vector<8x256xf32>
    %89 = arith.maximumf %87, %88 : vector<8x256xf32>
    %90 = arith.addf %89, %67 : vector<8x256xf32>
    %c0_61 = arith.constant 0 : index
    %c6_62 = arith.constant 6 : index
    %c0_63 = arith.constant 0 : index
    %c0_64 = arith.constant 0 : index
    %91 = vector.load %arg7[%c0_61, %c6_62, %c0_63, %c0_64] : memref<1x9x256x256xbf16, #tpu.memory_space<vmem>>, vector<1x1x256x256xbf16>
    %92 = vector.shape_cast %91 : vector<1x1x256x256xbf16> to vector<256x256xbf16>
    %93 = arith.truncf %90 : vector<8x256xf32> to vector<8x256xbf16>
    %cst_65 = arith.constant dense<0.000000e+00> : vector<8x256xf32>
    %94 = tpu.matmul %93, %92, %cst_65 {dimension_numbers = #tpu.dot_dimension_numbers<[1], [0], [0], [1], [0, 0, 1, 1], [], []>} : vector<8x256xbf16>, vector<256x256xbf16>, vector<8x256xf32> -> vector<8x256xf32>
    %c0_66 = arith.constant 0 : index
    %c8 = arith.constant 8 : index
    %c0_67 = arith.constant 0 : index
    %95 = vector.load %arg8[%c0_66, %c8, %c0_67] : memref<1x13x256xf32, #tpu.memory_space<vmem>>, vector<1x1x256xf32>
    %96 = vector.shape_cast %95 : vector<1x1x256xf32> to vector<256xf32>
    %97 = vector.shape_cast %96 : vector<256xf32> to vector<1x256xf32>
    %98 = vector.broadcast %97 : vector<1x256xf32> to vector<8x256xf32>
    %99 = arith.addf %94, %98 : vector<8x256xf32>
    %cst_68 = arith.constant 0.000000e+00 : f32
    %100 = vector.broadcast %cst_68 : f32 to vector<8x256xf32>
    %101 = arith.maximumf %99, %100 : vector<8x256xf32>
    %c0_69 = arith.constant 0 : index
    %c7_70 = arith.constant 7 : index
    %c0_71 = arith.constant 0 : index
    %c0_72 = arith.constant 0 : index
    %102 = vector.load %arg7[%c0_69, %c7_70, %c0_71, %c0_72] : memref<1x9x256x256xbf16, #tpu.memory_space<vmem>>, vector<1x1x256x256xbf16>
    %103 = vector.shape_cast %102 : vector<1x1x256x256xbf16> to vector<256x256xbf16>
    %104 = arith.truncf %101 : vector<8x256xf32> to vector<8x256xbf16>
    %cst_73 = arith.constant dense<0.000000e+00> : vector<8x256xf32>
    %105 = tpu.matmul %104, %103, %cst_73 {dimension_numbers = #tpu.dot_dimension_numbers<[1], [0], [0], [1], [0, 0, 1, 1], [], []>} : vector<8x256xbf16>, vector<256x256xbf16>, vector<8x256xf32> -> vector<8x256xf32>
    %c0_74 = arith.constant 0 : index
    %c9 = arith.constant 9 : index
    %c0_75 = arith.constant 0 : index
    %106 = vector.load %arg8[%c0_74, %c9, %c0_75] : memref<1x13x256xf32, #tpu.memory_space<vmem>>, vector<1x1x256xf32>
    %107 = vector.shape_cast %106 : vector<1x1x256xf32> to vector<256xf32>
    %108 = vector.shape_cast %107 : vector<256xf32> to vector<1x256xf32>
    %109 = vector.broadcast %108 : vector<1x256xf32> to vector<8x256xf32>
    %110 = arith.addf %105, %109 : vector<8x256xf32>
    %cst_76 = arith.constant 0.000000e+00 : f32
    %111 = vector.broadcast %cst_76 : f32 to vector<8x256xf32>
    %112 = arith.maximumf %110, %111 : vector<8x256xf32>
    %c0_77 = arith.constant 0 : index
    %c8_78 = arith.constant 8 : index
    %c0_79 = arith.constant 0 : index
    %c0_80 = arith.constant 0 : index
    %113 = vector.load %arg7[%c0_77, %c8_78, %c0_79, %c0_80] : memref<1x9x256x256xbf16, #tpu.memory_space<vmem>>, vector<1x1x256x256xbf16>
    %114 = vector.shape_cast %113 : vector<1x1x256x256xbf16> to vector<256x256xbf16>
    %115 = arith.truncf %112 : vector<8x256xf32> to vector<8x256xbf16>
    %cst_81 = arith.constant dense<0.000000e+00> : vector<8x256xf32>
    %116 = tpu.matmul %115, %114, %cst_81 {dimension_numbers = #tpu.dot_dimension_numbers<[1], [0], [0], [1], [0, 0, 1, 1], [], []>} : vector<8x256xbf16>, vector<256x256xbf16>, vector<8x256xf32> -> vector<8x256xf32>
    %c0_82 = arith.constant 0 : index
    %c10 = arith.constant 10 : index
    %c0_83 = arith.constant 0 : index
    %117 = vector.load %arg8[%c0_82, %c10, %c0_83] : memref<1x13x256xf32, #tpu.memory_space<vmem>>, vector<1x1x256xf32>
    %118 = vector.shape_cast %117 : vector<1x1x256xf32> to vector<256xf32>
    %119 = vector.shape_cast %118 : vector<256xf32> to vector<1x256xf32>
    %120 = vector.broadcast %119 : vector<1x256xf32> to vector<8x256xf32>
    %121 = arith.addf %116, %120 : vector<8x256xf32>
    %cst_84 = arith.constant 0.000000e+00 : f32
    %122 = vector.broadcast %cst_84 : f32 to vector<8x256xf32>
    %123 = arith.maximumf %121, %122 : vector<8x256xf32>
    %124 = arith.addf %123, %101 : vector<8x256xf32>
    %c0_85 = arith.constant 0 : index
    %c11 = arith.constant 11 : index
    %c0_86 = arith.constant 0 : index
    %125 = vector.load %arg8[%c0_85, %c11, %c0_86] : memref<1x13x256xf32, #tpu.memory_space<vmem>>, vector<1x1x256xf32>
    %126 = vector.shape_cast %125 : vector<1x1x256xf32> to vector<256xf32>
    %c0_87 = arith.constant 0 : index
    %c12 = arith.constant 12 : index
    %c0_88 = arith.constant 0 : index
    %127 = vector.load %arg8[%c0_87, %c12, %c0_88] : memref<1x13x256xf32, #tpu.memory_space<vmem>>, vector<1x1x1xf32>
    %128 = vector.shape_cast %127 : vector<1x1x1xf32> to vector<1xf32>
    %c0_89 = arith.constant 0 : index
    %c0_90 = arith.constant 0 : index
    %129 = vector.load %arg9[%c0_89, %c0_90] : memref<8x1xf32, #tpu.memory_space<vmem>>, vector<8x1xf32>
    %130 = vector.shape_cast %126 : vector<256xf32> to vector<1x256xf32>
    %131 = vector.broadcast %130 : vector<1x256xf32> to vector<8x256xf32>
    %132 = arith.mulf %124, %131 : vector<8x256xf32>
    %cst_91 = arith.constant dense<0.000000e+00> : vector<8xf32>
    %133 = vector.multi_reduction <add>, %132, %cst_91 [1] : vector<8x256xf32> to vector<8xf32>
    %134 = vector.shape_cast %133 : vector<8xf32> to vector<8x1xf32>
    %135 = vector.shape_cast %128 : vector<1xf32> to vector<1x1xf32>
    %136 = vector.broadcast %135 : vector<1x1xf32> to vector<8x1xf32>
    %137 = arith.addf %134, %136 : vector<8x1xf32>
    %138 = arith.addf %129, %137 : vector<8x1xf32>
    %c0_92 = arith.constant 0 : index
    %c0_93 = arith.constant 0 : index
    %139 = vector.load %arg9[%c0_92, %c0_93] : memref<8x1xf32, #tpu.memory_space<vmem>>, vector<8x1xf32>
    tpu.vector_store %arg9[%c0_92, %c0_93], %138 {strides = array<i32>} : memref<8x1xf32, #tpu.memory_space<vmem>>, vector<8x1xf32>,
    return
  }
  func.func @transform_0(%arg0: i32) -> (i32, i32) {
    %c0_i32 = arith.constant 0 : i32
    %c0_i32_0 = arith.constant 0 : i32
    %c0_i32_1 = arith.constant 0 : i32
    return %c0_i32, %c0_i32_0 : i32, i32
  }
  func.func @transform_1(%arg0: i32) -> (i32, i32) {
    %c0_i32 = arith.constant 0 : i32
    %c0_i32_0 = arith.constant 0 : i32
    %c0_i32_1 = arith.constant 0 : i32
    return %c0_i32, %c0_i32_0 : i32, i32
  }
  func.func @transform_2(%arg0: i32) -> (i32, i32) {
    %c0_i32 = arith.constant 0 : i32
    %c0_i32_0 = arith.constant 0 : i32
    %c0_i32_1 = arith.constant 0 : i32
    return %c0_i32, %c0_i32_0 : i32, i32
  }
  func.func @transform_3(%arg0: i32) -> (i32, i32, i32) {
    %c0_i32 = arith.constant 0 : i32
    %c0_i32_0 = arith.constant 0 : i32
    %c0_i32_1 = arith.constant 0 : i32
    %c0_i32_2 = arith.constant 0 : i32
    return %c0_i32, %c0_i32_0, %c0_i32_1 : i32, i32, i32
  }
  func.func @transform_4(%arg0: i32) -> (i32, i32) {
    %c0_i32 = arith.constant 0 : i32
    %c0_i32_0 = arith.constant 0 : i32
    %c0_i32_1 = arith.constant 0 : i32
    return %c0_i32, %c0_i32_0 : i32, i32
  }
  func.func @transform_5(%arg0: i32) -> (i32, i32, i32) {
    %c0_i32 = arith.constant 0 : i32
    %c0_i32_0 = arith.constant 0 : i32
    %c0_i32_1 = arith.constant 0 : i32
    return %arg0, %c0_i32, %c0_i32_0 : i32, i32, i32
  }
  func.func @transform_6(%arg0: i32) -> (i32, i32, i32, i32) {
    %c0_i32 = arith.constant 0 : i32
    %c0_i32_0 = arith.constant 0 : i32
    %c0_i32_1 = arith.constant 0 : i32
    %c0_i32_2 = arith.constant 0 : i32
    return %arg0, %c0_i32, %c0_i32_0, %c0_i32_1 : i32, i32, i32, i32
  }
  func.func @transform_7(%arg0: i32) -> (i32, i32, i32) {
    %c0_i32 = arith.constant 0 : i32
    %c0_i32_0 = arith.constant 0 : i32
    %c0_i32_1 = arith.constant 0 : i32
    return %arg0, %c0_i32, %c0_i32_0 : i32, i32, i32
  }
  func.func @transform_8(%arg0: i32) -> (i32, i32) {
    %c0_i32 = arith.constant 0 : i32
    %c0_i32_0 = arith.constant 0 : i32
    %c0_i32_1 = arith.constant 0 : i32
    return %c0_i32, %c0_i32_0 : i32, i32
  }
}

</mosaic_0001>

<llo_original>
// kernel: phase_dnn_forward.1
$region0: #{phase_dnn_forward.1}
  #allocation0 [shape = 'u32[]', space=smem, size = 0x4, offset = 0x4, fixed_abs, tag = 'smem constant byte address 0x4 - core index']
  #allocation1 [shape = 'u32[144,128]{1,0:T(1,128)}', space=vmem, size = 0x12000, scoped, tag = 'internal scratch']
  #allocation2 [shape = 'f32[8,128]{1,0:T(8,128)}', space=vmem, size = 0x1000, scoped, tag = 'scratch operand']
  %s0 = inlined_call_operand.vmem [shape: f32[8,1], index: 0, kind: input, shape index: {}]
  %s1 = inlined_call_operand.hbm [shape: f32[8,15], index: 1, kind: input, shape index: {}]
  %s2 = inlined_call_operand.hbm [shape: bf16[15,128], index: 2, kind: input, shape index: {}]
  %s3 = inlined_call_operand.hbm [shape: bf16[4,128,128], index: 3, kind: input, shape index: {}]
  %s4 = inlined_call_operand.hbm [shape: f32[5,128], index: 4, kind: input, shape index: {}]
  %s5 = inlined_call_operand.hbm [shape: bf16[3,128,256], index: 5, kind: input, shape index: {}]
  %s6 = inlined_call_operand.hbm [shape: bf16[3,9,256,256], index: 6, kind: input, shape index: {}]
  %s7 = inlined_call_operand.hbm [shape: f32[3,13,256], index: 7, kind: input, shape index: {}]
  %s8 = inlined_call_operand.vmem [shape: f32[8,1], index: 8, kind: output, shape index: {}]
  %s9 = sld [smem:[#allocation0]]
  $region97: #{phase_dnn_forward.1} parent=0
    _
  %s11 = ssub.s32 1, %s9
  %s12 = scalar_select 0, %s11, %s9
  $region1: #{phase_dnn_forward.1} parent=0
    #allocation3 [shape = 'u8[4096]{0}', space=vmem, size = 0x1000, scoped, tag = 'input window, operand 1, single buffered']
    #allocation4 [shape = 's32[2]{0}', space=sflag, size = 0x8, scoped, tag = 'scoped memory for phase_dnn_forward.1']
    #allocation5 [shape = 'u8[4096]{0}', space=vmem, size = 0x1000, scoped, tag = 'input window, operand 2, single buffered']
    #allocation6 [shape = 's32[1]{0}', space=sflag, size = 0x4, scoped, tag = 'scoped memory for phase_dnn_forward.1']
    #allocation7 [shape = 'u8[131072]{0}', space=vmem, size = 0x20000, scoped, tag = 'input window, operand 3, single buffered']
    #allocation8 [shape = 'u8[4096]{0}', space=vmem, size = 0x1000, scoped, tag = 'input window, operand 4, single buffered']
    #allocation9 [shape = 's32[1]{0}', space=sflag, size = 0x4, scoped, tag = 'scoped memory for phase_dnn_forward.1']
    #allocation10 [shape = 'u8[131072]{0}', space=vmem, size = 0x20000, scoped, tag = 'input window, operand 5']
    #allocation11 [shape = 'u8[2359296]{0}', space=vmem, size = 0x240000, scoped, tag = 'input window, operand 6']
    #allocation12 [shape = 'u8[32768]{0}', space=vmem, size = 0x8000, scoped, tag = 'input window, operand 7']
    %13 = vsyncpa [#allocation4], 0
    %14 = vsyncpa [#allocation6], 0
    %15 = vsyncpa [#allocation9], 0
    loop: start=0, step=1, limit=5
    $region2: #{phase_dnn_forward.1} parent=1 // loop_pre_header
      _
    $region3: #{phase_dnn_forward.1} parent=1 // loop_header
      %s17 = sphi 0, %s21
      %p18 = scmp.ge.s32.totalorder %s17, 5
      %s25 = sphi 0, %s25
      %s27 = sphi 0, %s25
      %s28 = sphi 0, %s27
      %s42 = sphi 0, %s28
      %s46 = sphi 0, %s46
      %s48 = sphi 0, %s46
      %s49 = sphi 0, %s48
      %s63 = sphi 0, %s49
      %s67 = sphi 0, %s67
      %s69 = sphi 0, %s67
      %s70 = sphi 0, %s69
      %s84 = sphi 0, %s70
      %s88 = sphi 0, %s88
      %s90 = sphi 0, %s88
      %s91 = sphi 0, %s90
      %s105 = sphi 0, %s91
      %s109 = sphi 0, %s109
      %s111 = sphi 0, %s109
      %s112 = sphi 0, %s111
      %s126 = sphi 0, %s112
      %s132 = sphi 0, %s134
      %s135 = sphi 0, %s132
      %s136 = sphi 0, %s135
      %s152 = sphi 0, %s136
      %s158 = sphi 0, %s160
      %s161 = sphi 0, %s158
      %s162 = sphi 0, %s161
      %s178 = sphi 0, %s162
      %s184 = sphi 0, %s186
      %s187 = sphi 0, %s184
      %s188 = sphi 0, %s187
      %s204 = sphi 0, %s188
      %s208 = sphi 0, %s208
      %s210 = sphi 0, %s208
      %s211 = sphi 0, %s210
      %s225 = sphi 0, %s211
    $region4: #{phase_dnn_forward.1} parent=1 // loop_header_branch
      %20 = sbr.rel (%p18) target = $region8
    $region5: #{phase_dnn_forward.1} parent=1 // loop_body
      %s22 = ssub.s32 %s17, 1
      %s23 = ssub.s32 %s17, 2
      %s24 = sadd.s32 %s17, 1
      %s26 = sadd.s32 %s25, 1
      %p29 = scmp.eq.s32.totalorder %s17, 2
      %p30 = scmp.ne.s32.totalorder %s25, %s27
      %p31 = scmp.eq.s32.totalorder %s17, 0
      %p32 = por %p30, %p31
      %p33 = scmp.ne.s32.totalorder %s25, %s27
      %p34 = scmp.eq.s32.totalorder %s22, 2
      %p35 = por %p33, %p34
      %p36 = scmp.ne.s32.totalorder %s27, %s28
      %p37 = scmp.eq.s32.totalorder %s22, 0
      %p38 = por %p36, %p37
      %p39 = scmp.ne.s32.totalorder %s27, %s28
      %p40 = scmp.eq.s32.totalorder %s23, 2
      %p41 = por %p39, %p40
      %p43 = scmp.ne.s32.totalorder %s28, %s42
      %p44 = scmp.eq.s32.totalorder %s23, 0
      %p45 = por %p43, %p44
      %s47 = sadd.s32 %s46, 1
      %p50 = scmp.eq.s32.totalorder %s17, 2
      %p51 = scmp.ne.s32.totalorder %s46, %s48
      %p52 = scmp.eq.s32.totalorder %s17, 0
      %p53 = por %p51, %p52
      %p54 = scmp.ne.s32.totalorder %s46, %s48
      %p55 = scmp.eq.s32.totalorder %s22, 2
      %p56 = por %p54, %p55
      %p57 = scmp.ne.s32.totalorder %s48, %s49
      %p58 = scmp.eq.s32.totalorder %s22, 0
      %p59 = por %p57, %p58
      %p60 = scmp.ne.s32.totalorder %s48, %s49
      %p61 = scmp.eq.s32.totalorder %s23, 2
      %p62 = por %p60, %p61
      %p64 = scmp.ne.s32.totalorder %s49, %s63
      %p65 = scmp.eq.s32.totalorder %s23, 0
      %p66 = por %p64, %p65
      %s68 = sadd.s32 %s67, 1
      %p71 = scmp.eq.s32.totalorder %s17, 2
      %p72 = scmp.ne.s32.totalorder %s67, %s69
      %p73 = scmp.eq.s32.totalorder %s17, 0
      %p74 = por %p72, %p73
      %p75 = scmp.ne.s32.totalorder %s67, %s69
      %p76 = scmp.eq.s32.totalorder %s22, 2
      %p77 = por %p75, %p76
      %p78 = scmp.ne.s32.totalorder %s69, %s70
      %p79 = scmp.eq.s32.totalorder %s22, 0
      %p80 = por %p78, %p79
      %p81 = scmp.ne.s32.totalorder %s69, %s70
      %p82 = scmp.eq.s32.totalorder %s23, 2
      %p83 = por %p81, %p82
      %p85 = scmp.ne.s32.totalorder %s70, %s84
      %p86 = scmp.eq.s32.totalorder %s23, 0
      %p87 = por %p85, %p86
      %s89 = sadd.s32 %s88, 1
      %p92 = scmp.eq.s32.totalorder %s17, 2
      %p93 = scmp.ne.s32.totalorder %s88, %s90
      %p94 = scmp.eq.s32.totalorder %s17, 0
      %p95 = por %p93, %p94
      %p96 = scmp.ne.s32.totalorder %s88, %s90
      %p97 = scmp.eq.s32.totalorder %s22, 2
      %p98 = por %p96, %p97
      %p99 = scmp.ne.s32.totalorder %s90, %s91
      %p100 = scmp.eq.s32.totalorder %s22, 0
      %p101 = por %p99, %p100
      %p102 = scmp.ne.s32.totalorder %s90, %s91
      %p103 = scmp.eq.s32.totalorder %s23, 2
      %p104 = por %p102, %p103
      %p106 = scmp.ne.s32.totalorder %s91, %s105
      %p107 = scmp.eq.s32.totalorder %s23, 0
      %p108 = por %p106, %p107
      %s110 = sadd.s32 %s109, 1
      %p113 = scmp.eq.s32.totalorder %s17, 2
      %p114 = scmp.ne.s32.totalorder %s109, %s111
      %p115 = scmp.eq.s32.totalorder %s17, 0
      %p116 = por %p114, %p115
      %p117 = scmp.ne.s32.totalorder %s109, %s111
      %p118 = scmp.eq.s32.totalorder %s22, 2
      %p119 = por %p117, %p118
      %p120 = scmp.ne.s32.totalorder %s111, %s112
      %p121 = scmp.eq.s32.totalorder %s22, 0
      %p122 = por %p120, %p121
      %p123 = scmp.ne.s32.totalorder %s111, %s112
      %p124 = scmp.eq.s32.totalorder %s23, 2
      %p125 = por %p123, %p124
      %p127 = scmp.ne.s32.totalorder %s112, %s126
      %p128 = scmp.eq.s32.totalorder %s23, 0
      %p129 = por %p127, %p128
      %s130 = ssub.s32 %s17, %s24
      %p131 = scmp.eq.s32.totalorder %s130, 0
      %s133 = sadd.s32 %s132, 1
      %s134 = scalar_select %p131, %s132, %s133
      %p137 = pneg %p131
      %p138 = scmp.eq.s32.totalorder %s17, 2
      %p139 = por %p137, %p138
      %p140 = scmp.ne.s32.totalorder %s132, %s135
      %p141 = scmp.eq.s32.totalorder %s17, 0
      %p142 = por %p140, %p141
      %p143 = scmp.ne.s32.totalorder %s132, %s135
      %p144 = scmp.eq.s32.totalorder %s22, 2
      %p145 = por %p143, %p144
      %p146 = scmp.ne.s32.totalorder %s135, %s136
      %p147 = scmp.eq.s32.totalorder %s22, 0
      %p148 = por %p146, %p147
      %p149 = scmp.ne.s32.totalorder %s135, %s136
      %p150 = scmp.eq.s32.totalorder %s23, 2
      %p151 = por %p149, %p150
      %p153 = scmp.ne.s32.totalorder %s136, %s152
      %p154 = scmp.eq.s32.totalorder %s23, 0
      %p155 = por %p153, %p154
      %s156 = ssub.s32 %s17, %s24
      %p157 = scmp.eq.s32.totalorder %s156, 0
      %s159 = sadd.s32 %s158, 1
      %s160 = scalar_select %p157, %s158, %s159
      %p163 = pneg %p157
      %p164 = scmp.eq.s32.totalorder %s17, 2
      %p165 = por %p163, %p164
      %p166 = scmp.ne.s32.totalorder %s158, %s161
      %p167 = scmp.eq.s32.totalorder %s17, 0
      %p168 = por %p166, %p167
      %p169 = scmp.ne.s32.totalorder %s158, %s161
      %p170 = scmp.eq.s32.totalorder %s22, 2
      %p171 = por %p169, %p170
      %p172 = scmp.ne.s32.totalorder %s161, %s162
      %p173 = scmp.eq.s32.totalorder %s22, 0
      %p174 = por %p172, %p173
      %p175 = scmp.ne.s32.totalorder %s161, %s162
      %p176 = scmp.eq.s32.totalorder %s23, 2
      %p177 = por %p175, %p176
      %p179 = scmp.ne.s32.totalorder %s162, %s178
      %p180 = scmp.eq.s32.totalorder %s23, 0
      %p181 = por %p179, %p180
      %s182 = ssub.s32 %s17, %s24
      %p183 = scmp.eq.s32.totalorder %s182, 0
      %s185 = sadd.s32 %s184, 1
      %s186 = scalar_select %p183, %s184, %s185
      %p189 = pneg %p183
      %p190 = scmp.eq.s32.totalorder %s17, 2
      %p191 = por %p189, %p190
      %p192 = scmp.ne.s32.totalorder %s184, %s187
      %p193 = scmp.eq.s32.totalorder %s17, 0
      %p194 = por %p192, %p193
      %p195 = scmp.ne.s32.totalorder %s184, %s187
      %p196 = scmp.eq.s32.totalorder %s22, 2
      %p197 = por %p195, %p196
      %p198 = scmp.ne.s32.totalorder %s187, %s188
      %p199 = scmp.eq.s32.totalorder %s22, 0
      %p200 = por %p198, %p199
      %p201 = scmp.ne.s32.totalorder %s187, %s188
      %p202 = scmp.eq.s32.totalorder %s23, 2
      %p203 = por %p201, %p202
      %p205 = scmp.ne.s32.totalorder %s188, %s204
      %p206 = scmp.eq.s32.totalorder %s23, 0
      %p207 = por %p205, %p206
      %s209 = sadd.s32 %s208, 1
      %p212 = scmp.eq.s32.totalorder %s17, 2
      %p213 = scmp.ne.s32.totalorder %s208, %s210
      %p214 = scmp.eq.s32.totalorder %s17, 0
      %p215 = por %p213, %p214
      %p216 = scmp.ne.s32.totalorder %s208, %s210
      %p217 = scmp.eq.s32.totalorder %s22, 2
      %p218 = por %p216, %p217
      %p219 = scmp.ne.s32.totalorder %s210, %s211
      %p220 = scmp.eq.s32.totalorder %s22, 0
      %p221 = por %p219, %p220
      %p222 = scmp.ne.s32.totalorder %s210, %s211
      %p223 = scmp.eq.s32.totalorder %s23, 2
      %p224 = por %p222, %p223
      %p226 = scmp.ne.s32.totalorder %s211, %s225
      %p227 = scmp.eq.s32.totalorder %s23, 0
      %p228 = por %p226, %p227
      %p229 = scmp.le.s32.totalorder 1, %s17
      %p230 = scmp.lt.s32.totalorder %s17, 4
      %p231 = pnand %p229, %p230
      %p232 = pneg %p231
      // Predicated region
      $region9: #{phase_dnn_forward.1} parent=5 // pred_check
        _
      $region10: #{phase_dnn_forward.1} parent=5 // pred_check_branch
        %234 = sbr.rel (%p231) target = $region12
      $region11: #{phase_dnn_forward.1} parent=5 // pred_region
        %s235 = ssub.s32 %s17, 1
        // Predicated region
        $region13: #{phase_dnn_forward.1} parent=11 // pred_check
          %p236 = pneg %p38
        $region14: #{phase_dnn_forward.1} parent=11 // pred_check_branch
          %238 = sbr.rel (%p236) target = $region16
        $region15: #{phase_dnn_forward.1} parent=11 // pred_region
          _
        $region16: #{phase_dnn_forward.1} parent=11 // pred_fallthru
          _
        // Predicated region
        $region17: #{phase_dnn_forward.1} parent=11 // pred_check
          %p239 = pneg %p59
        $region18: #{phase_dnn_forward.1} parent=11 // pred_check_branch
          %241 = sbr.rel (%p239) target = $region20
        $region19: #{phase_dnn_forward.1} parent=11 // pred_region
          %s243 = ssub.s32 128, 128
          %244 = vsyncadd [#allocation4], %s243
          %s246 = sshll.u32 [#allocation3], 4
          %s247 = int_to_ptr.vmem [resolvable:$true] %s246
          %249 = dma.hbm_to_vmem [thread:$0]  %s1, 128, %s247, [#allocation4]
        $region20: #{phase_dnn_forward.1} parent=11 // pred_fallthru
          _
        // Predicated region
        $region21: #{phase_dnn_forward.1} parent=11 // pred_check
          %p250 = pneg %p80
        $region22: #{phase_dnn_forward.1} parent=11 // pred_check_branch
          %252 = sbr.rel (%p250) target = $region24
        $region23: #{phase_dnn_forward.1} parent=11 // pred_region
          %s254 = ssub.s32 128, 128
          %255 = vsyncadd [#allocation6], %s254
          %s256 = sshll.u32 [#allocation5], 4
          %s257 = int_to_ptr.vmem [resolvable:$true] %s256
          %262 = dma.hbm_to_vmem [thread:$0]  %s2, 128, %s257, [#allocation6], 64, 64, 4
        $region24: #{phase_dnn_forward.1} parent=11 // pred_fallthru
          _
        // Predicated region
        $region25: #{phase_dnn_forward.1} parent=11 // pred_check
          %p263 = pneg %p101
        $region26: #{phase_dnn_forward.1} parent=11 // pred_check_branch
          %265 = sbr.rel (%p263) target = $region28
        $region27: #{phase_dnn_forward.1} parent=11 // pred_region
          %s267 = ssub.s32 4096, 4096
          %268 = vsyncadd [#allocation6], %s267
          %s269 = sshll.u32 [#allocation7], 4
          %s270 = int_to_ptr.vmem [resolvable:$true] %s269
          %275 = dma.hbm_to_vmem [thread:$0]  %s3, 4096, %s270, [#allocation6], 64, 64, 4
        $region28: #{phase_dnn_forward.1} parent=11 // pred_fallthru
          _
        // Predicated region
        $region29: #{phase_dnn_forward.1} parent=11 // pred_check
          %p276 = pneg %p122
        $region30: #{phase_dnn_forward.1} parent=11 // pred_check_branch
          %278 = sbr.rel (%p276) target = $region32
        $region31: #{phase_dnn_forward.1} parent=11 // pred_region
          %s280 = ssub.s32 128, 128
          %281 = vsyncadd [#allocation9], %s280
          %s283 = sshll.u32 [#allocation8], 4
          %s284 = int_to_ptr.vmem [resolvable:$true] %s283
          %286 = dma.hbm_to_vmem [thread:$0]  %s4, 128, %s284, [#allocation9]
        $region32: #{phase_dnn_forward.1} parent=11 // pred_fallthru
          _
      $region12: #{phase_dnn_forward.1} parent=5 // pred_fallthru
        _
      %p287 = scmp.lt.s32.totalorder %s17, 3
      // Predicated region
      $region33: #{phase_dnn_forward.1} parent=5 // pred_check
        %p288 = pneg %p287
      $region34: #{phase_dnn_forward.1} parent=5 // pred_check_branch
        %290 = sbr.rel (%p288) target = $region36
      $region35: #{phase_dnn_forward.1} parent=5 // pred_region
        // Predicated region
        $region37: #{phase_dnn_forward.1} parent=35 // pred_check
          %p291 = pneg %p142
        $region38: #{phase_dnn_forward.1} parent=35 // pred_check_branch
          %293 = sbr.rel (%p291) target = $region40
        $region39: #{phase_dnn_forward.1} parent=35 // pred_region
          %s294 = sand.u32 %s17, 1
          %s295 = scalar_lea.sflag [#allocation4], %s294
          %s296 = sand.u32 %s132, 1
          %s297 = smul.addr %s296, 128
          %s298 = scalar_lea.vmem [#allocation10], %s297
          %s300 = ssub.s32 2048, 2048
          %301 = vsyncadd %s295, %s300
          %s302 = smul.addr %s17, 32
          %s303 = smul.addr %s302, 64
          %s304 = scalar_lea.hbm %s5, %s303
          %s305 = sshll.u32 %s298, 4
          %s306 = int_to_ptr.vmem [resolvable:$true] %s305
          %311 = dma.hbm_to_vmem [thread:$0]  %s304, 2048, %s306, %s295, 128, 128, 8
        $region40: #{phase_dnn_forward.1} parent=35 // pred_fallthru
          _
        // Predicated region
        $region41: #{phase_dnn_forward.1} parent=35 // pred_check
          %p312 = pneg %p168
        $region42: #{phase_dnn_forward.1} parent=35 // pred_check_branch
          %314 = sbr.rel (%p312) target = $region44
        $region43: #{phase_dnn_forward.1} parent=35 // pred_region
          %s315 = sand.u32 %s17, 1
          %s316 = scalar_lea.sflag [#allocation4], %s315
          %s317 = sand.u32 %s158, 1
          %s318 = smul.addr %s317, 2304
          %s319 = scalar_lea.vmem [#allocation11], %s318
          %s321 = ssub.s32 36864, 36864
          %322 = vsyncadd %s316, %s321
          %s323 = smul.addr %s17, 576
          %s324 = smul.addr %s323, 64
          %s325 = scalar_lea.hbm %s6, %s324
          %s326 = sshll.u32 %s319, 4
          %s327 = int_to_ptr.vmem [resolvable:$true] %s326
          %332 = dma.hbm_to_vmem [thread:$0]  %s325, 36864, %s327, %s316, 128, 128, 8
        $region44: #{phase_dnn_forward.1} parent=35 // pred_fallthru
          _
        // Predicated region
        $region45: #{phase_dnn_forward.1} parent=35 // pred_check
          %p333 = pneg %p194
        $region46: #{phase_dnn_forward.1} parent=35 // pred_check_branch
          %335 = sbr.rel (%p333) target = $region48
        $region47: #{phase_dnn_forward.1} parent=35 // pred_region
          %s336 = sand.u32 %s17, 1
          %s337 = scalar_lea.sflag [#allocation4], %s336
          %s338 = sand.u32 %s184, 1
          %s339 = smul.addr %s338, 32
          %s340 = scalar_lea.vmem [#allocation12], %s339
          %s342 = ssub.s32 512, 512
          %343 = vsyncadd %s337, %s342
          %s344 = smul.addr %s17, 4
          %s345 = smul.addr %s344, 128
          %s346 = scalar_lea.hbm %s7, %s345
          %s347 = sshll.u32 %s340, 4
          %s348 = int_to_ptr.vmem [resolvable:$true] %s347
          %353 = dma.hbm_to_vmem [thread:$0]  %s346, 512, %s348, %s337, 256, 256, 16
        $region48: #{phase_dnn_forward.1} parent=35 // pred_fallthru
          _
      $region36: #{phase_dnn_forward.1} parent=5 // pred_fallthru
        _
      %p354 = scmp.le.s32.totalorder 1, %s17
      %p355 = scmp.lt.s32.totalorder %s17, 4
      %p356 = pnand %p354, %p355
      %p357 = pneg %p356
      // Predicated region
      $region49: #{phase_dnn_forward.1} parent=5 // pred_check
        _
      $region50: #{phase_dnn_forward.1} parent=5 // pred_check_branch
        %359 = sbr.rel (%p356) target = $region52
      $region51: #{phase_dnn_forward.1} parent=5 // pred_region
        %s360 = ssub.s32 %s17, 1
        // Predicated region
        $region53: #{phase_dnn_forward.1} parent=51 // pred_check
          %p361 = pneg %p59
        $region54: #{phase_dnn_forward.1} parent=51 // pred_check_branch
          %363 = sbr.rel (%p361) target = $region56
        $region55: #{phase_dnn_forward.1} parent=51 // pred_region
          %364 = dma.done [#allocation4], 128
        $region56: #{phase_dnn_forward.1} parent=51 // pred_fallthru
          _
        // Predicated region
        $region57: #{phase_dnn_forward.1} parent=51 // pred_check
          %p365 = pneg %p80
        $region58: #{phase_dnn_forward.1} parent=51 // pred_check_branch
          %367 = sbr.rel (%p365) target = $region60
        $region59: #{phase_dnn_forward.1} parent=51 // pred_region
          %368 = dma.done [#allocation6], 128
        $region60: #{phase_dnn_forward.1} parent=51 // pred_fallthru
          _
        // Predicated region
        $region61: #{phase_dnn_forward.1} parent=51 // pred_check
          %p369 = pneg %p101
        $region62: #{phase_dnn_forward.1} parent=51 // pred_check_branch
          %371 = sbr.rel (%p369) target = $region64
        $region63: #{phase_dnn_forward.1} parent=51 // pred_region
          %372 = dma.done [#allocation6], 4096
        $region64: #{phase_dnn_forward.1} parent=51 // pred_fallthru
          _
        // Predicated region
        $region65: #{phase_dnn_forward.1} parent=51 // pred_check
          %p373 = pneg %p122
        $region66: #{phase_dnn_forward.1} parent=51 // pred_check_branch
          %375 = sbr.rel (%p373) target = $region68
        $region67: #{phase_dnn_forward.1} parent=51 // pred_region
          %376 = dma.done [#allocation9], 128
        $region68: #{phase_dnn_forward.1} parent=51 // pred_fallthru
          _
        %s377 = sand.u32 %s22, 1
        %s378 = scalar_lea.sflag [#allocation4], %s377
        %s379 = sand.u32 %s135, 1
        %s380 = smul.addr %s379, 128
        %s381 = scalar_lea.vmem [#allocation10], %s380
        // Predicated region
        $region69: #{phase_dnn_forward.1} parent=51 // pred_check
          %p382 = pneg %p148
        $region70: #{phase_dnn_forward.1} parent=51 // pred_check_branch
          %384 = sbr.rel (%p382) target = $region72
        $region71: #{phase_dnn_forward.1} parent=51 // pred_region
          %385 = dma.done %s378, 2048
        $region72: #{phase_dnn_forward.1} parent=51 // pred_fallthru
          _
        %s386 = sand.u32 %s22, 1
        %s387 = scalar_lea.sflag [#allocation4], %s386
        %s388 = sand.u32 %s161, 1
        %s389 = smul.addr %s388, 2304
        %s390 = scalar_lea.vmem [#allocation11], %s389
        // Predicated region
        $region73: #{phase_dnn_forward.1} parent=51 // pred_check
          %p391 = pneg %p174
        $region74: #{phase_dnn_forward.1} parent=51 // pred_check_branch
          %393 = sbr.rel (%p391) target = $region76
        $region75: #{phase_dnn_forward.1} parent=51 // pred_region
          %394 = dma.done %s387, 36864
        $region76: #{phase_dnn_forward.1} parent=51 // pred_fallthru
          _
        %s395 = sand.u32 %s22, 1
        %s396 = scalar_lea.sflag [#allocation4], %s395
        %s397 = sand.u32 %s187, 1
        %s398 = smul.addr %s397, 32
        %s399 = scalar_lea.vmem [#allocation12], %s398
        // Predicated region
        $region77: #{phase_dnn_forward.1} parent=51 // pred_check
          %p400 = pneg %p200
        $region78: #{phase_dnn_forward.1} parent=51 // pred_check_branch
          %402 = sbr.rel (%p400) target = $region80
        $region79: #{phase_dnn_forward.1} parent=51 // pred_region
          %403 = dma.done %s396, 512
        $region80: #{phase_dnn_forward.1} parent=51 // pred_fallthru
          _
        %p404 = pneg %p38
        %p405 = pneg %p35
        %p406 = pneg %p59
        %p407 = pneg %p56
        %p408 = pneg %p80
        %p409 = pneg %p77
        %p410 = pneg %p101
        %p411 = pneg %p98
        %p412 = pneg %p122
        %p413 = pneg %p119
        %s414 = sand.u32 %s22, 1
        %s415 = scalar_lea.sflag [#allocation4], %s414
        %s416 = sand.u32 %s135, 1
        %s417 = smul.addr %s416, 128
        %s418 = scalar_lea.vmem [#allocation10], %s417
        %p419 = pneg %p148
        %p420 = pneg %p145
        %s421 = sand.u32 %s22, 1
        %s422 = scalar_lea.sflag [#allocation4], %s421
        %s423 = sand.u32 %s161, 1
        %s424 = smul.addr %s423, 2304
        %s425 = scalar_lea.vmem [#allocation11], %s424
        %p426 = pneg %p174
        %p427 = pneg %p171
        %s428 = sand.u32 %s22, 1
        %s429 = scalar_lea.sflag [#allocation4], %s428
        %s430 = sand.u32 %s187, 1
        %s431 = smul.addr %s430, 32
        %s432 = scalar_lea.vmem [#allocation12], %s431
        %p433 = pneg %p200
        %p434 = pneg %p197
        %p435 = pneg %p221
        %p436 = pneg %p218
        %p438 = scmp.eq.s32.totalorder %s22, 0
        // Predicated region
        $region81: #{phase_dnn_forward.1} parent=51 // pred_check
          %p439 = pneg %p438
        $region82: #{phase_dnn_forward.1} parent=51 // pred_check_branch
          %441 = sbr.rel (%p439) target = $region84
        $region83: #{phase_dnn_forward.1} parent=51 // pred_region
          %v442 = vld [vmem:[#allocation3] sm:$0xff]
          %v443 = vld [vmem:[#allocation5] sm:$0xf]
          %v444 = vld [vmem:[#allocation5 + $0x4] sm:$0xf]
          %v445 = vpack.c.bf16 %v442, %v442
          %v446 = vld [vmem:[#allocation8] sm:$0x1]
          %v447 = vlaneseq
          %v448 = vshrl.u32 %v447, 7
          %v449 = vsub.s32 0, %v448
          %v450 = vrot.slane %v446, %v449
          %v453 = vunpack.c.l.b16 %v443
          %v454 = vunpack.c.l.b16 %v444
          %v455 = vpack.c.b16 %v454, %v453
          %vm456 = vcmask 121856
          %v458 = vsel %vm456, %v445, 0
          %vm460 = vcmask 1046528
          %vm461 = vcmask 1047552
          %v462 = vsel %vm460, 4294967295, 65535
          %v463 = vsel %vm461, %v462, 0
          %v465 = vand.u32 %v455, %v463
          %467 = vmatprep.subr.bf16.mxu0 0
          %468 = vmatpush1.bf16.msra.mxu0 0
          %469 = vmatprep.subr.bf16.mxu0 0
          %470 = vmatpush1.bf16.msra.mxu0 0
          %471 = vmatprep.subr.bf16.mxu0 0
          %472 = vmatpush1.bf16.msra.mxu0 0
          %473 = vmatprep.subr.bf16.mxu0 0
          %474 = vmatpush1.bf16.msra.mxu0 0
          %475 = vmatprep.subr.bf16.mxu0 0
          %476 = vmatpush1.bf16.msra.mxu0 0
          %477 = vmatprep.subr.bf16.mxu0 0
          %478 = vmatpush1.bf16.msra.mxu0 0
          %479 = vmatprep.subr.bf16.mxu0 0
          %480 = vmatpush1.bf16.msra.mxu0 0
          %481 = vmatprep.subr.bf16.mxu0 0
          %482 = vmatpush1.bf16.msra.mxu0 %v465
          %483 = vmatprep.subr.bf16.mxu0 0
          %484 = vmatpush2.bf16.msra.mxu0 0
          %485 = vmatprep.subr.bf16.mxu0 0
          %486 = vmatpush2.bf16.msra.mxu0 0
          %487 = vmatprep.subr.bf16.mxu0 0
          %488 = vmatpush2.bf16.msra.mxu0 0
          %489 = vmatprep.subr.bf16.mxu0 0
          %490 = vmatpush2.bf16.msra.mxu0 0
          %491 = vmatprep.subr.bf16.mxu0 0
          %492 = vmatpush2.bf16.msra.mxu0 0
          %493 = vmatprep.subr.bf16.mxu0 0
          %494 = vmatpush2.bf16.msra.mxu0 0
          %495 = vmatprep.subr.bf16.mxu0 0
          %496 = vmatpush2.bf16.msra.mxu0 0
          %497 = vmatprep.subr.bf16.mxu0 0
          %498 = vmatpush2.bf16.msra.mxu0 0
          %499 = vmatprep.mubr.bf16.mxu0 0
          %500 = vmatmul.mubr.bf16.gmra.mxu0 %v458
          %v501 = vpop.f32.mrf.mxu0
          %v502 = vadd.f32 %v450, %v501
          %v503 = vpop.f32.mrf.mxu0
          %v504 = vpop.f32.mrf.mxu0
          %v505 = vpop.f32.mrf.mxu0
          %506 = vdwg.mxu0
          %v507 = vmax.f32 %v502, 0.0
          %v508 = vld [vmem:[#allocation7] sm:$0xf]
          %v509 = vld [vmem:[#allocation7 + $0x4] sm:$0xf]
          %v510 = vld [vmem:[#allocation7 + $0x8] sm:$0xf]
          %v511 = vld [vmem:[#allocation7 + $0xc] sm:$0xf]
          %v512 = vld [vmem:[#allocation7 + $0x10] sm:$0xf]
          %v513 = vld [vmem:[#allocation7 + $0x14] sm:$0xf]
          %v514 = vld [vmem:[#allocation7 + $0x18] sm:$0xf]
          %v515 = vld [vmem:[#allocation7 + $0x1c] sm:$0xf]
          %v516 = vld [vmem:[#allocation7 + $0x20] sm:$0xf]
          %v517 = vld [vmem:[#allocation7 + $0x24] sm:$0xf]
          %v518 = vld [vmem:[#allocation7 + $0x28] sm:$0xf]
          %v519 = vld [vmem:[#allocation7 + $0x2c] sm:$0xf]
          %v520 = vld [vmem:[#allocation7 + $0x30] sm:$0xf]
          %v521 = vld [vmem:[#allocation7 + $0x34] sm:$0xf]
          %v522 = vld [vmem:[#allocation7 + $0x38] sm:$0xf]
          %v523 = vld [vmem:[#allocation7 + $0x3c] sm:$0xf]
          %v524 = vpack.c.bf16 %v507, %v507
          %v525 = vld [vmem:[#allocation8 + $0x1] sm:$0x1]
          %v526 = vlaneseq
          %v527 = vshrl.u32 %v526, 7
          %v528 = vsub.s32 0, %v527
          %v529 = vrot.slane %v525, %v528
          %v546 = vunpack.c.l.b16 %v508
          %v547 = vunpack.c.l.b16 %v509
          %v548 = vunpack.c.l.b16 %v510
          %v549 = vunpack.c.l.b16 %v511
          %v550 = vunpack.c.l.b16 %v512
          %v551 = vunpack.c.l.b16 %v513
          %v552 = vunpack.c.l.b16 %v514
          %v553 = vunpack.c.l.b16 %v515
          %v554 = vunpack.c.l.b16 %v516
          %v555 = vunpack.c.l.b16 %v517
          %v556 = vunpack.c.l.b16 %v518
          %v557 = vunpack.c.l.b16 %v519
          %v558 = vunpack.c.l.b16 %v520
          %v559 = vunpack.c.l.b16 %v521
          %v560 = vunpack.c.l.b16 %v522
          %v561 = vunpack.c.l.b16 %v523
          %v562 = vpack.c.b16 %v547, %v546
          %v563 = vpack.c.b16 %v549, %v548
          %v564 = vpack.c.b16 %v551, %v550
          %v565 = vpack.c.b16 %v553, %v552
          %v566 = vpack.c.b16 %v555, %v554
          %v567 = vpack.c.b16 %v557, %v556
          %v568 = vpack.c.b16 %v559, %v558
          %v569 = vpack.c.b16 %v561, %v560
          %578 = vmatprep.subr.bf16.mxu0 0
          %579 = vmatpush1.bf16.msra.mxu0 %v569
          %580 = vmatprep.subr.bf16.mxu0 0
          %581 = vmatpush1.bf16.msra.mxu0 %v568
          %582 = vmatprep.subr.bf16.mxu0 0
          %583 = vmatpush1.bf16.msra.mxu0 %v567
          %584 = vmatprep.subr.bf16.mxu0 0
          %585 = vmatpush1.bf16.msra.mxu0 %v566
          %586 = vmatprep.subr.bf16.mxu0 0
          %587 = vmatpush1.bf16.msra.mxu0 %v565
          %588 = vmatprep.subr.bf16.mxu0 0
          %589 = vmatpush1.bf16.msra.mxu0 %v564
          %590 = vmatprep.subr.bf16.mxu0 0
          %591 = vmatpush1.bf16.msra.mxu0 %v563
          %592 = vmatprep.subr.bf16.mxu0 0
          %593 = vmatpush1.bf16.msra.mxu0 %v562
          %594 = vmatprep.subr.bf16.mxu0 0
          %595 = vmatpush2.bf16.msra.mxu0 0
          %596 = vmatprep.subr.bf16.mxu0 0
          %597 = vmatpush2.bf16.msra.mxu0 0
          %598 = vmatprep.subr.bf16.mxu0 0
          %599 = vmatpush2.bf16.msra.mxu0 0
          %600 = vmatprep.subr.bf16.mxu0 0
          %601 = vmatpush2.bf16.msra.mxu0 0
          %602 = vmatprep.subr.bf16.mxu0 0
          %603 = vmatpush2.bf16.msra.mxu0 0
          %604 = vmatprep.subr.bf16.mxu0 0
          %605 = vmatpush2.bf16.msra.mxu0 0
          %606 = vmatprep.subr.bf16.mxu0 0
          %607 = vmatpush2.bf16.msra.mxu0 0
          %608 = vmatprep.subr.bf16.mxu0 0
          %609 = vmatpush2.bf16.msra.mxu0 0
          %610 = vmatprep.mubr.bf16.mxu0 0
          %611 = vmatmul.mubr.bf16.gmra.mxu0 %v524
          %v612 = vpop.f32.mrf.mxu0
          %v613 = vadd.f32 %v529, %v612
          %v614 = vpop.f32.mrf.mxu0
          %v615 = vpop.f32.mrf.mxu0
          %v616 = vpop.f32.mrf.mxu0
          %617 = vdwg.mxu0
          %v618 = vmax.f32 %v613, 0.0
          %s619 = scalar_lea.vmem [#allocation7], 64
          %v620 = vld [vmem:[%s619] sm:$0xf]
          %v621 = vld [vmem:[%s619 + $0x4] sm:$0xf]
          %v622 = vld [vmem:[%s619 + $0x8] sm:$0xf]
          %v623 = vld [vmem:[%s619 + $0xc] sm:$0xf]
          %v624 = vld [vmem:[%s619 + $0x10] sm:$0xf]
          %v625 = vld [vmem:[%s619 + $0x14] sm:$0xf]
          %v626 = vld [vmem:[%s619 + $0x18] sm:$0xf]
          %v627 = vld [vmem:[%s619 + $0x1c] sm:$0xf]
          %v628 = vld [vmem:[%s619 + $0x20] sm:$0xf]
          %v629 = vld [vmem:[%s619 + $0x24] sm:$0xf]
          %v630 = vld [vmem:[%s619 + $0x28] sm:$0xf]
          %v631 = vld [vmem:[%s619 + $0x2c] sm:$0xf]
          %v632 = vld [vmem:[%s619 + $0x30] sm:$0xf]
          %v633 = vld [vmem:[%s619 + $0x34] sm:$0xf]
          %v634 = vld [vmem:[%s619 + $0x38] sm:$0xf]
          %v635 = vld [vmem:[%s619 + $0x3c] sm:$0xf]
          %v636 = vpack.c.bf16 %v618, %v618
          %v637 = vld [vmem:[#allocation8 + $0x2] sm:$0x1]
          %v638 = vlaneseq
          %v639 = vshrl.u32 %v638, 7
          %v640 = vsub.s32 0, %v639
          %v641 = vrot.slane %v637, %v640
          %v658 = vunpack.c.l.b16 %v620
          %v659 = vunpack.c.l.b16 %v621
          %v660 = vunpack.c.l.b16 %v622
          %v661 = vunpack.c.l.b16 %v623
          %v662 = vunpack.c.l.b16 %v624
          %v663 = vunpack.c.l.b16 %v625
          %v664 = vunpack.c.l.b16 %v626
          %v665 = vunpack.c.l.b16 %v627
          %v666 = vunpack.c.l.b16 %v628
          %v667 = vunpack.c.l.b16 %v629
          %v668 = vunpack.c.l.b16 %v630
          %v669 = vunpack.c.l.b16 %v631
          %v670 = vunpack.c.l.b16 %v632
          %v671 = vunpack.c.l.b16 %v633
          %v672 = vunpack.c.l.b16 %v634
          %v673 = vunpack.c.l.b16 %v635
          %v674 = vpack.c.b16 %v659, %v658
          %v675 = vpack.c.b16 %v661, %v660
          %v676 = vpack.c.b16 %v663, %v662
          %v677 = vpack.c.b16 %v665, %v664
          %v678 = vpack.c.b16 %v667, %v666
          %v679 = vpack.c.b16 %v669, %v668
          %v680 = vpack.c.b16 %v671, %v670
          %v681 = vpack.c.b16 %v673, %v672
          %690 = vmatprep.subr.bf16.mxu0 0
          %691 = vmatpush1.bf16.msra.mxu0 %v681
          %692 = vmatprep.subr.bf16.mxu0 0
          %693 = vmatpush1.bf16.msra.mxu0 %v680
          %694 = vmatprep.subr.bf16.mxu0 0
          %695 = vmatpush1.bf16.msra.mxu0 %v679
          %696 = vmatprep.subr.bf16.mxu0 0
          %697 = vmatpush1.bf16.msra.mxu0 %v678
          %698 = vmatprep.subr.bf16.mxu0 0
          %699 = vmatpush1.bf16.msra.mxu0 %v677
          %700 = vmatprep.subr.bf16.mxu0 0
          %701 = vmatpush1.bf16.msra.mxu0 %v676
          %702 = vmatprep.subr.bf16.mxu0 0
          %703 = vmatpush1.bf16.msra.mxu0 %v675
          %704 = vmatprep.subr.bf16.mxu0 0
          %705 = vmatpush1.bf16.msra.mxu0 %v674
          %706 = vmatprep.subr.bf16.mxu0 0
          %707 = vmatpush2.bf16.msra.mxu0 0
          %708 = vmatprep.subr.bf16.mxu0 0
          %709 = vmatpush2.bf16.msra.mxu0 0
          %710 = vmatprep.subr.bf16.mxu0 0
          %711 = vmatpush2.bf16.msra.mxu0 0
          %712 = vmatprep.subr.bf16.mxu0 0
          %713 = vmatpush2.bf16.msra.mxu0 0
          %714 = vmatprep.subr.bf16.mxu0 0
          %715 = vmatpush2.bf16.msra.mxu0 0
          %716 = vmatprep.subr.bf16.mxu0 0
          %717 = vmatpush2.bf16.msra.mxu0 0
          %718 = vmatprep.subr.bf16.mxu0 0
          %719 = vmatpush2.bf16.msra.mxu0 0
          %720 = vmatprep.subr.bf16.mxu0 0
          %721 = vmatpush2.bf16.msra.mxu0 0
          %722 = vmatprep.mubr.bf16.mxu0 0
          %723 = vmatmul.mubr.bf16.gmra.mxu0 %v636
          %v724 = vpop.f32.mrf.mxu0
          %v725 = vadd.f32 %v641, %v724
          %v726 = vpop.f32.mrf.mxu0
          %v727 = vpop.f32.mrf.mxu0
          %v728 = vpop.f32.mrf.mxu0
          %729 = vdwg.mxu0
          %v730 = vmax.f32 %v725, 0.0
          %s731 = scalar_lea.vmem [#allocation7], 128
          %v732 = vld [vmem:[%s731] sm:$0xf]
          %v733 = vld [vmem:[%s731 + $0x4] sm:$0xf]
          %v734 = vld [vmem:[%s731 + $0x8] sm:$0xf]
          %v735 = vld [vmem:[%s731 + $0xc] sm:$0xf]
          %v736 = vld [vmem:[%s731 + $0x10] sm:$0xf]
          %v737 = vld [vmem:[%s731 + $0x14] sm:$0xf]
          %v738 = vld [vmem:[%s731 + $0x18] sm:$0xf]
          %v739 = vld [vmem:[%s731 + $0x1c] sm:$0xf]
          %v740 = vld [vmem:[%s731 + $0x20] sm:$0xf]
          %v741 = vld [vmem:[%s731 + $0x24] sm:$0xf]
          %v742 = vld [vmem:[%s731 + $0x28] sm:$0xf]
          %v743 = vld [vmem:[%s731 + $0x2c] sm:$0xf]
          %v744 = vld [vmem:[%s731 + $0x30] sm:$0xf]
          %v745 = vld [vmem:[%s731 + $0x34] sm:$0xf]
          %v746 = vld [vmem:[%s731 + $0x38] sm:$0xf]
          %v747 = vld [vmem:[%s731 + $0x3c] sm:$0xf]
          %v748 = vpack.c.bf16 %v730, %v730
          %v749 = vld [vmem:[#allocation8 + $0x3] sm:$0x1]
          %v750 = vlaneseq
          %v751 = vshrl.u32 %v750, 7
          %v752 = vsub.s32 0, %v751
          %v753 = vrot.slane %v749, %v752
          %v770 = vunpack.c.l.b16 %v732
          %v771 = vunpack.c.l.b16 %v733
          %v772 = vunpack.c.l.b16 %v734
          %v773 = vunpack.c.l.b16 %v735
          %v774 = vunpack.c.l.b16 %v736
          %v775 = vunpack.c.l.b16 %v737
          %v776 = vunpack.c.l.b16 %v738
          %v777 = vunpack.c.l.b16 %v739
          %v778 = vunpack.c.l.b16 %v740
          %v779 = vunpack.c.l.b16 %v741
          %v780 = vunpack.c.l.b16 %v742
          %v781 = vunpack.c.l.b16 %v743
          %v782 = vunpack.c.l.b16 %v744
          %v783 = vunpack.c.l.b16 %v745
          %v784 = vunpack.c.l.b16 %v746
          %v785 = vunpack.c.l.b16 %v747
          %v786 = vpack.c.b16 %v771, %v770
          %v787 = vpack.c.b16 %v773, %v772
          %v788 = vpack.c.b16 %v775, %v774
          %v789 = vpack.c.b16 %v777, %v776
          %v790 = vpack.c.b16 %v779, %v778
          %v791 = vpack.c.b16 %v781, %v780
          %v792 = vpack.c.b16 %v783, %v782
          %v793 = vpack.c.b16 %v785, %v784
          %802 = vmatprep.subr.bf16.mxu0 0
          %803 = vmatpush1.bf16.msra.mxu0 %v793
          %804 = vmatprep.subr.bf16.mxu0 0
          %805 = vmatpush1.bf16.msra.mxu0 %v792
          %806 = vmatprep.subr.bf16.mxu0 0
          %807 = vmatpush1.bf16.msra.mxu0 %v791
          %808 = vmatprep.subr.bf16.mxu0 0
          %809 = vmatpush1.bf16.msra.mxu0 %v790
          %810 = vmatprep.subr.bf16.mxu0 0
          %811 = vmatpush1.bf16.msra.mxu0 %v789
          %812 = vmatprep.subr.bf16.mxu0 0
          %813 = vmatpush1.bf16.msra.mxu0 %v788
          %814 = vmatprep.subr.bf16.mxu0 0
          %815 = vmatpush1.bf16.msra.mxu0 %v787
          %816 = vmatprep.subr.bf16.mxu0 0
          %817 = vmatpush1.bf16.msra.mxu0 %v786
          %818 = vmatprep.subr.bf16.mxu0 0
          %819 = vmatpush2.bf16.msra.mxu0 0
          %820 = vmatprep.subr.bf16.mxu0 0
          %821 = vmatpush2.bf16.msra.mxu0 0
          %822 = vmatprep.subr.bf16.mxu0 0
          %823 = vmatpush2.bf16.msra.mxu0 0
          %824 = vmatprep.subr.bf16.mxu0 0
          %825 = vmatpush2.bf16.msra.mxu0 0
          %826 = vmatprep.subr.bf16.mxu0 0
          %827 = vmatpush2.bf16.msra.mxu0 0
          %828 = vmatprep.subr.bf16.mxu0 0
          %829 = vmatpush2.bf16.msra.mxu0 0
          %830 = vmatprep.subr.bf16.mxu0 0
          %831 = vmatpush2.bf16.msra.mxu0 0
          %832 = vmatprep.subr.bf16.mxu0 0
          %833 = vmatpush2.bf16.msra.mxu0 0
          %834 = vmatprep.mubr.bf16.mxu0 0
          %835 = vmatmul.mubr.bf16.gmra.mxu0 %v748
          %v836 = vpop.f32.mrf.mxu0
          %v837 = vadd.f32 %v753, %v836
          %v838 = vpop.f32.mrf.mxu0
          %v839 = vpop.f32.mrf.mxu0
          %v840 = vpop.f32.mrf.mxu0
          %841 = vdwg.mxu0
          %v842 = vmax.f32 %v837, 0.0
          %v843 = vadd.f32 %v842, %v618
          %s844 = scalar_lea.vmem [#allocation7], 192
          %v845 = vld [vmem:[%s844] sm:$0xf]
          %v846 = vld [vmem:[%s844 + $0x4] sm:$0xf]
          %v847 = vld [vmem:[%s844 + $0x8] sm:$0xf]
          %v848 = vld [vmem:[%s844 + $0xc] sm:$0xf]
          %v849 = vld [vmem:[%s844 + $0x10] sm:$0xf]
          %v850 = vld [vmem:[%s844 + $0x14] sm:$0xf]
          %v851 = vld [vmem:[%s844 + $0x18] sm:$0xf]
          %v852 = vld [vmem:[%s844 + $0x1c] sm:$0xf]
          %v853 = vld [vmem:[%s844 + $0x20] sm:$0xf]
          %v854 = vld [vmem:[%s844 + $0x24] sm:$0xf]
          %v855 = vld [vmem:[%s844 + $0x28] sm:$0xf]
          %v856 = vld [vmem:[%s844 + $0x2c] sm:$0xf]
          %v857 = vld [vmem:[%s844 + $0x30] sm:$0xf]
          %v858 = vld [vmem:[%s844 + $0x34] sm:$0xf]
          %v859 = vld [vmem:[%s844 + $0x38] sm:$0xf]
          %v860 = vld [vmem:[%s844 + $0x3c] sm:$0xf]
          %v861 = vpack.c.bf16 %v843, %v843
          %v862 = vld [vmem:[#allocation8 + $0x4] sm:$0x1]
          %v863 = vlaneseq
          %v864 = vshrl.u32 %v863, 7
          %v865 = vsub.s32 0, %v864
          %v866 = vrot.slane %v862, %v865
          %v883 = vunpack.c.l.b16 %v845
          %v884 = vunpack.c.l.b16 %v846
          %v885 = vunpack.c.l.b16 %v847
          %v886 = vunpack.c.l.b16 %v848
          %v887 = vunpack.c.l.b16 %v849
          %v888 = vunpack.c.l.b16 %v850
          %v889 = vunpack.c.l.b16 %v851
          %v890 = vunpack.c.l.b16 %v852
          %v891 = vunpack.c.l.b16 %v853
          %v892 = vunpack.c.l.b16 %v854
          %v893 = vunpack.c.l.b16 %v855
          %v894 = vunpack.c.l.b16 %v856
          %v895 = vunpack.c.l.b16 %v857
          %v896 = vunpack.c.l.b16 %v858
          %v897 = vunpack.c.l.b16 %v859
          %v898 = vunpack.c.l.b16 %v860
          %v899 = vpack.c.b16 %v884, %v883
          %v900 = vpack.c.b16 %v886, %v885
          %v901 = vpack.c.b16 %v888, %v887
          %v902 = vpack.c.b16 %v890, %v889
          %v903 = vpack.c.b16 %v892, %v891
          %v904 = vpack.c.b16 %v894, %v893
          %v905 = vpack.c.b16 %v896, %v895
          %v906 = vpack.c.b16 %v898, %v897
          %915 = vmatprep.subr.bf16.mxu0 0
          %916 = vmatpush1.bf16.msra.mxu0 %v906
          %917 = vmatprep.subr.bf16.mxu0 0
          %918 = vmatpush1.bf16.msra.mxu0 %v905
          %919 = vmatprep.subr.bf16.mxu0 0
          %920 = vmatpush1.bf16.msra.mxu0 %v904
          %921 = vmatprep.subr.bf16.mxu0 0
          %922 = vmatpush1.bf16.msra.mxu0 %v903
          %923 = vmatprep.subr.bf16.mxu0 0
          %924 = vmatpush1.bf16.msra.mxu0 %v902
          %925 = vmatprep.subr.bf16.mxu0 0
          %926 = vmatpush1.bf16.msra.mxu0 %v901
          %927 = vmatprep.subr.bf16.mxu0 0
          %928 = vmatpush1.bf16.msra.mxu0 %v900
          %929 = vmatprep.subr.bf16.mxu0 0
          %930 = vmatpush1.bf16.msra.mxu0 %v899
          %931 = vmatprep.subr.bf16.mxu0 0
          %932 = vmatpush2.bf16.msra.mxu0 0
          %933 = vmatprep.subr.bf16.mxu0 0
          %934 = vmatpush2.bf16.msra.mxu0 0
          %935 = vmatprep.subr.bf16.mxu0 0
          %936 = vmatpush2.bf16.msra.mxu0 0
          %937 = vmatprep.subr.bf16.mxu0 0
          %938 = vmatpush2.bf16.msra.mxu0 0
          %939 = vmatprep.subr.bf16.mxu0 0
          %940 = vmatpush2.bf16.msra.mxu0 0
          %941 = vmatprep.subr.bf16.mxu0 0
          %942 = vmatpush2.bf16.msra.mxu0 0
          %943 = vmatprep.subr.bf16.mxu0 0
          %944 = vmatpush2.bf16.msra.mxu0 0
          %945 = vmatprep.subr.bf16.mxu0 0
          %946 = vmatpush2.bf16.msra.mxu0 0
          %947 = vmatprep.mubr.bf16.mxu0 0
          %948 = vmatmul.mubr.bf16.gmra.mxu0 %v861
          %v949 = vpop.f32.mrf.mxu0
          %v950 = vadd.f32 %v866, %v949
          %v951 = vpop.f32.mrf.mxu0
          %v952 = vpop.f32.mrf.mxu0
          %v953 = vpop.f32.mrf.mxu0
          %954 = vdwg.mxu0
          %955 = vst [vmem:[#allocation2] sm:$0xff] %v950
          %vm956 = vcmask 7168
          %957 = vst.msk [vmem:[%s8] sm:$0xff] %vm956, 0.0
        $region84: #{phase_dnn_forward.1} parent=51 // pred_fallthru
          _
        %v958 = vld [vmem:[#allocation2] sm:$0xff]
        %v959 = vld [vmem:[%s0] sm:$0xff]
        %v960 = vld [vmem:[%s399] ss:$8 sm:$0x3]
        %s961 = scalar_lea.vmem %s399, 1 [#allocation12]
        %v962 = vld [vmem:[%s961] ss:$8 sm:$0x3]
        %v963 = vld [vmem:[%s381] sm:$0xff]
        %v964 = vld [vmem:[%s381 + $0x8] sm:$0xff]
        %v965 = vld [vmem:[%s381 + $0x10] sm:$0xff]
        %v966 = vld [vmem:[%s381 + $0x18] sm:$0xff]
        %v967 = vld [vmem:[%s381 + $0x20] sm:$0xff]
        %v968 = vld [vmem:[%s381 + $0x28] sm:$0xff]
        %v969 = vld [vmem:[%s381 + $0x30] sm:$0xff]
        %v970 = vld [vmem:[%s381 + $0x38] sm:$0xff]
        %v971 = vld [vmem:[%s381 + $0x40] sm:$0xff]
        %v972 = vld [vmem:[%s381 + $0x48] sm:$0xff]
        %v973 = vld [vmem:[%s381 + $0x50] sm:$0xff]
        %v974 = vld [vmem:[%s381 + $0x58] sm:$0xff]
        %v975 = vld [vmem:[%s381 + $0x60] sm:$0xff]
        %v976 = vld [vmem:[%s381 + $0x68] sm:$0xff]
        %v977 = vld [vmem:[%s381 + $0x70] sm:$0xff]
        %v978 = vld [vmem:[%s381 + $0x78] sm:$0xff]
        %v979 = vpack.c.bf16 %v958, %v958
        %981 = vset.pattern.permute.xlu0 0
        %982 = vperm.xlu0 %981, %v959
        %v983 = vpop.permute.xlu0 %982
        %v986 = vlaneseq
        %v987 = vshrl.u32 %v986, 7
        %v988 = vsub.s32 0, %v987
        %v989 = vrot.slane %v960, %v988
        %v990 = vlaneseq
        %v991 = vshrl.u32 %v990, 7
        %v992 = vsub.s32 1, %v991
        %v993 = vrot.slane %v960, %v992
        %v996 = vmul.f32 %v983, %v989
        %v997 = vmul.f32 %v983, %v993
        %v1014 = vunpack.c.l.b16 %v963
        %v1015 = vunpack.c.h.b16 %v963
        %v1016 = vunpack.c.l.b16 %v964
        %v1017 = vunpack.c.h.b16 %v964
        %v1018 = vunpack.c.l.b16 %v965
        %v1019 = vunpack.c.h.b16 %v965
        %v1020 = vunpack.c.l.b16 %v966
        %v1021 = vunpack.c.h.b16 %v966
        %v1022 = vunpack.c.l.b16 %v967
        %v1023 = vunpack.c.h.b16 %v967
        %v1024 = vunpack.c.l.b16 %v968
        %v1025 = vunpack.c.h.b16 %v968
        %v1026 = vunpack.c.l.b16 %v969
        %v1027 = vunpack.c.h.b16 %v969
        %v1028 = vunpack.c.l.b16 %v970
        %v1029 = vunpack.c.h.b16 %v970
        %v1030 = vunpack.c.l.b16 %v971
        %v1031 = vunpack.c.h.b16 %v971
        %v1032 = vunpack.c.l.b16 %v972
        %v1033 = vunpack.c.h.b16 %v972
        %v1034 = vunpack.c.l.b16 %v973
        %v1035 = vunpack.c.h.b16 %v973
        %v1036 = vunpack.c.l.b16 %v974
        %v1037 = vunpack.c.h.b16 %v974
        %v1038 = vunpack.c.l.b16 %v975
        %v1039 = vunpack.c.h.b16 %v975
        %v1040 = vunpack.c.l.b16 %v976
        %v1041 = vunpack.c.h.b16 %v976
        %v1042 = vunpack.c.l.b16 %v977
        %v1043 = vunpack.c.h.b16 %v977
        %v1044 = vunpack.c.l.b16 %v978
        %v1045 = vunpack.c.h.b16 %v978
        %v1046 = vpack.c.b16 %v1016, %v1014
        %v1047 = vpack.c.b16 %v1017, %v1015
        %v1048 = vpack.c.b16 %v1020, %v1018
        %v1049 = vpack.c.b16 %v1021, %v1019
        %v1050 = vpack.c.b16 %v1024, %v1022
        %v1051 = vpack.c.b16 %v1025, %v1023
        %v1052 = vpack.c.b16 %v1028, %v1026
        %v1053 = vpack.c.b16 %v1029, %v1027
        %v1054 = vpack.c.b16 %v1032, %v1030
        %v1055 = vpack.c.b16 %v1033, %v1031
        %v1056 = vpack.c.b16 %v1036, %v1034
        %v1057 = vpack.c.b16 %v1037, %v1035
        %v1058 = vpack.c.b16 %v1040, %v1038
        %v1059 = vpack.c.b16 %v1041, %v1039
        %v1060 = vpack.c.b16 %v1044, %v1042
        %v1061 = vpack.c.b16 %v1045, %v1043
        %1078 = vmatprep.subr.bf16.mxu0 %v1061
        %1079 = vmatpush1.bf16.msra.mxu0 %v1060
        %1080 = vmatprep.subr.bf16.mxu0 %v1059
        %1081 = vmatpush1.bf16.msra.mxu0 %v1058
        %1082 = vmatprep.subr.bf16.mxu0 %v1057
        %1083 = vmatpush1.bf16.msra.mxu0 %v1056
        %1084 = vmatprep.subr.bf16.mxu0 %v1055
        %1085 = vmatpush1.bf16.msra.mxu0 %v1054
        %1086 = vmatprep.subr.bf16.mxu0 %v1053
        %1087 = vmatpush1.bf16.msra.mxu0 %v1052
        %1088 = vmatprep.subr.bf16.mxu0 %v1051
        %1089 = vmatpush1.bf16.msra.mxu0 %v1050
        %1090 = vmatprep.subr.bf16.mxu0 %v1049
        %1091 = vmatpush1.bf16.msra.mxu0 %v1048
        %1092 = vmatprep.subr.bf16.mxu0 %v1047
        %1093 = vmatpush1.bf16.msra.mxu0 %v1046
        %1094 = vmatprep.subr.bf16.mxu0 0
        %1095 = vmatpush2.bf16.msra.mxu0 0
        %1096 = vmatprep.subr.bf16.mxu0 0
        %1097 = vmatpush2.bf16.msra.mxu0 0
        %1098 = vmatprep.subr.bf16.mxu0 0
        %1099 = vmatpush2.bf16.msra.mxu0 0
        %1100 = vmatprep.subr.bf16.mxu0 0
        %1101 = vmatpush2.bf16.msra.mxu0 0
        %1102 = vmatprep.subr.bf16.mxu0 0
        %1103 = vmatpush2.bf16.msra.mxu0 0
        %1104 = vmatprep.subr.bf16.mxu0 0
        %1105 = vmatpush2.bf16.msra.mxu0 0
        %1106 = vmatprep.subr.bf16.mxu0 0
        %1107 = vmatpush2.bf16.msra.mxu0 0
        %1108 = vmatprep.subr.bf16.mxu0 0
        %1109 = vmatpush2.bf16.msra.mxu0 0
        %1110 = vmatprep.mubr.bf16.mxu0 0
        %1111 = vmatmul.mubr.bf16.gmra.mxu0 %v979
        %v1112 = vpop.f32.mrf.mxu0
        %v1113 = vadd.f32 %v996, %v1112
        %v1114 = vpop.f32.mrf.mxu0
        %v1115 = vadd.f32 %v997, %v1114
        %v1116 = vpop.f32.mrf.mxu0
        %v1117 = vpop.f32.mrf.mxu0
        %1118 = vdwg.mxu0
        %v1120 = vlaneseq
        %v1121 = vshrl.u32 %v1120, 7
        %v1122 = vsub.s32 0, %v1121
        %v1123 = vrot.slane %v962, %v1122
        %v1124 = vlaneseq
        %v1125 = vshrl.u32 %v1124, 7
        %v1126 = vsub.s32 1, %v1125
        %v1127 = vrot.slane %v962, %v1126
        %v1130 = vadd.f32 %v1113, %v1123
        %v1131 = vadd.f32 %v1115, %v1127
        %v1132 = vmax.f32 %v1130, 0.0
        %v1133 = vmax.f32 %v1131, 0.0
        %v1134 = vld [vmem:[%s390] sm:$0xff]
        %v1135 = vld [vmem:[%s390 + $0x8] sm:$0xff]
        %v1136 = vld [vmem:[%s390 + $0x10] sm:$0xff]
        %v1137 = vld [vmem:[%s390 + $0x18] sm:$0xff]
        %v1138 = vld [vmem:[%s390 + $0x20] sm:$0xff]
        %v1139 = vld [vmem:[%s390 + $0x28] sm:$0xff]
        %v1140 = vld [vmem:[%s390 + $0x30] sm:$0xff]
        %v1141 = vld [vmem:[%s390 + $0x38] sm:$0xff]
        %v1142 = vld [vmem:[%s390 + $0x40] sm:$0xff]
        %v1143 = vld [vmem:[%s390 + $0x48] sm:$0xff]
        %v1144 = vld [vmem:[%s390 + $0x50] sm:$0xff]
        %v1145 = vld [vmem:[%s390 + $0x58] sm:$0xff]
        %v1146 = vld [vmem:[%s390 + $0x60] sm:$0xff]
        %v1147 = vld [vmem:[%s390 + $0x68] sm:$0xff]
        %v1148 = vld [vmem:[%s390 + $0x70] sm:$0xff]
        %v1149 = vld [vmem:[%s390 + $0x78] sm:$0xff]
        %v1150 = vld [vmem:[%s390 + $0x80] sm:$0xff]
        %v1151 = vld [vmem:[%s390 + $0x88] sm:$0xff]
        %v1152 = vld [vmem:[%s390 + $0x90] sm:$0xff]
        %v1153 = vld [vmem:[%s390 + $0x98] sm:$0xff]
        %v1154 = vld [vmem:[%s390 + $0xa0] sm:$0xff]
        %v1155 = vld [vmem:[%s390 + $0xa8] sm:$0xff]
        %v1156 = vld [vmem:[%s390 + $0xb0] sm:$0xff]
        %v1157 = vld [vmem:[%s390 + $0xb8] sm:$0xff]
        %v1158 = vld [vmem:[%s390 + $0xc0] sm:$0xff]
        %v1159 = vld [vmem:[%s390 + $0xc8] sm:$0xff]
        %v1160 = vld [vmem:[%s390 + $0xd0] sm:$0xff]
        %v1161 = vld [vmem:[%s390 + $0xd8] sm:$0xff]
        %v1162 = vld [vmem:[%s390 + $0xe0] sm:$0xff]
        %v1163 = vld [vmem:[%s390 + $0xe8] sm:$0xff]
        %v1164 = vld [vmem:[%s390 + $0xf0] sm:$0xff]
        %v1165 = vld [vmem:[%s390 + $0xf8] sm:$0xff]
        %v1166 = vpack.c.bf16 %v1132, %v1132
        %v1167 = vpack.c.bf16 %v1133, %v1133
        %s1168 = scalar_lea.vmem %s399, 2 [#allocation12]
        %v1169 = vld [vmem:[%s1168] ss:$8 sm:$0x3]
        %v1171 = vlaneseq
        %v1172 = vshrl.u32 %v1171, 7
        %v1173 = vsub.s32 0, %v1172
        %v1174 = vrot.slane %v1169, %v1173
        %v1175 = vlaneseq
        %v1176 = vshrl.u32 %v1175, 7
        %v1177 = vsub.s32 1, %v1176
        %v1178 = vrot.slane %v1169, %v1177
        %v1213 = vunpack.c.l.b16 %v1134
        %v1214 = vunpack.c.h.b16 %v1134
        %v1215 = vunpack.c.l.b16 %v1135
        %v1216 = vunpack.c.h.b16 %v1135
        %v1217 = vunpack.c.l.b16 %v1136
        %v1218 = vunpack.c.h.b16 %v1136
        %v1219 = vunpack.c.l.b16 %v1137
        %v1220 = vunpack.c.h.b16 %v1137
        %v1221 = vunpack.c.l.b16 %v1138
        %v1222 = vunpack.c.h.b16 %v1138
        %v1223 = vunpack.c.l.b16 %v1139
        %v1224 = vunpack.c.h.b16 %v1139
        %v1225 = vunpack.c.l.b16 %v1140
        %v1226 = vunpack.c.h.b16 %v1140
        %v1227 = vunpack.c.l.b16 %v1141
        %v1228 = vunpack.c.h.b16 %v1141
        %v1229 = vunpack.c.l.b16 %v1142
        %v1230 = vunpack.c.h.b16 %v1142
        %v1231 = vunpack.c.l.b16 %v1143
        %v1232 = vunpack.c.h.b16 %v1143
        %v1233 = vunpack.c.l.b16 %v1144
        %v1234 = vunpack.c.h.b16 %v1144
        %v1235 = vunpack.c.l.b16 %v1145
        %v1236 = vunpack.c.h.b16 %v1145
        %v1237 = vunpack.c.l.b16 %v1146
        %v1238 = vunpack.c.h.b16 %v1146
        %v1239 = vunpack.c.l.b16 %v1147
        %v1240 = vunpack.c.h.b16 %v1147
        %v1241 = vunpack.c.l.b16 %v1148
        %v1242 = vunpack.c.h.b16 %v1148
        %v1243 = vunpack.c.l.b16 %v1149
        %v1244 = vunpack.c.h.b16 %v1149
        %v1245 = vunpack.c.l.b16 %v1150
        %v1246 = vunpack.c.h.b16 %v1150
        %v1247 = vunpack.c.l.b16 %v1151
        %v1248 = vunpack.c.h.b16 %v1151
        %v1249 = vunpack.c.l.b16 %v1152
        %v1250 = vunpack.c.h.b16 %v1152
        %v1251 = vunpack.c.l.b16 %v1153
        %v1252 = vunpack.c.h.b16 %v1153
        %v1253 = vunpack.c.l.b16 %v1154
        %v1254 = vunpack.c.h.b16 %v1154
        %v1255 = vunpack.c.l.b16 %v1155
        %v1256 = vunpack.c.h.b16 %v1155
        %v1257 = vunpack.c.l.b16 %v1156
        %v1258 = vunpack.c.h.b16 %v1156
        %v1259 = vunpack.c.l.b16 %v1157
        %v1260 = vunpack.c.h.b16 %v1157
        %v1261 = vunpack.c.l.b16 %v1158
        %v1262 = vunpack.c.h.b16 %v1158
        %v1263 = vunpack.c.l.b16 %v1159
        %v1264 = vunpack.c.h.b16 %v1159
        %v1265 = vunpack.c.l.b16 %v1160
        %v1266 = vunpack.c.h.b16 %v1160
        %v1267 = vunpack.c.l.b16 %v1161
        %v1268 = vunpack.c.h.b16 %v1161
        %v1269 = vunpack.c.l.b16 %v1162
        %v1270 = vunpack.c.h.b16 %v1162
        %v1271 = vunpack.c.l.b16 %v1163
        %v1272 = vunpack.c.h.b16 %v1163
        %v1273 = vunpack.c.l.b16 %v1164
        %v1274 = vunpack.c.h.b16 %v1164
        %v1275 = vunpack.c.l.b16 %v1165
        %v1276 = vunpack.c.h.b16 %v1165
        %v1277 = vpack.c.b16 %v1215, %v1213
        %v1278 = vpack.c.b16 %v1216, %v1214
        %v1279 = vpack.c.b16 %v1219, %v1217
        %v1280 = vpack.c.b16 %v1220, %v1218
        %v1281 = vpack.c.b16 %v1223, %v1221
        %v1282 = vpack.c.b16 %v1224, %v1222
        %v1283 = vpack.c.b16 %v1227, %v1225
        %v1284 = vpack.c.b16 %v1228, %v1226
        %v1285 = vpack.c.b16 %v1231, %v1229
        %v1286 = vpack.c.b16 %v1232, %v1230
        %v1287 = vpack.c.b16 %v1235, %v1233
        %v1288 = vpack.c.b16 %v1236, %v1234
        %v1289 = vpack.c.b16 %v1239, %v1237
        %v1290 = vpack.c.b16 %v1240, %v1238
        %v1291 = vpack.c.b16 %v1243, %v1241
        %v1292 = vpack.c.b16 %v1244, %v1242
        %v1293 = vpack.c.b16 %v1247, %v1245
        %v1294 = vpack.c.b16 %v1248, %v1246
        %v1295 = vpack.c.b16 %v1251, %v1249
        %v1296 = vpack.c.b16 %v1252, %v1250
        %v1297 = vpack.c.b16 %v1255, %v1253
        %v1298 = vpack.c.b16 %v1256, %v1254
        %v1299 = vpack.c.b16 %v1259, %v1257
        %v1300 = vpack.c.b16 %v1260, %v1258
        %v1301 = vpack.c.b16 %v1263, %v1261
        %v1302 = vpack.c.b16 %v1264, %v1262
        %v1303 = vpack.c.b16 %v1267, %v1265
        %v1304 = vpack.c.b16 %v1268, %v1266
        %v1305 = vpack.c.b16 %v1271, %v1269
        %v1306 = vpack.c.b16 %v1272, %v1270
        %v1307 = vpack.c.b16 %v1275, %v1273
        %v1308 = vpack.c.b16 %v1276, %v1274
        %1341 = vmatprep.subr.bf16.mxu0 %v1292
        %1342 = vmatpush1.bf16.msra.mxu0 %v1291
        %1343 = vmatprep.subr.bf16.mxu0 %v1290
        %1344 = vmatpush1.bf16.msra.mxu0 %v1289
        %1345 = vmatprep.subr.bf16.mxu0 %v1288
        %1346 = vmatpush1.bf16.msra.mxu0 %v1287
        %1347 = vmatprep.subr.bf16.mxu0 %v1286
        %1348 = vmatpush1.bf16.msra.mxu0 %v1285
        %1349 = vmatprep.subr.bf16.mxu0 %v1284
        %1350 = vmatpush1.bf16.msra.mxu0 %v1283
        %1351 = vmatprep.subr.bf16.mxu0 %v1282
        %1352 = vmatpush1.bf16.msra.mxu0 %v1281
        %1353 = vmatprep.subr.bf16.mxu0 %v1280
        %1354 = vmatpush1.bf16.msra.mxu0 %v1279
        %1355 = vmatprep.subr.bf16.mxu0 %v1278
        %1356 = vmatpush1.bf16.msra.mxu0 %v1277
        %1357 = vmatprep.subr.bf16.mxu0 %v1308
        %1358 = vmatpush2.bf16.msra.mxu0 %v1307
        %1359 = vmatprep.subr.bf16.mxu0 %v1306
        %1360 = vmatpush2.bf16.msra.mxu0 %v1305
        %1361 = vmatprep.subr.bf16.mxu0 %v1304
        %1362 = vmatpush2.bf16.msra.mxu0 %v1303
        %1363 = vmatprep.subr.bf16.mxu0 %v1302
        %1364 = vmatpush2.bf16.msra.mxu0 %v1301
        %1365 = vmatprep.subr.bf16.mxu0 %v1300
        %1366 = vmatpush2.bf16.msra.mxu0 %v1299
        %1367 = vmatprep.subr.bf16.mxu0 %v1298
        %1368 = vmatpush2.bf16.msra.mxu0 %v1297
        %1369 = vmatprep.subr.bf16.mxu0 %v1296
        %1370 = vmatpush2.bf16.msra.mxu0 %v1295
        %1371 = vmatprep.subr.bf16.mxu0 %v1294
        %1372 = vmatpush2.bf16.msra.mxu0 %v1293
        %1373 = vmatprep.mubr.bf16.mxu0 %v1167
        %1374 = vmatmul.mubr.bf16.gmra.mxu0 %v1166
        %v1375 = vpop.f32.mrf.mxu0
        %v1376 = vadd.f32 %v1174, %v1375
        %v1377 = vpop.f32.mrf.mxu0
        %v1378 = vadd.f32 %v1178, %v1377
        %v1379 = vpop.f32.mrf.mxu0
        %v1380 = vpop.f32.mrf.mxu0
        %1381 = vdwg.mxu0
        %v1382 = vmax.f32 %v1376, 0.0
        %v1383 = vmax.f32 %v1378, 0.0
        %s1384 = scalar_lea.vmem %s390, 256 [#allocation11]
        %v1385 = vld [vmem:[%s1384] sm:$0xff]
        %v1386 = vld [vmem:[%s1384 + $0x8] sm:$0xff]
        %v1387 = vld [vmem:[%s1384 + $0x10] sm:$0xff]
        %v1388 = vld [vmem:[%s1384 + $0x18] sm:$0xff]
        %v1389 = vld [vmem:[%s1384 + $0x20] sm:$0xff]
        %v1390 = vld [vmem:[%s1384 + $0x28] sm:$0xff]
        %v1391 = vld [vmem:[%s1384 + $0x30] sm:$0xff]
        %v1392 = vld [vmem:[%s1384 + $0x38] sm:$0xff]
        %v1393 = vld [vmem:[%s1384 + $0x40] sm:$0xff]
        %v1394 = vld [vmem:[%s1384 + $0x48] sm:$0xff]
        %v1395 = vld [vmem:[%s1384 + $0x50] sm:$0xff]
        %v1396 = vld [vmem:[%s1384 + $0x58] sm:$0xff]
        %v1397 = vld [vmem:[%s1384 + $0x60] sm:$0xff]
        %v1398 = vld [vmem:[%s1384 + $0x68] sm:$0xff]
        %v1399 = vld [vmem:[%s1384 + $0x70] sm:$0xff]
        %v1400 = vld [vmem:[%s1384 + $0x78] sm:$0xff]
        %v1401 = vld [vmem:[%s1384 + $0x80] sm:$0xff]
        %v1402 = vld [vmem:[%s1384 + $0x88] sm:$0xff]
        %v1403 = vld [vmem:[%s1384 + $0x90] sm:$0xff]
        %v1404 = vld [vmem:[%s1384 + $0x98] sm:$0xff]
        %v1405 = vld [vmem:[%s1384 + $0xa0] sm:$0xff]
        %v1406 = vld [vmem:[%s1384 + $0xa8] sm:$0xff]
        %v1407 = vld [vmem:[%s1384 + $0xb0] sm:$0xff]
        %v1408 = vld [vmem:[%s1384 + $0xb8] sm:$0xff]
        %v1409 = vld [vmem:[%s1384 + $0xc0] sm:$0xff]
        %v1410 = vld [vmem:[%s1384 + $0xc8] sm:$0xff]
        %v1411 = vld [vmem:[%s1384 + $0xd0] sm:$0xff]
        %v1412 = vld [vmem:[%s1384 + $0xd8] sm:$0xff]
        %v1413 = vld [vmem:[%s1384 + $0xe0] sm:$0xff]
        %v1414 = vld [vmem:[%s1384 + $0xe8] sm:$0xff]
        %v1415 = vld [vmem:[%s1384 + $0xf0] sm:$0xff]
        %v1416 = vld [vmem:[%s1384 + $0xf8] sm:$0xff]
        %v1417 = vpack.c.bf16 %v1382, %v1382
        %v1418 = vpack.c.bf16 %v1383, %v1383
        %s1419 = scalar_lea.vmem %s399, 3 [#allocation12]
        %v1420 = vld [vmem:[%s1419] ss:$8 sm:$0x3]
        %v1422 = vlaneseq
        %v1423 = vshrl.u32 %v1422, 7
        %v1424 = vsub.s32 0, %v1423
        %v1425 = vrot.slane %v1420, %v1424
        %v1426 = vlaneseq
        %v1427 = vshrl.u32 %v1426, 7
        %v1428 = vsub.s32 1, %v1427
        %v1429 = vrot.slane %v1420, %v1428
        %v1464 = vunpack.c.l.b16 %v1385
        %v1465 = vunpack.c.h.b16 %v1385
        %v1466 = vunpack.c.l.b16 %v1386
        %v1467 = vunpack.c.h.b16 %v1386
        %v1468 = vunpack.c.l.b16 %v1387
        %v1469 = vunpack.c.h.b16 %v1387
        %v1470 = vunpack.c.l.b16 %v1388
        %v1471 = vunpack.c.h.b16 %v1388
        %v1472 = vunpack.c.l.b16 %v1389
        %v1473 = vunpack.c.h.b16 %v1389
        %v1474 = vunpack.c.l.b16 %v1390
        %v1475 = vunpack.c.h.b16 %v1390
        %v1476 = vunpack.c.l.b16 %v1391
        %v1477 = vunpack.c.h.b16 %v1391
        %v1478 = vunpack.c.l.b16 %v1392
        %v1479 = vunpack.c.h.b16 %v1392
        %v1480 = vunpack.c.l.b16 %v1393
        %v1481 = vunpack.c.h.b16 %v1393
        %v1482 = vunpack.c.l.b16 %v1394
        %v1483 = vunpack.c.h.b16 %v1394
        %v1484 = vunpack.c.l.b16 %v1395
        %v1485 = vunpack.c.h.b16 %v1395
        %v1486 = vunpack.c.l.b16 %v1396
        %v1487 = vunpack.c.h.b16 %v1396
        %v1488 = vunpack.c.l.b16 %v1397
        %v1489 = vunpack.c.h.b16 %v1397
        %v1490 = vunpack.c.l.b16 %v1398
        %v1491 = vunpack.c.h.b16 %v1398
        %v1492 = vunpack.c.l.b16 %v1399
        %v1493 = vunpack.c.h.b16 %v1399
        %v1494 = vunpack.c.l.b16 %v1400
        %v1495 = vunpack.c.h.b16 %v1400
        %v1496 = vunpack.c.l.b16 %v1401
        %v1497 = vunpack.c.h.b16 %v1401
        %v1498 = vunpack.c.l.b16 %v1402
        %v1499 = vunpack.c.h.b16 %v1402
        %v1500 = vunpack.c.l.b16 %v1403
        %v1501 = vunpack.c.h.b16 %v1403
        %v1502 = vunpack.c.l.b16 %v1404
        %v1503 = vunpack.c.h.b16 %v1404
        %v1504 = vunpack.c.l.b16 %v1405
        %v1505 = vunpack.c.h.b16 %v1405
        %v1506 = vunpack.c.l.b16 %v1406
        %v1507 = vunpack.c.h.b16 %v1406
        %v1508 = vunpack.c.l.b16 %v1407
        %v1509 = vunpack.c.h.b16 %v1407
        %v1510 = vunpack.c.l.b16 %v1408
        %v1511 = vunpack.c.h.b16 %v1408
        %v1512 = vunpack.c.l.b16 %v1409
        %v1513 = vunpack.c.h.b16 %v1409
        %v1514 = vunpack.c.l.b16 %v1410
        %v1515 = vunpack.c.h.b16 %v1410
        %v1516 = vunpack.c.l.b16 %v1411
        %v1517 = vunpack.c.h.b16 %v1411
        %v1518 = vunpack.c.l.b16 %v1412
        %v1519 = vunpack.c.h.b16 %v1412
        %v1520 = vunpack.c.l.b16 %v1413
        %v1521 = vunpack.c.h.b16 %v1413
        %v1522 = vunpack.c.l.b16 %v1414
        %v1523 = vunpack.c.h.b16 %v1414
        %v1524 = vunpack.c.l.b16 %v1415
        %v1525 = vunpack.c.h.b16 %v1415
        %v1526 = vunpack.c.l.b16 %v1416
        %v1527 = vunpack.c.h.b16 %v1416
        %v1528 = vpack.c.b16 %v1466, %v1464
        %v1529 = vpack.c.b16 %v1467, %v1465
        %v1530 = vpack.c.b16 %v1470, %v1468
        %v1531 = vpack.c.b16 %v1471, %v1469
        %v1532 = vpack.c.b16 %v1474, %v1472
        %v1533 = vpack.c.b16 %v1475, %v1473
        %v1534 = vpack.c.b16 %v1478, %v1476
        %v1535 = vpack.c.b16 %v1479, %v1477
        %v1536 = vpack.c.b16 %v1482, %v1480
        %v1537 = vpack.c.b16 %v1483, %v1481
        %v1538 = vpack.c.b16 %v1486, %v1484
        %v1539 = vpack.c.b16 %v1487, %v1485
        %v1540 = vpack.c.b16 %v1490, %v1488
        %v1541 = vpack.c.b16 %v1491, %v1489
        %v1542 = vpack.c.b16 %v1494, %v1492
        %v1543 = vpack.c.b16 %v1495, %v1493
        %v1544 = vpack.c.b16 %v1498, %v1496
        %v1545 = vpack.c.b16 %v1499, %v1497
        %v1546 = vpack.c.b16 %v1502, %v1500
        %v1547 = vpack.c.b16 %v1503, %v1501
        %v1548 = vpack.c.b16 %v1506, %v1504
        %v1549 = vpack.c.b16 %v1507, %v1505
        %v1550 = vpack.c.b16 %v1510, %v1508
        %v1551 = vpack.c.b16 %v1511, %v1509
        %v1552 = vpack.c.b16 %v1514, %v1512
        %v1553 = vpack.c.b16 %v1515, %v1513
        %v1554 = vpack.c.b16 %v1518, %v1516
        %v1555 = vpack.c.b16 %v1519, %v1517
        %v1556 = vpack.c.b16 %v1522, %v1520
        %v1557 = vpack.c.b16 %v1523, %v1521
        %v1558 = vpack.c.b16 %v1526, %v1524
        %v1559 = vpack.c.b16 %v1527, %v1525
        %1592 = vmatprep.subr.bf16.mxu0 %v1543
        %1593 = vmatpush1.bf16.msra.mxu0 %v1542
        %1594 = vmatprep.subr.bf16.mxu0 %v1541
        %1595 = vmatpush1.bf16.msra.mxu0 %v1540
        %1596 = vmatprep.subr.bf16.mxu0 %v1539
        %1597 = vmatpush1.bf16.msra.mxu0 %v1538
        %1598 = vmatprep.subr.bf16.mxu0 %v1537
        %1599 = vmatpush1.bf16.msra.mxu0 %v1536
        %1600 = vmatprep.subr.bf16.mxu0 %v1535
        %1601 = vmatpush1.bf16.msra.mxu0 %v1534
        %1602 = vmatprep.subr.bf16.mxu0 %v1533
        %1603 = vmatpush1.bf16.msra.mxu0 %v1532
        %1604 = vmatprep.subr.bf16.mxu0 %v1531
        %1605 = vmatpush1.bf16.msra.mxu0 %v1530
        %1606 = vmatprep.subr.bf16.mxu0 %v1529
        %1607 = vmatpush1.bf16.msra.mxu0 %v1528
        %1608 = vmatprep.subr.bf16.mxu0 %v1559
        %1609 = vmatpush2.bf16.msra.mxu0 %v1558
        %1610 = vmatprep.subr.bf16.mxu0 %v1557
        %1611 = vmatpush2.bf16.msra.mxu0 %v1556
        %1612 = vmatprep.subr.bf16.mxu0 %v1555
        %1613 = vmatpush2.bf16.msra.mxu0 %v1554
        %1614 = vmatprep.subr.bf16.mxu0 %v1553
        %1615 = vmatpush2.bf16.msra.mxu0 %v1552
        %1616 = vmatprep.subr.bf16.mxu0 %v1551
        %1617 = vmatpush2.bf16.msra.mxu0 %v1550
        %1618 = vmatprep.subr.bf16.mxu0 %v1549
        %1619 = vmatpush2.bf16.msra.mxu0 %v1548
        %1620 = vmatprep.subr.bf16.mxu0 %v1547
        %1621 = vmatpush2.bf16.msra.mxu0 %v1546
        %1622 = vmatprep.subr.bf16.mxu0 %v1545
        %1623 = vmatpush2.bf16.msra.mxu0 %v1544
        %1624 = vmatprep.mubr.bf16.mxu0 %v1418
        %1625 = vmatmul.mubr.bf16.gmra.mxu0 %v1417
        %v1626 = vpop.f32.mrf.mxu0
        %v1627 = vadd.f32 %v1425, %v1626
        %v1628 = vpop.f32.mrf.mxu0
        %v1629 = vadd.f32 %v1429, %v1628
        %v1630 = vpop.f32.mrf.mxu0
        %v1631 = vpop.f32.mrf.mxu0
        %1632 = vdwg.mxu0
        %v1633 = vmax.f32 %v1627, 0.0
        %v1634 = vmax.f32 %v1629, 0.0
        %s1635 = scalar_lea.vmem %s390, 512 [#allocation11]
        %v1636 = vld [vmem:[%s1635] sm:$0xff]
        %v1637 = vld [vmem:[%s1635 + $0x8] sm:$0xff]
        %v1638 = vld [vmem:[%s1635 + $0x10] sm:$0xff]
        %v1639 = vld [vmem:[%s1635 + $0x18] sm:$0xff]
        %v1640 = vld [vmem:[%s1635 + $0x20] sm:$0xff]
        %v1641 = vld [vmem:[%s1635 + $0x28] sm:$0xff]
        %v1642 = vld [vmem:[%s1635 + $0x30] sm:$0xff]
        %v1643 = vld [vmem:[%s1635 + $0x38] sm:$0xff]
        %v1644 = vld [vmem:[%s1635 + $0x40] sm:$0xff]
        %v1645 = vld [vmem:[%s1635 + $0x48] sm:$0xff]
        %v1646 = vld [vmem:[%s1635 + $0x50] sm:$0xff]
        %v1647 = vld [vmem:[%s1635 + $0x58] sm:$0xff]
        %v1648 = vld [vmem:[%s1635 + $0x60] sm:$0xff]
        %v1649 = vld [vmem:[%s1635 + $0x68] sm:$0xff]
        %v1650 = vld [vmem:[%s1635 + $0x70] sm:$0xff]
        %v1651 = vld [vmem:[%s1635 + $0x78] sm:$0xff]
        %v1652 = vld [vmem:[%s1635 + $0x80] sm:$0xff]
        %v1653 = vld [vmem:[%s1635 + $0x88] sm:$0xff]
        %v1654 = vld [vmem:[%s1635 + $0x90] sm:$0xff]
        %v1655 = vld [vmem:[%s1635 + $0x98] sm:$0xff]
        %v1656 = vld [vmem:[%s1635 + $0xa0] sm:$0xff]
        %v1657 = vld [vmem:[%s1635 + $0xa8] sm:$0xff]
        %v1658 = vld [vmem:[%s1635 + $0xb0] sm:$0xff]
        %v1659 = vld [vmem:[%s1635 + $0xb8] sm:$0xff]
        %v1660 = vld [vmem:[%s1635 + $0xc0] sm:$0xff]
        %v1661 = vld [vmem:[%s1635 + $0xc8] sm:$0xff]
        %v1662 = vld [vmem:[%s1635 + $0xd0] sm:$0xff]
        %v1663 = vld [vmem:[%s1635 + $0xd8] sm:$0xff]
        %v1664 = vld [vmem:[%s1635 + $0xe0] sm:$0xff]
        %v1665 = vld [vmem:[%s1635 + $0xe8] sm:$0xff]
        %v1666 = vld [vmem:[%s1635 + $0xf0] sm:$0xff]
        %v1667 = vld [vmem:[%s1635 + $0xf8] sm:$0xff]
        %v1668 = vpack.c.bf16 %v1633, %v1633
        %v1669 = vpack.c.bf16 %v1634, %v1634
        %s1670 = scalar_lea.vmem %s399, 4 [#allocation12]
        %v1671 = vld [vmem:[%s1670] ss:$8 sm:$0x3]
        %v1673 = vlaneseq
        %v1674 = vshrl.u32 %v1673, 7
        %v1675 = vsub.s32 0, %v1674
        %v1676 = vrot.slane %v1671, %v1675
        %v1677 = vlaneseq
        %v1678 = vshrl.u32 %v1677, 7
        %v1679 = vsub.s32 1, %v1678
        %v1680 = vrot.slane %v1671, %v1679
        %v1715 = vunpack.c.l.b16 %v1636
        %v1716 = vunpack.c.h.b16 %v1636
        %v1717 = vunpack.c.l.b16 %v1637
        %v1718 = vunpack.c.h.b16 %v1637
        %v1719 = vunpack.c.l.b16 %v1638
        %v1720 = vunpack.c.h.b16 %v1638
        %v1721 = vunpack.c.l.b16 %v1639
        %v1722 = vunpack.c.h.b16 %v1639
        %v1723 = vunpack.c.l.b16 %v1640
        %v1724 = vunpack.c.h.b16 %v1640
        %v1725 = vunpack.c.l.b16 %v1641
        %v1726 = vunpack.c.h.b16 %v1641
        %v1727 = vunpack.c.l.b16 %v1642
        %v1728 = vunpack.c.h.b16 %v1642
        %v1729 = vunpack.c.l.b16 %v1643
        %v1730 = vunpack.c.h.b16 %v1643
        %v1731 = vunpack.c.l.b16 %v1644
        %v1732 = vunpack.c.h.b16 %v1644
        %v1733 = vunpack.c.l.b16 %v1645
        %v1734 = vunpack.c.h.b16 %v1645
        %v1735 = vunpack.c.l.b16 %v1646
        %v1736 = vunpack.c.h.b16 %v1646
        %v1737 = vunpack.c.l.b16 %v1647
        %v1738 = vunpack.c.h.b16 %v1647
        %v1739 = vunpack.c.l.b16 %v1648
        %v1740 = vunpack.c.h.b16 %v1648
        %v1741 = vunpack.c.l.b16 %v1649
        %v1742 = vunpack.c.h.b16 %v1649
        %v1743 = vunpack.c.l.b16 %v1650
        %v1744 = vunpack.c.h.b16 %v1650
        %v1745 = vunpack.c.l.b16 %v1651
        %v1746 = vunpack.c.h.b16 %v1651
        %v1747 = vunpack.c.l.b16 %v1652
        %v1748 = vunpack.c.h.b16 %v1652
        %v1749 = vunpack.c.l.b16 %v1653
        %v1750 = vunpack.c.h.b16 %v1653
        %v1751 = vunpack.c.l.b16 %v1654
        %v1752 = vunpack.c.h.b16 %v1654
        %v1753 = vunpack.c.l.b16 %v1655
        %v1754 = vunpack.c.h.b16 %v1655
        %v1755 = vunpack.c.l.b16 %v1656
        %v1756 = vunpack.c.h.b16 %v1656
        %v1757 = vunpack.c.l.b16 %v1657
        %v1758 = vunpack.c.h.b16 %v1657
        %v1759 = vunpack.c.l.b16 %v1658
        %v1760 = vunpack.c.h.b16 %v1658
        %v1761 = vunpack.c.l.b16 %v1659
        %v1762 = vunpack.c.h.b16 %v1659
        %v1763 = vunpack.c.l.b16 %v1660
        %v1764 = vunpack.c.h.b16 %v1660
        %v1765 = vunpack.c.l.b16 %v1661
        %v1766 = vunpack.c.h.b16 %v1661
        %v1767 = vunpack.c.l.b16 %v1662
        %v1768 = vunpack.c.h.b16 %v1662
        %v1769 = vunpack.c.l.b16 %v1663
        %v1770 = vunpack.c.h.b16 %v1663
        %v1771 = vunpack.c.l.b16 %v1664
        %v1772 = vunpack.c.h.b16 %v1664
        %v1773 = vunpack.c.l.b16 %v1665
        %v1774 = vunpack.c.h.b16 %v1665
        %v1775 = vunpack.c.l.b16 %v1666
        %v1776 = vunpack.c.h.b16 %v1666
        %v1777 = vunpack.c.l.b16 %v1667
        %v1778 = vunpack.c.h.b16 %v1667
        %v1779 = vpack.c.b16 %v1717, %v1715
        %v1780 = vpack.c.b16 %v1718, %v1716
        %v1781 = vpack.c.b16 %v1721, %v1719
        %v1782 = vpack.c.b16 %v1722, %v1720
        %v1783 = vpack.c.b16 %v1725, %v1723
        %v1784 = vpack.c.b16 %v1726, %v1724
        %v1785 = vpack.c.b16 %v1729, %v1727
        %v1786 = vpack.c.b16 %v1730, %v1728
        %v1787 = vpack.c.b16 %v1733, %v1731
        %v1788 = vpack.c.b16 %v1734, %v1732
        %v1789 = vpack.c.b16 %v1737, %v1735
        %v1790 = vpack.c.b16 %v1738, %v1736
        %v1791 = vpack.c.b16 %v1741, %v1739
        %v1792 = vpack.c.b16 %v1742, %v1740
        %v1793 = vpack.c.b16 %v1745, %v1743
        %v1794 = vpack.c.b16 %v1746, %v1744
        %v1795 = vpack.c.b16 %v1749, %v1747
        %v1796 = vpack.c.b16 %v1750, %v1748
        %v1797 = vpack.c.b16 %v1753, %v1751
        %v1798 = vpack.c.b16 %v1754, %v1752
        %v1799 = vpack.c.b16 %v1757, %v1755
        %v1800 = vpack.c.b16 %v1758, %v1756
        %v1801 = vpack.c.b16 %v1761, %v1759
        %v1802 = vpack.c.b16 %v1762, %v1760
        %v1803 = vpack.c.b16 %v1765, %v1763
        %v1804 = vpack.c.b16 %v1766, %v1764
        %v1805 = vpack.c.b16 %v1769, %v1767
        %v1806 = vpack.c.b16 %v1770, %v1768
        %v1807 = vpack.c.b16 %v1773, %v1771
        %v1808 = vpack.c.b16 %v1774, %v1772
        %v1809 = vpack.c.b16 %v1777, %v1775
        %v1810 = vpack.c.b16 %v1778, %v1776
        %1843 = vmatprep.subr.bf16.mxu0 %v1794
        %1844 = vmatpush1.bf16.msra.mxu0 %v1793
        %1845 = vmatprep.subr.bf16.mxu0 %v1792
        %1846 = vmatpush1.bf16.msra.mxu0 %v1791
        %1847 = vmatprep.subr.bf16.mxu0 %v1790
        %1848 = vmatpush1.bf16.msra.mxu0 %v1789
        %1849 = vmatprep.subr.bf16.mxu0 %v1788
        %1850 = vmatpush1.bf16.msra.mxu0 %v1787
        %1851 = vmatprep.subr.bf16.mxu0 %v1786
        %1852 = vmatpush1.bf16.msra.mxu0 %v1785
        %1853 = vmatprep.subr.bf16.mxu0 %v1784
        %1854 = vmatpush1.bf16.msra.mxu0 %v1783
        %1855 = vmatprep.subr.bf16.mxu0 %v1782
        %1856 = vmatpush1.bf16.msra.mxu0 %v1781
        %1857 = vmatprep.subr.bf16.mxu0 %v1780
        %1858 = vmatpush1.bf16.msra.mxu0 %v1779
        %1859 = vmatprep.subr.bf16.mxu0 %v1810
        %1860 = vmatpush2.bf16.msra.mxu0 %v1809
        %1861 = vmatprep.subr.bf16.mxu0 %v1808
        %1862 = vmatpush2.bf16.msra.mxu0 %v1807
        %1863 = vmatprep.subr.bf16.mxu0 %v1806
        %1864 = vmatpush2.bf16.msra.mxu0 %v1805
        %1865 = vmatprep.subr.bf16.mxu0 %v1804
        %1866 = vmatpush2.bf16.msra.mxu0 %v1803
        %1867 = vmatprep.subr.bf16.mxu0 %v1802
        %1868 = vmatpush2.bf16.msra.mxu0 %v1801
        %1869 = vmatprep.subr.bf16.mxu0 %v1800
        %1870 = vmatpush2.bf16.msra.mxu0 %v1799
        %1871 = vmatprep.subr.bf16.mxu0 %v1798
        %1872 = vmatpush2.bf16.msra.mxu0 %v1797
        %1873 = vmatprep.subr.bf16.mxu0 %v1796
        %1874 = vmatpush2.bf16.msra.mxu0 %v1795
        %1875 = vmatprep.mubr.bf16.mxu0 %v1669
        %1876 = vmatmul.mubr.bf16.gmra.mxu0 %v1668
        %v1877 = vpop.f32.mrf.mxu0
        %v1878 = vadd.f32 %v1676, %v1877
        %v1879 = vpop.f32.mrf.mxu0
        %v1880 = vadd.f32 %v1680, %v1879
        %v1881 = vpop.f32.mrf.mxu0
        %v1882 = vpop.f32.mrf.mxu0
        %1883 = vdwg.mxu0
        %v1884 = vmax.f32 %v1878, 0.0
        %v1885 = vmax.f32 %v1880, 0.0
        %v1886 = vadd.f32 %v1884, %v1382
        %v1887 = vadd.f32 %v1885, %v1383
        %s1888 = scalar_lea.vmem %s390, 768 [#allocation11]
        %v1889 = vld [vmem:[%s1888] sm:$0xff]
        %v1890 = vld [vmem:[%s1888 + $0x8] sm:$0xff]
        %v1891 = vld [vmem:[%s1888 + $0x10] sm:$0xff]
        %v1892 = vld [vmem:[%s1888 + $0x18] sm:$0xff]
        %v1893 = vld [vmem:[%s1888 + $0x20] sm:$0xff]
        %v1894 = vld [vmem:[%s1888 + $0x28] sm:$0xff]
        %v1895 = vld [vmem:[%s1888 + $0x30] sm:$0xff]
        %v1896 = vld [vmem:[%s1888 + $0x38] sm:$0xff]
        %v1897 = vld [vmem:[%s1888 + $0x40] sm:$0xff]
        %v1898 = vld [vmem:[%s1888 + $0x48] sm:$0xff]
        %v1899 = vld [vmem:[%s1888 + $0x50] sm:$0xff]
        %v1900 = vld [vmem:[%s1888 + $0x58] sm:$0xff]
        %v1901 = vld [vmem:[%s1888 + $0x60] sm:$0xff]
        %v1902 = vld [vmem:[%s1888 + $0x68] sm:$0xff]
        %v1903 = vld [vmem:[%s1888 + $0x70] sm:$0xff]
        %v1904 = vld [vmem:[%s1888 + $0x78] sm:$0xff]
        %v1905 = vld [vmem:[%s1888 + $0x80] sm:$0xff]
        %v1906 = vld [vmem:[%s1888 + $0x88] sm:$0xff]
        %v1907 = vld [vmem:[%s1888 + $0x90] sm:$0xff]
        %v1908 = vld [vmem:[%s1888 + $0x98] sm:$0xff]
        %v1909 = vld [vmem:[%s1888 + $0xa0] sm:$0xff]
        %v1910 = vld [vmem:[%s1888 + $0xa8] sm:$0xff]
        %v1911 = vld [vmem:[%s1888 + $0xb0] sm:$0xff]
        %v1912 = vld [vmem:[%s1888 + $0xb8] sm:$0xff]
        %v1913 = vld [vmem:[%s1888 + $0xc0] sm:$0xff]
        %v1914 = vld [vmem:[%s1888 + $0xc8] sm:$0xff]
        %v1915 = vld [vmem:[%s1888 + $0xd0] sm:$0xff]
        %v1916 = vld [vmem:[%s1888 + $0xd8] sm:$0xff]
        %v1917 = vld [vmem:[%s1888 + $0xe0] sm:$0xff]
        %v1918 = vld [vmem:[%s1888 + $0xe8] sm:$0xff]
        %v1919 = vld [vmem:[%s1888 + $0xf0] sm:$0xff]
        %v1920 = vld [vmem:[%s1888 + $0xf8] sm:$0xff]
        %v1921 = vpack.c.bf16 %v1886, %v1886
        %v1922 = vpack.c.bf16 %v1887, %v1887
        %s1923 = scalar_lea.vmem %s399, 5 [#allocation12]
        %v1924 = vld [vmem:[%s1923] ss:$8 sm:$0x3]
        %v1926 = vlaneseq
        %v1927 = vshrl.u32 %v1926, 7
        %v1928 = vsub.s32 0, %v1927
        %v1929 = vrot.slane %v1924, %v1928
        %v1930 = vlaneseq
        %v1931 = vshrl.u32 %v1930, 7
        %v1932 = vsub.s32 1, %v1931
        %v1933 = vrot.slane %v1924, %v1932
        %v1968 = vunpack.c.l.b16 %v1889
        %v1969 = vunpack.c.h.b16 %v1889
        %v1970 = vunpack.c.l.b16 %v1890
        %v1971 = vunpack.c.h.b16 %v1890
        %v1972 = vunpack.c.l.b16 %v1891
        %v1973 = vunpack.c.h.b16 %v1891
        %v1974 = vunpack.c.l.b16 %v1892
        %v1975 = vunpack.c.h.b16 %v1892
        %v1976 = vunpack.c.l.b16 %v1893
        %v1977 = vunpack.c.h.b16 %v1893
        %v1978 = vunpack.c.l.b16 %v1894
        %v1979 = vunpack.c.h.b16 %v1894
        %v1980 = vunpack.c.l.b16 %v1895
        %v1981 = vunpack.c.h.b16 %v1895
        %v1982 = vunpack.c.l.b16 %v1896
        %v1983 = vunpack.c.h.b16 %v1896
        %v1984 = vunpack.c.l.b16 %v1897
        %v1985 = vunpack.c.h.b16 %v1897
        %v1986 = vunpack.c.l.b16 %v1898
        %v1987 = vunpack.c.h.b16 %v1898
        %v1988 = vunpack.c.l.b16 %v1899
        %v1989 = vunpack.c.h.b16 %v1899
        %v1990 = vunpack.c.l.b16 %v1900
        %v1991 = vunpack.c.h.b16 %v1900
        %v1992 = vunpack.c.l.b16 %v1901
        %v1993 = vunpack.c.h.b16 %v1901
        %v1994 = vunpack.c.l.b16 %v1902
        %v1995 = vunpack.c.h.b16 %v1902
        %v1996 = vunpack.c.l.b16 %v1903
        %v1997 = vunpack.c.h.b16 %v1903
        %v1998 = vunpack.c.l.b16 %v1904
        %v1999 = vunpack.c.h.b16 %v1904
        %v2000 = vunpack.c.l.b16 %v1905
        %v2001 = vunpack.c.h.b16 %v1905
        %v2002 = vunpack.c.l.b16 %v1906
        %v2003 = vunpack.c.h.b16 %v1906
        %v2004 = vunpack.c.l.b16 %v1907
        %v2005 = vunpack.c.h.b16 %v1907
        %v2006 = vunpack.c.l.b16 %v1908
        %v2007 = vunpack.c.h.b16 %v1908
        %v2008 = vunpack.c.l.b16 %v1909
        %v2009 = vunpack.c.h.b16 %v1909
        %v2010 = vunpack.c.l.b16 %v1910
        %v2011 = vunpack.c.h.b16 %v1910
        %v2012 = vunpack.c.l.b16 %v1911
        %v2013 = vunpack.c.h.b16 %v1911
        %v2014 = vunpack.c.l.b16 %v1912
        %v2015 = vunpack.c.h.b16 %v1912
        %v2016 = vunpack.c.l.b16 %v1913
        %v2017 = vunpack.c.h.b16 %v1913
        %v2018 = vunpack.c.l.b16 %v1914
        %v2019 = vunpack.c.h.b16 %v1914
        %v2020 = vunpack.c.l.b16 %v1915
        %v2021 = vunpack.c.h.b16 %v1915
        %v2022 = vunpack.c.l.b16 %v1916
        %v2023 = vunpack.c.h.b16 %v1916
        %v2024 = vunpack.c.l.b16 %v1917
        %v2025 = vunpack.c.h.b16 %v1917
        %v2026 = vunpack.c.l.b16 %v1918
        %v2027 = vunpack.c.h.b16 %v1918
        %v2028 = vunpack.c.l.b16 %v1919
        %v2029 = vunpack.c.h.b16 %v1919
        %v2030 = vunpack.c.l.b16 %v1920
        %v2031 = vunpack.c.h.b16 %v1920
        %v2032 = vpack.c.b16 %v1970, %v1968
        %v2033 = vpack.c.b16 %v1971, %v1969
        %v2034 = vpack.c.b16 %v1974, %v1972
        %v2035 = vpack.c.b16 %v1975, %v1973
        %v2036 = vpack.c.b16 %v1978, %v1976
        %v2037 = vpack.c.b16 %v1979, %v1977
        %v2038 = vpack.c.b16 %v1982, %v1980
        %v2039 = vpack.c.b16 %v1983, %v1981
        %v2040 = vpack.c.b16 %v1986, %v1984
        %v2041 = vpack.c.b16 %v1987, %v1985
        %v2042 = vpack.c.b16 %v1990, %v1988
        %v2043 = vpack.c.b16 %v1991, %v1989
        %v2044 = vpack.c.b16 %v1994, %v1992
        %v2045 = vpack.c.b16 %v1995, %v1993
        %v2046 = vpack.c.b16 %v1998, %v1996
        %v2047 = vpack.c.b16 %v1999, %v1997
        %v2048 = vpack.c.b16 %v2002, %v2000
        %v2049 = vpack.c.b16 %v2003, %v2001
        %v2050 = vpack.c.b16 %v2006, %v2004
        %v2051 = vpack.c.b16 %v2007, %v2005
        %v2052 = vpack.c.b16 %v2010, %v2008
        %v2053 = vpack.c.b16 %v2011, %v2009
        %v2054 = vpack.c.b16 %v2014, %v2012
        %v2055 = vpack.c.b16 %v2015, %v2013
        %v2056 = vpack.c.b16 %v2018, %v2016
        %v2057 = vpack.c.b16 %v2019, %v2017
        %v2058 = vpack.c.b16 %v2022, %v2020
        %v2059 = vpack.c.b16 %v2023, %v2021
        %v2060 = vpack.c.b16 %v2026, %v2024
        %v2061 = vpack.c.b16 %v2027, %v2025
        %v2062 = vpack.c.b16 %v2030, %v2028
        %v2063 = vpack.c.b16 %v2031, %v2029
        %2096 = vmatprep.subr.bf16.mxu0 %v2047
        %2097 = vmatpush1.bf16.msra.mxu0 %v2046
        %2098 = vmatprep.subr.bf16.mxu0 %v2045
        %2099 = vmatpush1.bf16.msra.mxu0 %v2044
        %2100 = vmatprep.subr.bf16.mxu0 %v2043
        %2101 = vmatpush1.bf16.msra.mxu0 %v2042
        %2102 = vmatprep.subr.bf16.mxu0 %v2041
        %2103 = vmatpush1.bf16.msra.mxu0 %v2040
        %2104 = vmatprep.subr.bf16.mxu0 %v2039
        %2105 = vmatpush1.bf16.msra.mxu0 %v2038
        %2106 = vmatprep.subr.bf16.mxu0 %v2037
        %2107 = vmatpush1.bf16.msra.mxu0 %v2036
        %2108 = vmatprep.subr.bf16.mxu0 %v2035
        %2109 = vmatpush1.bf16.msra.mxu0 %v2034
        %2110 = vmatprep.subr.bf16.mxu0 %v2033
        %2111 = vmatpush1.bf16.msra.mxu0 %v2032
        %2112 = vmatprep.subr.bf16.mxu0 %v2063
        %2113 = vmatpush2.bf16.msra.mxu0 %v2062
        %2114 = vmatprep.subr.bf16.mxu0 %v2061
        %2115 = vmatpush2.bf16.msra.mxu0 %v2060
        %2116 = vmatprep.subr.bf16.mxu0 %v2059
        %2117 = vmatpush2.bf16.msra.mxu0 %v2058
        %2118 = vmatprep.subr.bf16.mxu0 %v2057
        %2119 = vmatpush2.bf16.msra.mxu0 %v2056
        %2120 = vmatprep.subr.bf16.mxu0 %v2055
        %2121 = vmatpush2.bf16.msra.mxu0 %v2054
        %2122 = vmatprep.subr.bf16.mxu0 %v2053
        %2123 = vmatpush2.bf16.msra.mxu0 %v2052
        %2124 = vmatprep.subr.bf16.mxu0 %v2051
        %2125 = vmatpush2.bf16.msra.mxu0 %v2050
        %2126 = vmatprep.subr.bf16.mxu0 %v2049
        %2127 = vmatpush2.bf16.msra.mxu0 %v2048
        %2128 = vmatprep.mubr.bf16.mxu0 %v1922
        %2129 = vmatmul.mubr.bf16.gmra.mxu0 %v1921
        %v2130 = vpop.f32.mrf.mxu0
        %v2131 = vadd.f32 %v1929, %v2130
        %v2132 = vpop.f32.mrf.mxu0
        %v2133 = vadd.f32 %v1933, %v2132
        %v2134 = vpop.f32.mrf.mxu0
        %v2135 = vpop.f32.mrf.mxu0
        %2136 = vdwg.mxu0
        %v2137 = vmax.f32 %v2131, 0.0
        %v2138 = vmax.f32 %v2133, 0.0
        %s2139 = scalar_lea.vmem %s390, 1024 [#allocation11]
        %v2140 = vld [vmem:[%s2139] sm:$0xff]
        %v2141 = vld [vmem:[%s2139 + $0x8] sm:$0xff]
        %v2142 = vld [vmem:[%s2139 + $0x10] sm:$0xff]
        %v2143 = vld [vmem:[%s2139 + $0x18] sm:$0xff]
        %v2144 = vld [vmem:[%s2139 + $0x20] sm:$0xff]
        %v2145 = vld [vmem:[%s2139 + $0x28] sm:$0xff]
        %v2146 = vld [vmem:[%s2139 + $0x30] sm:$0xff]
        %v2147 = vld [vmem:[%s2139 + $0x38] sm:$0xff]
        %v2148 = vld [vmem:[%s2139 + $0x40] sm:$0xff]
        %v2149 = vld [vmem:[%s2139 + $0x48] sm:$0xff]
        %v2150 = vld [vmem:[%s2139 + $0x50] sm:$0xff]
        %v2151 = vld [vmem:[%s2139 + $0x58] sm:$0xff]
        %v2152 = vld [vmem:[%s2139 + $0x60] sm:$0xff]
        %v2153 = vld [vmem:[%s2139 + $0x68] sm:$0xff]
        %v2154 = vld [vmem:[%s2139 + $0x70] sm:$0xff]
        %v2155 = vld [vmem:[%s2139 + $0x78] sm:$0xff]
        %v2156 = vld [vmem:[%s2139 + $0x80] sm:$0xff]
        %v2157 = vld [vmem:[%s2139 + $0x88] sm:$0xff]
        %v2158 = vld [vmem:[%s2139 + $0x90] sm:$0xff]
        %v2159 = vld [vmem:[%s2139 + $0x98] sm:$0xff]
        %v2160 = vld [vmem:[%s2139 + $0xa0] sm:$0xff]
        %v2161 = vld [vmem:[%s2139 + $0xa8] sm:$0xff]
        %v2162 = vld [vmem:[%s2139 + $0xb0] sm:$0xff]
        %v2163 = vld [vmem:[%s2139 + $0xb8] sm:$0xff]
        %v2164 = vld [vmem:[%s2139 + $0xc0] sm:$0xff]
        %v2165 = vld [vmem:[%s2139 + $0xc8] sm:$0xff]
        %v2166 = vld [vmem:[%s2139 + $0xd0] sm:$0xff]
        %v2167 = vld [vmem:[%s2139 + $0xd8] sm:$0xff]
        %v2168 = vld [vmem:[%s2139 + $0xe0] sm:$0xff]
        %v2169 = vld [vmem:[%s2139 + $0xe8] sm:$0xff]
        %v2170 = vld [vmem:[%s2139 + $0xf0] sm:$0xff]
        %v2171 = vld [vmem:[%s2139 + $0xf8] sm:$0xff]
        %v2172 = vpack.c.bf16 %v2137, %v2137
        %v2173 = vpack.c.bf16 %v2138, %v2138
        %s2174 = scalar_lea.vmem %s399, 6 [#allocation12]
        %v2175 = vld [vmem:[%s2174] ss:$8 sm:$0x3]
        %v2177 = vlaneseq
        %v2178 = vshrl.u32 %v2177, 7
        %v2179 = vsub.s32 0, %v2178
        %v2180 = vrot.slane %v2175, %v2179
        %v2181 = vlaneseq
        %v2182 = vshrl.u32 %v2181, 7
        %v2183 = vsub.s32 1, %v2182
        %v2184 = vrot.slane %v2175, %v2183
        %v2219 = vunpack.c.l.b16 %v2140
        %v2220 = vunpack.c.h.b16 %v2140
        %v2221 = vunpack.c.l.b16 %v2141
        %v2222 = vunpack.c.h.b16 %v2141
        %v2223 = vunpack.c.l.b16 %v2142
        %v2224 = vunpack.c.h.b16 %v2142
        %v2225 = vunpack.c.l.b16 %v2143
        %v2226 = vunpack.c.h.b16 %v2143
        %v2227 = vunpack.c.l.b16 %v2144
        %v2228 = vunpack.c.h.b16 %v2144
        %v2229 = vunpack.c.l.b16 %v2145
        %v2230 = vunpack.c.h.b16 %v2145
        %v2231 = vunpack.c.l.b16 %v2146
        %v2232 = vunpack.c.h.b16 %v2146
        %v2233 = vunpack.c.l.b16 %v2147
        %v2234 = vunpack.c.h.b16 %v2147
        %v2235 = vunpack.c.l.b16 %v2148
        %v2236 = vunpack.c.h.b16 %v2148
        %v2237 = vunpack.c.l.b16 %v2149
        %v2238 = vunpack.c.h.b16 %v2149
        %v2239 = vunpack.c.l.b16 %v2150
        %v2240 = vunpack.c.h.b16 %v2150
        %v2241 = vunpack.c.l.b16 %v2151
        %v2242 = vunpack.c.h.b16 %v2151
        %v2243 = vunpack.c.l.b16 %v2152
        %v2244 = vunpack.c.h.b16 %v2152
        %v2245 = vunpack.c.l.b16 %v2153
        %v2246 = vunpack.c.h.b16 %v2153
        %v2247 = vunpack.c.l.b16 %v2154
        %v2248 = vunpack.c.h.b16 %v2154
        %v2249 = vunpack.c.l.b16 %v2155
        %v2250 = vunpack.c.h.b16 %v2155
        %v2251 = vunpack.c.l.b16 %v2156
        %v2252 = vunpack.c.h.b16 %v2156
        %v2253 = vunpack.c.l.b16 %v2157
        %v2254 = vunpack.c.h.b16 %v2157
        %v2255 = vunpack.c.l.b16 %v2158
        %v2256 = vunpack.c.h.b16 %v2158
        %v2257 = vunpack.c.l.b16 %v2159
        %v2258 = vunpack.c.h.b16 %v2159
        %v2259 = vunpack.c.l.b16 %v2160
        %v2260 = vunpack.c.h.b16 %v2160
        %v2261 = vunpack.c.l.b16 %v2161
        %v2262 = vunpack.c.h.b16 %v2161
        %v2263 = vunpack.c.l.b16 %v2162
        %v2264 = vunpack.c.h.b16 %v2162
        %v2265 = vunpack.c.l.b16 %v2163
        %v2266 = vunpack.c.h.b16 %v2163
        %v2267 = vunpack.c.l.b16 %v2164
        %v2268 = vunpack.c.h.b16 %v2164
        %v2269 = vunpack.c.l.b16 %v2165
        %v2270 = vunpack.c.h.b16 %v2165
        %v2271 = vunpack.c.l.b16 %v2166
        %v2272 = vunpack.c.h.b16 %v2166
        %v2273 = vunpack.c.l.b16 %v2167
        %v2274 = vunpack.c.h.b16 %v2167
        %v2275 = vunpack.c.l.b16 %v2168
        %v2276 = vunpack.c.h.b16 %v2168
        %v2277 = vunpack.c.l.b16 %v2169
        %v2278 = vunpack.c.h.b16 %v2169
        %v2279 = vunpack.c.l.b16 %v2170
        %v2280 = vunpack.c.h.b16 %v2170
        %v2281 = vunpack.c.l.b16 %v2171
        %v2282 = vunpack.c.h.b16 %v2171
        %v2283 = vpack.c.b16 %v2221, %v2219
        %v2284 = vpack.c.b16 %v2222, %v2220
        %v2285 = vpack.c.b16 %v2225, %v2223
        %v2286 = vpack.c.b16 %v2226, %v2224
        %v2287 = vpack.c.b16 %v2229, %v2227
        %v2288 = vpack.c.b16 %v2230, %v2228
        %v2289 = vpack.c.b16 %v2233, %v2231
        %v2290 = vpack.c.b16 %v2234, %v2232
        %v2291 = vpack.c.b16 %v2237, %v2235
        %v2292 = vpack.c.b16 %v2238, %v2236
        %v2293 = vpack.c.b16 %v2241, %v2239
        %v2294 = vpack.c.b16 %v2242, %v2240
        %v2295 = vpack.c.b16 %v2245, %v2243
        %v2296 = vpack.c.b16 %v2246, %v2244
        %v2297 = vpack.c.b16 %v2249, %v2247
        %v2298 = vpack.c.b16 %v2250, %v2248
        %v2299 = vpack.c.b16 %v2253, %v2251
        %v2300 = vpack.c.b16 %v2254, %v2252
        %v2301 = vpack.c.b16 %v2257, %v2255
        %v2302 = vpack.c.b16 %v2258, %v2256
        %v2303 = vpack.c.b16 %v2261, %v2259
        %v2304 = vpack.c.b16 %v2262, %v2260
        %v2305 = vpack.c.b16 %v2265, %v2263
        %v2306 = vpack.c.b16 %v2266, %v2264
        %v2307 = vpack.c.b16 %v2269, %v2267
        %v2308 = vpack.c.b16 %v2270, %v2268
        %v2309 = vpack.c.b16 %v2273, %v2271
        %v2310 = vpack.c.b16 %v2274, %v2272
        %v2311 = vpack.c.b16 %v2277, %v2275
        %v2312 = vpack.c.b16 %v2278, %v2276
        %v2313 = vpack.c.b16 %v2281, %v2279
        %v2314 = vpack.c.b16 %v2282, %v2280
        %2347 = vmatprep.subr.bf16.mxu0 %v2298
        %2348 = vmatpush1.bf16.msra.mxu0 %v2297
        %2349 = vmatprep.subr.bf16.mxu0 %v2296
        %2350 = vmatpush1.bf16.msra.mxu0 %v2295
        %2351 = vmatprep.subr.bf16.mxu0 %v2294
        %2352 = vmatpush1.bf16.msra.mxu0 %v2293
        %2353 = vmatprep.subr.bf16.mxu0 %v2292
        %2354 = vmatpush1.bf16.msra.mxu0 %v2291
        %2355 = vmatprep.subr.bf16.mxu0 %v2290
        %2356 = vmatpush1.bf16.msra.mxu0 %v2289
        %2357 = vmatprep.subr.bf16.mxu0 %v2288
        %2358 = vmatpush1.bf16.msra.mxu0 %v2287
        %2359 = vmatprep.subr.bf16.mxu0 %v2286
        %2360 = vmatpush1.bf16.msra.mxu0 %v2285
        %2361 = vmatprep.subr.bf16.mxu0 %v2284
        %2362 = vmatpush1.bf16.msra.mxu0 %v2283
        %2363 = vmatprep.subr.bf16.mxu0 %v2314
        %2364 = vmatpush2.bf16.msra.mxu0 %v2313
        %2365 = vmatprep.subr.bf16.mxu0 %v2312
        %2366 = vmatpush2.bf16.msra.mxu0 %v2311
        %2367 = vmatprep.subr.bf16.mxu0 %v2310
        %2368 = vmatpush2.bf16.msra.mxu0 %v2309
        %2369 = vmatprep.subr.bf16.mxu0 %v2308
        %2370 = vmatpush2.bf16.msra.mxu0 %v2307
        %2371 = vmatprep.subr.bf16.mxu0 %v2306
        %2372 = vmatpush2.bf16.msra.mxu0 %v2305
        %2373 = vmatprep.subr.bf16.mxu0 %v2304
        %2374 = vmatpush2.bf16.msra.mxu0 %v2303
        %2375 = vmatprep.subr.bf16.mxu0 %v2302
        %2376 = vmatpush2.bf16.msra.mxu0 %v2301
        %2377 = vmatprep.subr.bf16.mxu0 %v2300
        %2378 = vmatpush2.bf16.msra.mxu0 %v2299
        %2379 = vmatprep.mubr.bf16.mxu0 %v2173
        %2380 = vmatmul.mubr.bf16.gmra.mxu0 %v2172
        %v2381 = vpop.f32.mrf.mxu0
        %v2382 = vadd.f32 %v2180, %v2381
        %v2383 = vpop.f32.mrf.mxu0
        %v2384 = vadd.f32 %v2184, %v2383
        %v2385 = vpop.f32.mrf.mxu0
        %v2386 = vpop.f32.mrf.mxu0
        %2387 = vdwg.mxu0
        %v2388 = vmax.f32 %v2382, 0.0
        %v2389 = vmax.f32 %v2384, 0.0
        %s2390 = scalar_lea.vmem %s390, 1280 [#allocation11]
        %v2391 = vld [vmem:[%s2390] sm:$0xff]
        %v2392 = vld [vmem:[%s2390 + $0x8] sm:$0xff]
        %v2393 = vld [vmem:[%s2390 + $0x10] sm:$0xff]
        %v2394 = vld [vmem:[%s2390 + $0x18] sm:$0xff]
        %v2395 = vld [vmem:[%s2390 + $0x20] sm:$0xff]
        %v2396 = vld [vmem:[%s2390 + $0x28] sm:$0xff]
        %v2397 = vld [vmem:[%s2390 + $0x30] sm:$0xff]
        %v2398 = vld [vmem:[%s2390 + $0x38] sm:$0xff]
        %v2399 = vld [vmem:[%s2390 + $0x40] sm:$0xff]
        %v2400 = vld [vmem:[%s2390 + $0x48] sm:$0xff]
        %v2401 = vld [vmem:[%s2390 + $0x50] sm:$0xff]
        %v2402 = vld [vmem:[%s2390 + $0x58] sm:$0xff]
        %v2403 = vld [vmem:[%s2390 + $0x60] sm:$0xff]
        %v2404 = vld [vmem:[%s2390 + $0x68] sm:$0xff]
        %v2405 = vld [vmem:[%s2390 + $0x70] sm:$0xff]
        %v2406 = vld [vmem:[%s2390 + $0x78] sm:$0xff]
        %v2407 = vld [vmem:[%s2390 + $0x80] sm:$0xff]
        %v2408 = vld [vmem:[%s2390 + $0x88] sm:$0xff]
        %v2409 = vld [vmem:[%s2390 + $0x90] sm:$0xff]
        %v2410 = vld [vmem:[%s2390 + $0x98] sm:$0xff]
        %v2411 = vld [vmem:[%s2390 + $0xa0] sm:$0xff]
        %v2412 = vld [vmem:[%s2390 + $0xa8] sm:$0xff]
        %v2413 = vld [vmem:[%s2390 + $0xb0] sm:$0xff]
        %v2414 = vld [vmem:[%s2390 + $0xb8] sm:$0xff]
        %v2415 = vld [vmem:[%s2390 + $0xc0] sm:$0xff]
        %v2416 = vld [vmem:[%s2390 + $0xc8] sm:$0xff]
        %v2417 = vld [vmem:[%s2390 + $0xd0] sm:$0xff]
        %v2418 = vld [vmem:[%s2390 + $0xd8] sm:$0xff]
        %v2419 = vld [vmem:[%s2390 + $0xe0] sm:$0xff]
        %v2420 = vld [vmem:[%s2390 + $0xe8] sm:$0xff]
        %v2421 = vld [vmem:[%s2390 + $0xf0] sm:$0xff]
        %v2422 = vld [vmem:[%s2390 + $0xf8] sm:$0xff]
        %v2423 = vpack.c.bf16 %v2388, %v2388
        %v2424 = vpack.c.bf16 %v2389, %v2389
        %s2425 = scalar_lea.vmem %s399, 7 [#allocation12]
        %v2426 = vld [vmem:[%s2425] ss:$8 sm:$0x3]
        %v2428 = vlaneseq
        %v2429 = vshrl.u32 %v2428, 7
        %v2430 = vsub.s32 0, %v2429
        %v2431 = vrot.slane %v2426, %v2430
        %v2432 = vlaneseq
        %v2433 = vshrl.u32 %v2432, 7
        %v2434 = vsub.s32 1, %v2433
        %v2435 = vrot.slane %v2426, %v2434
        %v2470 = vunpack.c.l.b16 %v2391
        %v2471 = vunpack.c.h.b16 %v2391
        %v2472 = vunpack.c.l.b16 %v2392
        %v2473 = vunpack.c.h.b16 %v2392
        %v2474 = vunpack.c.l.b16 %v2393
        %v2475 = vunpack.c.h.b16 %v2393
        %v2476 = vunpack.c.l.b16 %v2394
        %v2477 = vunpack.c.h.b16 %v2394
        %v2478 = vunpack.c.l.b16 %v2395
        %v2479 = vunpack.c.h.b16 %v2395
        %v2480 = vunpack.c.l.b16 %v2396
        %v2481 = vunpack.c.h.b16 %v2396
        %v2482 = vunpack.c.l.b16 %v2397
        %v2483 = vunpack.c.h.b16 %v2397
        %v2484 = vunpack.c.l.b16 %v2398
        %v2485 = vunpack.c.h.b16 %v2398
        %v2486 = vunpack.c.l.b16 %v2399
        %v2487 = vunpack.c.h.b16 %v2399
        %v2488 = vunpack.c.l.b16 %v2400
        %v2489 = vunpack.c.h.b16 %v2400
        %v2490 = vunpack.c.l.b16 %v2401
        %v2491 = vunpack.c.h.b16 %v2401
        %v2492 = vunpack.c.l.b16 %v2402
        %v2493 = vunpack.c.h.b16 %v2402
        %v2494 = vunpack.c.l.b16 %v2403
        %v2495 = vunpack.c.h.b16 %v2403
        %v2496 = vunpack.c.l.b16 %v2404
        %v2497 = vunpack.c.h.b16 %v2404
        %v2498 = vunpack.c.l.b16 %v2405
        %v2499 = vunpack.c.h.b16 %v2405
        %v2500 = vunpack.c.l.b16 %v2406
        %v2501 = vunpack.c.h.b16 %v2406
        %v2502 = vunpack.c.l.b16 %v2407
        %v2503 = vunpack.c.h.b16 %v2407
        %v2504 = vunpack.c.l.b16 %v2408
        %v2505 = vunpack.c.h.b16 %v2408
        %v2506 = vunpack.c.l.b16 %v2409
        %v2507 = vunpack.c.h.b16 %v2409
        %v2508 = vunpack.c.l.b16 %v2410
        %v2509 = vunpack.c.h.b16 %v2410
        %v2510 = vunpack.c.l.b16 %v2411
        %v2511 = vunpack.c.h.b16 %v2411
        %v2512 = vunpack.c.l.b16 %v2412
        %v2513 = vunpack.c.h.b16 %v2412
        %v2514 = vunpack.c.l.b16 %v2413
        %v2515 = vunpack.c.h.b16 %v2413
        %v2516 = vunpack.c.l.b16 %v2414
        %v2517 = vunpack.c.h.b16 %v2414
        %v2518 = vunpack.c.l.b16 %v2415
        %v2519 = vunpack.c.h.b16 %v2415
        %v2520 = vunpack.c.l.b16 %v2416
        %v2521 = vunpack.c.h.b16 %v2416
        %v2522 = vunpack.c.l.b16 %v2417
        %v2523 = vunpack.c.h.b16 %v2417
        %v2524 = vunpack.c.l.b16 %v2418
        %v2525 = vunpack.c.h.b16 %v2418
        %v2526 = vunpack.c.l.b16 %v2419
        %v2527 = vunpack.c.h.b16 %v2419
        %v2528 = vunpack.c.l.b16 %v2420
        %v2529 = vunpack.c.h.b16 %v2420
        %v2530 = vunpack.c.l.b16 %v2421
        %v2531 = vunpack.c.h.b16 %v2421
        %v2532 = vunpack.c.l.b16 %v2422
        %v2533 = vunpack.c.h.b16 %v2422
        %v2534 = vpack.c.b16 %v2472, %v2470
        %v2535 = vpack.c.b16 %v2473, %v2471
        %v2536 = vpack.c.b16 %v2476, %v2474
        %v2537 = vpack.c.b16 %v2477, %v2475
        %v2538 = vpack.c.b16 %v2480, %v2478
        %v2539 = vpack.c.b16 %v2481, %v2479
        %v2540 = vpack.c.b16 %v2484, %v2482
        %v2541 = vpack.c.b16 %v2485, %v2483
        %v2542 = vpack.c.b16 %v2488, %v2486
        %v2543 = vpack.c.b16 %v2489, %v2487
        %v2544 = vpack.c.b16 %v2492, %v2490
        %v2545 = vpack.c.b16 %v2493, %v2491
        %v2546 = vpack.c.b16 %v2496, %v2494
        %v2547 = vpack.c.b16 %v2497, %v2495
        %v2548 = vpack.c.b16 %v2500, %v2498
        %v2549 = vpack.c.b16 %v2501, %v2499
        %v2550 = vpack.c.b16 %v2504, %v2502
        %v2551 = vpack.c.b16 %v2505, %v2503
        %v2552 = vpack.c.b16 %v2508, %v2506
        %v2553 = vpack.c.b16 %v2509, %v2507
        %v2554 = vpack.c.b16 %v2512, %v2510
        %v2555 = vpack.c.b16 %v2513, %v2511
        %v2556 = vpack.c.b16 %v2516, %v2514
        %v2557 = vpack.c.b16 %v2517, %v2515
        %v2558 = vpack.c.b16 %v2520, %v2518
        %v2559 = vpack.c.b16 %v2521, %v2519
        %v2560 = vpack.c.b16 %v2524, %v2522
        %v2561 = vpack.c.b16 %v2525, %v2523
        %v2562 = vpack.c.b16 %v2528, %v2526
        %v2563 = vpack.c.b16 %v2529, %v2527
        %v2564 = vpack.c.b16 %v2532, %v2530
        %v2565 = vpack.c.b16 %v2533, %v2531
        %2598 = vmatprep.subr.bf16.mxu0 %v2549
        %2599 = vmatpush1.bf16.msra.mxu0 %v2548
        %2600 = vmatprep.subr.bf16.mxu0 %v2547
        %2601 = vmatpush1.bf16.msra.mxu0 %v2546
        %2602 = vmatprep.subr.bf16.mxu0 %v2545
        %2603 = vmatpush1.bf16.msra.mxu0 %v2544
        %2604 = vmatprep.subr.bf16.mxu0 %v2543
        %2605 = vmatpush1.bf16.msra.mxu0 %v2542
        %2606 = vmatprep.subr.bf16.mxu0 %v2541
        %2607 = vmatpush1.bf16.msra.mxu0 %v2540
        %2608 = vmatprep.subr.bf16.mxu0 %v2539
        %2609 = vmatpush1.bf16.msra.mxu0 %v2538
        %2610 = vmatprep.subr.bf16.mxu0 %v2537
        %2611 = vmatpush1.bf16.msra.mxu0 %v2536
        %2612 = vmatprep.subr.bf16.mxu0 %v2535
        %2613 = vmatpush1.bf16.msra.mxu0 %v2534
        %2614 = vmatprep.subr.bf16.mxu0 %v2565
        %2615 = vmatpush2.bf16.msra.mxu0 %v2564
        %2616 = vmatprep.subr.bf16.mxu0 %v2563
        %2617 = vmatpush2.bf16.msra.mxu0 %v2562
        %2618 = vmatprep.subr.bf16.mxu0 %v2561
        %2619 = vmatpush2.bf16.msra.mxu0 %v2560
        %2620 = vmatprep.subr.bf16.mxu0 %v2559
        %2621 = vmatpush2.bf16.msra.mxu0 %v2558
        %2622 = vmatprep.subr.bf16.mxu0 %v2557
        %2623 = vmatpush2.bf16.msra.mxu0 %v2556
        %2624 = vmatprep.subr.bf16.mxu0 %v2555
        %2625 = vmatpush2.bf16.msra.mxu0 %v2554
        %2626 = vmatprep.subr.bf16.mxu0 %v2553
        %2627 = vmatpush2.bf16.msra.mxu0 %v2552
        %2628 = vmatprep.subr.bf16.mxu0 %v2551
        %2629 = vmatpush2.bf16.msra.mxu0 %v2550
        %2630 = vmatprep.mubr.bf16.mxu0 %v2424
        %2631 = vmatmul.mubr.bf16.gmra.mxu0 %v2423
        %v2632 = vpop.f32.mrf.mxu0
        %v2633 = vadd.f32 %v2431, %v2632
        %v2634 = vpop.f32.mrf.mxu0
        %v2635 = vadd.f32 %v2435, %v2634
        %v2636 = vpop.f32.mrf.mxu0
        %v2637 = vpop.f32.mrf.mxu0
        %2638 = vdwg.mxu0
        %v2639 = vmax.f32 %v2633, 0.0
        %v2640 = vmax.f32 %v2635, 0.0
        %v2641 = vadd.f32 %v2639, %v2137
        %v2642 = vadd.f32 %v2640, %v2138
        %s2643 = scalar_lea.vmem %s390, 1536 [#allocation11]
        %v2644 = vld [vmem:[%s2643] sm:$0xff]
        %v2645 = vld [vmem:[%s2643 + $0x8] sm:$0xff]
        %v2646 = vld [vmem:[%s2643 + $0x10] sm:$0xff]
        %v2647 = vld [vmem:[%s2643 + $0x18] sm:$0xff]
        %v2648 = vld [vmem:[%s2643 + $0x20] sm:$0xff]
        %v2649 = vld [vmem:[%s2643 + $0x28] sm:$0xff]
        %v2650 = vld [vmem:[%s2643 + $0x30] sm:$0xff]
        %v2651 = vld [vmem:[%s2643 + $0x38] sm:$0xff]
        %v2652 = vld [vmem:[%s2643 + $0x40] sm:$0xff]
        %v2653 = vld [vmem:[%s2643 + $0x48] sm:$0xff]
        %v2654 = vld [vmem:[%s2643 + $0x50] sm:$0xff]
        %v2655 = vld [vmem:[%s2643 + $0x58] sm:$0xff]
        %v2656 = vld [vmem:[%s2643 + $0x60] sm:$0xff]
        %v2657 = vld [vmem:[%s2643 + $0x68] sm:$0xff]
        %v2658 = vld [vmem:[%s2643 + $0x70] sm:$0xff]
        %v2659 = vld [vmem:[%s2643 + $0x78] sm:$0xff]
        %v2660 = vld [vmem:[%s2643 + $0x80] sm:$0xff]
        %v2661 = vld [vmem:[%s2643 + $0x88] sm:$0xff]
        %v2662 = vld [vmem:[%s2643 + $0x90] sm:$0xff]
        %v2663 = vld [vmem:[%s2643 + $0x98] sm:$0xff]
        %v2664 = vld [vmem:[%s2643 + $0xa0] sm:$0xff]
        %v2665 = vld [vmem:[%s2643 + $0xa8] sm:$0xff]
        %v2666 = vld [vmem:[%s2643 + $0xb0] sm:$0xff]
        %v2667 = vld [vmem:[%s2643 + $0xb8] sm:$0xff]
        %v2668 = vld [vmem:[%s2643 + $0xc0] sm:$0xff]
        %v2669 = vld [vmem:[%s2643 + $0xc8] sm:$0xff]
        %v2670 = vld [vmem:[%s2643 + $0xd0] sm:$0xff]
        %v2671 = vld [vmem:[%s2643 + $0xd8] sm:$0xff]
        %v2672 = vld [vmem:[%s2643 + $0xe0] sm:$0xff]
        %v2673 = vld [vmem:[%s2643 + $0xe8] sm:$0xff]
        %v2674 = vld [vmem:[%s2643 + $0xf0] sm:$0xff]
        %v2675 = vld [vmem:[%s2643 + $0xf8] sm:$0xff]
        %v2676 = vpack.c.bf16 %v2641, %v2641
        %v2677 = vpack.c.bf16 %v2642, %v2642
        %s2678 = scalar_lea.vmem %s399, 16 [#allocation12]
        %v2679 = vld [vmem:[%s2678] ss:$8 sm:$0x3]
        %v2681 = vlaneseq
        %v2682 = vshrl.u32 %v2681, 7
        %v2683 = vsub.s32 0, %v2682
        %v2684 = vrot.slane %v2679, %v2683
        %v2685 = vlaneseq
        %v2686 = vshrl.u32 %v2685, 7
        %v2687 = vsub.s32 1, %v2686
        %v2688 = vrot.slane %v2679, %v2687
        %v2723 = vunpack.c.l.b16 %v2644
        %v2724 = vunpack.c.h.b16 %v2644
        %v2725 = vunpack.c.l.b16 %v2645
        %v2726 = vunpack.c.h.b16 %v2645
        %v2727 = vunpack.c.l.b16 %v2646
        %v2728 = vunpack.c.h.b16 %v2646
        %v2729 = vunpack.c.l.b16 %v2647
        %v2730 = vunpack.c.h.b16 %v2647
        %v2731 = vunpack.c.l.b16 %v2648
        %v2732 = vunpack.c.h.b16 %v2648
        %v2733 = vunpack.c.l.b16 %v2649
        %v2734 = vunpack.c.h.b16 %v2649
        %v2735 = vunpack.c.l.b16 %v2650
        %v2736 = vunpack.c.h.b16 %v2650
        %v2737 = vunpack.c.l.b16 %v2651
        %v2738 = vunpack.c.h.b16 %v2651
        %v2739 = vunpack.c.l.b16 %v2652
        %v2740 = vunpack.c.h.b16 %v2652
        %v2741 = vunpack.c.l.b16 %v2653
        %v2742 = vunpack.c.h.b16 %v2653
        %v2743 = vunpack.c.l.b16 %v2654
        %v2744 = vunpack.c.h.b16 %v2654
        %v2745 = vunpack.c.l.b16 %v2655
        %v2746 = vunpack.c.h.b16 %v2655
        %v2747 = vunpack.c.l.b16 %v2656
        %v2748 = vunpack.c.h.b16 %v2656
        %v2749 = vunpack.c.l.b16 %v2657
        %v2750 = vunpack.c.h.b16 %v2657
        %v2751 = vunpack.c.l.b16 %v2658
        %v2752 = vunpack.c.h.b16 %v2658
        %v2753 = vunpack.c.l.b16 %v2659
        %v2754 = vunpack.c.h.b16 %v2659
        %v2755 = vunpack.c.l.b16 %v2660
        %v2756 = vunpack.c.h.b16 %v2660
        %v2757 = vunpack.c.l.b16 %v2661
        %v2758 = vunpack.c.h.b16 %v2661
        %v2759 = vunpack.c.l.b16 %v2662
        %v2760 = vunpack.c.h.b16 %v2662
        %v2761 = vunpack.c.l.b16 %v2663
        %v2762 = vunpack.c.h.b16 %v2663
        %v2763 = vunpack.c.l.b16 %v2664
        %v2764 = vunpack.c.h.b16 %v2664
        %v2765 = vunpack.c.l.b16 %v2665
        %v2766 = vunpack.c.h.b16 %v2665
        %v2767 = vunpack.c.l.b16 %v2666
        %v2768 = vunpack.c.h.b16 %v2666
        %v2769 = vunpack.c.l.b16 %v2667
        %v2770 = vunpack.c.h.b16 %v2667
        %v2771 = vunpack.c.l.b16 %v2668
        %v2772 = vunpack.c.h.b16 %v2668
        %v2773 = vunpack.c.l.b16 %v2669
        %v2774 = vunpack.c.h.b16 %v2669
        %v2775 = vunpack.c.l.b16 %v2670
        %v2776 = vunpack.c.h.b16 %v2670
        %v2777 = vunpack.c.l.b16 %v2671
        %v2778 = vunpack.c.h.b16 %v2671
        %v2779 = vunpack.c.l.b16 %v2672
        %v2780 = vunpack.c.h.b16 %v2672
        %v2781 = vunpack.c.l.b16 %v2673
        %v2782 = vunpack.c.h.b16 %v2673
        %v2783 = vunpack.c.l.b16 %v2674
        %v2784 = vunpack.c.h.b16 %v2674
        %v2785 = vunpack.c.l.b16 %v2675
        %v2786 = vunpack.c.h.b16 %v2675
        %v2787 = vpack.c.b16 %v2725, %v2723
        %v2788 = vpack.c.b16 %v2726, %v2724
        %v2789 = vpack.c.b16 %v2729, %v2727
        %v2790 = vpack.c.b16 %v2730, %v2728
        %v2791 = vpack.c.b16 %v2733, %v2731
        %v2792 = vpack.c.b16 %v2734, %v2732
        %v2793 = vpack.c.b16 %v2737, %v2735
        %v2794 = vpack.c.b16 %v2738, %v2736
        %v2795 = vpack.c.b16 %v2741, %v2739
        %v2796 = vpack.c.b16 %v2742, %v2740
        %v2797 = vpack.c.b16 %v2745, %v2743
        %v2798 = vpack.c.b16 %v2746, %v2744
        %v2799 = vpack.c.b16 %v2749, %v2747
        %v2800 = vpack.c.b16 %v2750, %v2748
        %v2801 = vpack.c.b16 %v2753, %v2751
        %v2802 = vpack.c.b16 %v2754, %v2752
        %v2803 = vpack.c.b16 %v2757, %v2755
        %v2804 = vpack.c.b16 %v2758, %v2756
        %v2805 = vpack.c.b16 %v2761, %v2759
        %v2806 = vpack.c.b16 %v2762, %v2760
        %v2807 = vpack.c.b16 %v2765, %v2763
        %v2808 = vpack.c.b16 %v2766, %v2764
        %v2809 = vpack.c.b16 %v2769, %v2767
        %v2810 = vpack.c.b16 %v2770, %v2768
        %v2811 = vpack.c.b16 %v2773, %v2771
        %v2812 = vpack.c.b16 %v2774, %v2772
        %v2813 = vpack.c.b16 %v2777, %v2775
        %v2814 = vpack.c.b16 %v2778, %v2776
        %v2815 = vpack.c.b16 %v2781, %v2779
        %v2816 = vpack.c.b16 %v2782, %v2780
        %v2817 = vpack.c.b16 %v2785, %v2783
        %v2818 = vpack.c.b16 %v2786, %v2784
        %2851 = vmatprep.subr.bf16.mxu0 %v2802
        %2852 = vmatpush1.bf16.msra.mxu0 %v2801
        %2853 = vmatprep.subr.bf16.mxu0 %v2800
        %2854 = vmatpush1.bf16.msra.mxu0 %v2799
        %2855 = vmatprep.subr.bf16.mxu0 %v2798
        %2856 = vmatpush1.bf16.msra.mxu0 %v2797
        %2857 = vmatprep.subr.bf16.mxu0 %v2796
        %2858 = vmatpush1.bf16.msra.mxu0 %v2795
        %2859 = vmatprep.subr.bf16.mxu0 %v2794
        %2860 = vmatpush1.bf16.msra.mxu0 %v2793
        %2861 = vmatprep.subr.bf16.mxu0 %v2792
        %2862 = vmatpush1.bf16.msra.mxu0 %v2791
        %2863 = vmatprep.subr.bf16.mxu0 %v2790
        %2864 = vmatpush1.bf16.msra.mxu0 %v2789
        %2865 = vmatprep.subr.bf16.mxu0 %v2788
        %2866 = vmatpush1.bf16.msra.mxu0 %v2787
        %2867 = vmatprep.subr.bf16.mxu0 %v2818
        %2868 = vmatpush2.bf16.msra.mxu0 %v2817
        %2869 = vmatprep.subr.bf16.mxu0 %v2816
        %2870 = vmatpush2.bf16.msra.mxu0 %v2815
        %2871 = vmatprep.subr.bf16.mxu0 %v2814
        %2872 = vmatpush2.bf16.msra.mxu0 %v2813
        %2873 = vmatprep.subr.bf16.mxu0 %v2812
        %2874 = vmatpush2.bf16.msra.mxu0 %v2811
        %2875 = vmatprep.subr.bf16.mxu0 %v2810
        %2876 = vmatpush2.bf16.msra.mxu0 %v2809
        %2877 = vmatprep.subr.bf16.mxu0 %v2808
        %2878 = vmatpush2.bf16.msra.mxu0 %v2807
        %2879 = vmatprep.subr.bf16.mxu0 %v2806
        %2880 = vmatpush2.bf16.msra.mxu0 %v2805
        %2881 = vmatprep.subr.bf16.mxu0 %v2804
        %2882 = vmatpush2.bf16.msra.mxu0 %v2803
        %2883 = vmatprep.mubr.bf16.mxu0 %v2677
        %2884 = vmatmul.mubr.bf16.gmra.mxu0 %v2676
        %v2885 = vpop.f32.mrf.mxu0
        %v2886 = vadd.f32 %v2684, %v2885
        %v2887 = vpop.f32.mrf.mxu0
        %v2888 = vadd.f32 %v2688, %v2887
        %v2889 = vpop.f32.mrf.mxu0
        %v2890 = vpop.f32.mrf.mxu0
        %2891 = vdwg.mxu0
        %v2892 = vmax.f32 %v2886, 0.0
        %v2893 = vmax.f32 %v2888, 0.0
        %s2894 = scalar_lea.vmem %s390, 1792 [#allocation11]
        %v2895 = vld [vmem:[%s2894] sm:$0xff]
        %v2896 = vld [vmem:[%s2894 + $0x8] sm:$0xff]
        %v2897 = vld [vmem:[%s2894 + $0x10] sm:$0xff]
        %v2898 = vld [vmem:[%s2894 + $0x18] sm:$0xff]
        %v2899 = vld [vmem:[%s2894 + $0x20] sm:$0xff]
        %v2900 = vld [vmem:[%s2894 + $0x28] sm:$0xff]
        %v2901 = vld [vmem:[%s2894 + $0x30] sm:$0xff]
        %v2902 = vld [vmem:[%s2894 + $0x38] sm:$0xff]
        %v2903 = vld [vmem:[%s2894 + $0x40] sm:$0xff]
        %v2904 = vld [vmem:[%s2894 + $0x48] sm:$0xff]
        %v2905 = vld [vmem:[%s2894 + $0x50] sm:$0xff]
        %v2906 = vld [vmem:[%s2894 + $0x58] sm:$0xff]
        %v2907 = vld [vmem:[%s2894 + $0x60] sm:$0xff]
        %v2908 = vld [vmem:[%s2894 + $0x68] sm:$0xff]
        %v2909 = vld [vmem:[%s2894 + $0x70] sm:$0xff]
        %v2910 = vld [vmem:[%s2894 + $0x78] sm:$0xff]
        %v2911 = vld [vmem:[%s2894 + $0x80] sm:$0xff]
        %v2912 = vld [vmem:[%s2894 + $0x88] sm:$0xff]
        %v2913 = vld [vmem:[%s2894 + $0x90] sm:$0xff]
        %v2914 = vld [vmem:[%s2894 + $0x98] sm:$0xff]
        %v2915 = vld [vmem:[%s2894 + $0xa0] sm:$0xff]
        %v2916 = vld [vmem:[%s2894 + $0xa8] sm:$0xff]
        %v2917 = vld [vmem:[%s2894 + $0xb0] sm:$0xff]
        %v2918 = vld [vmem:[%s2894 + $0xb8] sm:$0xff]
        %v2919 = vld [vmem:[%s2894 + $0xc0] sm:$0xff]
        %v2920 = vld [vmem:[%s2894 + $0xc8] sm:$0xff]
        %v2921 = vld [vmem:[%s2894 + $0xd0] sm:$0xff]
        %v2922 = vld [vmem:[%s2894 + $0xd8] sm:$0xff]
        %v2923 = vld [vmem:[%s2894 + $0xe0] sm:$0xff]
        %v2924 = vld [vmem:[%s2894 + $0xe8] sm:$0xff]
        %v2925 = vld [vmem:[%s2894 + $0xf0] sm:$0xff]
        %v2926 = vld [vmem:[%s2894 + $0xf8] sm:$0xff]
        %v2927 = vpack.c.bf16 %v2892, %v2892
        %v2928 = vpack.c.bf16 %v2893, %v2893
        %s2929 = scalar_lea.vmem %s399, 17 [#allocation12]
        %v2930 = vld [vmem:[%s2929] ss:$8 sm:$0x3]
        %v2932 = vlaneseq
        %v2933 = vshrl.u32 %v2932, 7
        %v2934 = vsub.s32 0, %v2933
        %v2935 = vrot.slane %v2930, %v2934
        %v2936 = vlaneseq
        %v2937 = vshrl.u32 %v2936, 7
        %v2938 = vsub.s32 1, %v2937
        %v2939 = vrot.slane %v2930, %v2938
        %v2974 = vunpack.c.l.b16 %v2895
        %v2975 = vunpack.c.h.b16 %v2895
        %v2976 = vunpack.c.l.b16 %v2896
        %v2977 = vunpack.c.h.b16 %v2896
        %v2978 = vunpack.c.l.b16 %v2897
        %v2979 = vunpack.c.h.b16 %v2897
        %v2980 = vunpack.c.l.b16 %v2898
        %v2981 = vunpack.c.h.b16 %v2898
        %v2982 = vunpack.c.l.b16 %v2899
        %v2983 = vunpack.c.h.b16 %v2899
        %v2984 = vunpack.c.l.b16 %v2900
        %v2985 = vunpack.c.h.b16 %v2900
        %v2986 = vunpack.c.l.b16 %v2901
        %v2987 = vunpack.c.h.b16 %v2901
        %v2988 = vunpack.c.l.b16 %v2902
        %v2989 = vunpack.c.h.b16 %v2902
        %v2990 = vunpack.c.l.b16 %v2903
        %v2991 = vunpack.c.h.b16 %v2903
        %v2992 = vunpack.c.l.b16 %v2904
        %v2993 = vunpack.c.h.b16 %v2904
        %v2994 = vunpack.c.l.b16 %v2905
        %v2995 = vunpack.c.h.b16 %v2905
        %v2996 = vunpack.c.l.b16 %v2906
        %v2997 = vunpack.c.h.b16 %v2906
        %v2998 = vunpack.c.l.b16 %v2907
        %v2999 = vunpack.c.h.b16 %v2907
        %v3000 = vunpack.c.l.b16 %v2908
        %v3001 = vunpack.c.h.b16 %v2908
        %v3002 = vunpack.c.l.b16 %v2909
        %v3003 = vunpack.c.h.b16 %v2909
        %v3004 = vunpack.c.l.b16 %v2910
        %v3005 = vunpack.c.h.b16 %v2910
        %v3006 = vunpack.c.l.b16 %v2911
        %v3007 = vunpack.c.h.b16 %v2911
        %v3008 = vunpack.c.l.b16 %v2912
        %v3009 = vunpack.c.h.b16 %v2912
        %v3010 = vunpack.c.l.b16 %v2913
        %v3011 = vunpack.c.h.b16 %v2913
        %v3012 = vunpack.c.l.b16 %v2914
        %v3013 = vunpack.c.h.b16 %v2914
        %v3014 = vunpack.c.l.b16 %v2915
        %v3015 = vunpack.c.h.b16 %v2915
        %v3016 = vunpack.c.l.b16 %v2916
        %v3017 = vunpack.c.h.b16 %v2916
        %v3018 = vunpack.c.l.b16 %v2917
        %v3019 = vunpack.c.h.b16 %v2917
        %v3020 = vunpack.c.l.b16 %v2918
        %v3021 = vunpack.c.h.b16 %v2918
        %v3022 = vunpack.c.l.b16 %v2919
        %v3023 = vunpack.c.h.b16 %v2919
        %v3024 = vunpack.c.l.b16 %v2920
        %v3025 = vunpack.c.h.b16 %v2920
        %v3026 = vunpack.c.l.b16 %v2921
        %v3027 = vunpack.c.h.b16 %v2921
        %v3028 = vunpack.c.l.b16 %v2922
        %v3029 = vunpack.c.h.b16 %v2922
        %v3030 = vunpack.c.l.b16 %v2923
        %v3031 = vunpack.c.h.b16 %v2923
        %v3032 = vunpack.c.l.b16 %v2924
        %v3033 = vunpack.c.h.b16 %v2924
        %v3034 = vunpack.c.l.b16 %v2925
        %v3035 = vunpack.c.h.b16 %v2925
        %v3036 = vunpack.c.l.b16 %v2926
        %v3037 = vunpack.c.h.b16 %v2926
        %v3038 = vpack.c.b16 %v2976, %v2974
        %v3039 = vpack.c.b16 %v2977, %v2975
        %v3040 = vpack.c.b16 %v2980, %v2978
        %v3041 = vpack.c.b16 %v2981, %v2979
        %v3042 = vpack.c.b16 %v2984, %v2982
        %v3043 = vpack.c.b16 %v2985, %v2983
        %v3044 = vpack.c.b16 %v2988, %v2986
        %v3045 = vpack.c.b16 %v2989, %v2987
        %v3046 = vpack.c.b16 %v2992, %v2990
        %v3047 = vpack.c.b16 %v2993, %v2991
        %v3048 = vpack.c.b16 %v2996, %v2994
        %v3049 = vpack.c.b16 %v2997, %v2995
        %v3050 = vpack.c.b16 %v3000, %v2998
        %v3051 = vpack.c.b16 %v3001, %v2999
        %v3052 = vpack.c.b16 %v3004, %v3002
        %v3053 = vpack.c.b16 %v3005, %v3003
        %v3054 = vpack.c.b16 %v3008, %v3006
        %v3055 = vpack.c.b16 %v3009, %v3007
        %v3056 = vpack.c.b16 %v3012, %v3010
        %v3057 = vpack.c.b16 %v3013, %v3011
        %v3058 = vpack.c.b16 %v3016, %v3014
        %v3059 = vpack.c.b16 %v3017, %v3015
        %v3060 = vpack.c.b16 %v3020, %v3018
        %v3061 = vpack.c.b16 %v3021, %v3019
        %v3062 = vpack.c.b16 %v3024, %v3022
        %v3063 = vpack.c.b16 %v3025, %v3023
        %v3064 = vpack.c.b16 %v3028, %v3026
        %v3065 = vpack.c.b16 %v3029, %v3027
        %v3066 = vpack.c.b16 %v3032, %v3030
        %v3067 = vpack.c.b16 %v3033, %v3031
        %v3068 = vpack.c.b16 %v3036, %v3034
        %v3069 = vpack.c.b16 %v3037, %v3035
        %3102 = vmatprep.subr.bf16.mxu0 %v3053
        %3103 = vmatpush1.bf16.msra.mxu0 %v3052
        %3104 = vmatprep.subr.bf16.mxu0 %v3051
        %3105 = vmatpush1.bf16.msra.mxu0 %v3050
        %3106 = vmatprep.subr.bf16.mxu0 %v3049
        %3107 = vmatpush1.bf16.msra.mxu0 %v3048
        %3108 = vmatprep.subr.bf16.mxu0 %v3047
        %3109 = vmatpush1.bf16.msra.mxu0 %v3046
        %3110 = vmatprep.subr.bf16.mxu0 %v3045
        %3111 = vmatpush1.bf16.msra.mxu0 %v3044
        %3112 = vmatprep.subr.bf16.mxu0 %v3043
        %3113 = vmatpush1.bf16.msra.mxu0 %v3042
        %3114 = vmatprep.subr.bf16.mxu0 %v3041
        %3115 = vmatpush1.bf16.msra.mxu0 %v3040
        %3116 = vmatprep.subr.bf16.mxu0 %v3039
        %3117 = vmatpush1.bf16.msra.mxu0 %v3038
        %3118 = vmatprep.subr.bf16.mxu0 %v3069
        %3119 = vmatpush2.bf16.msra.mxu0 %v3068
        %3120 = vmatprep.subr.bf16.mxu0 %v3067
        %3121 = vmatpush2.bf16.msra.mxu0 %v3066
        %3122 = vmatprep.subr.bf16.mxu0 %v3065
        %3123 = vmatpush2.bf16.msra.mxu0 %v3064
        %3124 = vmatprep.subr.bf16.mxu0 %v3063
        %3125 = vmatpush2.bf16.msra.mxu0 %v3062
        %3126 = vmatprep.subr.bf16.mxu0 %v3061
        %3127 = vmatpush2.bf16.msra.mxu0 %v3060
        %3128 = vmatprep.subr.bf16.mxu0 %v3059
        %3129 = vmatpush2.bf16.msra.mxu0 %v3058
        %3130 = vmatprep.subr.bf16.mxu0 %v3057
        %3131 = vmatpush2.bf16.msra.mxu0 %v3056
        %3132 = vmatprep.subr.bf16.mxu0 %v3055
        %3133 = vmatpush2.bf16.msra.mxu0 %v3054
        %3134 = vmatprep.mubr.bf16.mxu0 %v2928
        %3135 = vmatmul.mubr.bf16.gmra.mxu0 %v2927
        %v3136 = vpop.f32.mrf.mxu0
        %v3137 = vadd.f32 %v2935, %v3136
        %v3138 = vpop.f32.mrf.mxu0
        %v3139 = vadd.f32 %v2939, %v3138
        %v3140 = vpop.f32.mrf.mxu0
        %v3141 = vpop.f32.mrf.mxu0
        %3142 = vdwg.mxu0
        %v3143 = vmax.f32 %v3137, 0.0
        %v3144 = vmax.f32 %v3139, 0.0
        %s3145 = scalar_lea.vmem %s390, 2048 [#allocation11]
        %v3146 = vld [vmem:[%s3145] sm:$0xff]
        %v3147 = vld [vmem:[%s3145 + $0x8] sm:$0xff]
        %v3148 = vld [vmem:[%s3145 + $0x10] sm:$0xff]
        %v3149 = vld [vmem:[%s3145 + $0x18] sm:$0xff]
        %v3150 = vld [vmem:[%s3145 + $0x20] sm:$0xff]
        %v3151 = vld [vmem:[%s3145 + $0x28] sm:$0xff]
        %v3152 = vld [vmem:[%s3145 + $0x30] sm:$0xff]
        %v3153 = vld [vmem:[%s3145 + $0x38] sm:$0xff]
        %v3154 = vld [vmem:[%s3145 + $0x40] sm:$0xff]
        %v3155 = vld [vmem:[%s3145 + $0x48] sm:$0xff]
        %v3156 = vld [vmem:[%s3145 + $0x50] sm:$0xff]
        %v3157 = vld [vmem:[%s3145 + $0x58] sm:$0xff]
        %v3158 = vld [vmem:[%s3145 + $0x60] sm:$0xff]
        %v3159 = vld [vmem:[%s3145 + $0x68] sm:$0xff]
        %v3160 = vld [vmem:[%s3145 + $0x70] sm:$0xff]
        %v3161 = vld [vmem:[%s3145 + $0x78] sm:$0xff]
        %v3162 = vld [vmem:[%s3145 + $0x80] sm:$0xff]
        %v3163 = vld [vmem:[%s3145 + $0x88] sm:$0xff]
        %v3164 = vld [vmem:[%s3145 + $0x90] sm:$0xff]
        %v3165 = vld [vmem:[%s3145 + $0x98] sm:$0xff]
        %v3166 = vld [vmem:[%s3145 + $0xa0] sm:$0xff]
        %v3167 = vld [vmem:[%s3145 + $0xa8] sm:$0xff]
        %v3168 = vld [vmem:[%s3145 + $0xb0] sm:$0xff]
        %v3169 = vld [vmem:[%s3145 + $0xb8] sm:$0xff]
        %v3170 = vld [vmem:[%s3145 + $0xc0] sm:$0xff]
        %v3171 = vld [vmem:[%s3145 + $0xc8] sm:$0xff]
        %v3172 = vld [vmem:[%s3145 + $0xd0] sm:$0xff]
        %v3173 = vld [vmem:[%s3145 + $0xd8] sm:$0xff]
        %v3174 = vld [vmem:[%s3145 + $0xe0] sm:$0xff]
        %v3175 = vld [vmem:[%s3145 + $0xe8] sm:$0xff]
        %v3176 = vld [vmem:[%s3145 + $0xf0] sm:$0xff]
        %v3177 = vld [vmem:[%s3145 + $0xf8] sm:$0xff]
        %v3178 = vpack.c.bf16 %v3143, %v3143
        %v3179 = vpack.c.bf16 %v3144, %v3144
        %s3180 = scalar_lea.vmem %s399, 18 [#allocation12]
        %v3181 = vld [vmem:[%s3180] ss:$8 sm:$0x3]
        %v3183 = vlaneseq
        %v3184 = vshrl.u32 %v3183, 7
        %v3185 = vsub.s32 0, %v3184
        %v3186 = vrot.slane %v3181, %v3185
        %v3187 = vlaneseq
        %v3188 = vshrl.u32 %v3187, 7
        %v3189 = vsub.s32 1, %v3188
        %v3190 = vrot.slane %v3181, %v3189
        %v3225 = vunpack.c.l.b16 %v3146
        %v3226 = vunpack.c.h.b16 %v3146
        %v3227 = vunpack.c.l.b16 %v3147
        %v3228 = vunpack.c.h.b16 %v3147
        %v3229 = vunpack.c.l.b16 %v3148
        %v3230 = vunpack.c.h.b16 %v3148
        %v3231 = vunpack.c.l.b16 %v3149
        %v3232 = vunpack.c.h.b16 %v3149
        %v3233 = vunpack.c.l.b16 %v3150
        %v3234 = vunpack.c.h.b16 %v3150
        %v3235 = vunpack.c.l.b16 %v3151
        %v3236 = vunpack.c.h.b16 %v3151
        %v3237 = vunpack.c.l.b16 %v3152
        %v3238 = vunpack.c.h.b16 %v3152
        %v3239 = vunpack.c.l.b16 %v3153
        %v3240 = vunpack.c.h.b16 %v3153
        %v3241 = vunpack.c.l.b16 %v3154
        %v3242 = vunpack.c.h.b16 %v3154
        %v3243 = vunpack.c.l.b16 %v3155
        %v3244 = vunpack.c.h.b16 %v3155
        %v3245 = vunpack.c.l.b16 %v3156
        %v3246 = vunpack.c.h.b16 %v3156
        %v3247 = vunpack.c.l.b16 %v3157
        %v3248 = vunpack.c.h.b16 %v3157
        %v3249 = vunpack.c.l.b16 %v3158
        %v3250 = vunpack.c.h.b16 %v3158
        %v3251 = vunpack.c.l.b16 %v3159
        %v3252 = vunpack.c.h.b16 %v3159
        %v3253 = vunpack.c.l.b16 %v3160
        %v3254 = vunpack.c.h.b16 %v3160
        %v3255 = vunpack.c.l.b16 %v3161
        %v3256 = vunpack.c.h.b16 %v3161
        %v3257 = vunpack.c.l.b16 %v3162
        %v3258 = vunpack.c.h.b16 %v3162
        %v3259 = vunpack.c.l.b16 %v3163
        %v3260 = vunpack.c.h.b16 %v3163
        %v3261 = vunpack.c.l.b16 %v3164
        %v3262 = vunpack.c.h.b16 %v3164
        %v3263 = vunpack.c.l.b16 %v3165
        %v3264 = vunpack.c.h.b16 %v3165
        %v3265 = vunpack.c.l.b16 %v3166
        %v3266 = vunpack.c.h.b16 %v3166
        %v3267 = vunpack.c.l.b16 %v3167
        %v3268 = vunpack.c.h.b16 %v3167
        %v3269 = vunpack.c.l.b16 %v3168
        %v3270 = vunpack.c.h.b16 %v3168
        %v3271 = vunpack.c.l.b16 %v3169
        %v3272 = vunpack.c.h.b16 %v3169
        %v3273 = vunpack.c.l.b16 %v3170
        %v3274 = vunpack.c.h.b16 %v3170
        %v3275 = vunpack.c.l.b16 %v3171
        %v3276 = vunpack.c.h.b16 %v3171
        %v3277 = vunpack.c.l.b16 %v3172
        %v3278 = vunpack.c.h.b16 %v3172
        %v3279 = vunpack.c.l.b16 %v3173
        %v3280 = vunpack.c.h.b16 %v3173
        %v3281 = vunpack.c.l.b16 %v3174
        %v3282 = vunpack.c.h.b16 %v3174
        %v3283 = vunpack.c.l.b16 %v3175
        %v3284 = vunpack.c.h.b16 %v3175
        %v3285 = vunpack.c.l.b16 %v3176
        %v3286 = vunpack.c.h.b16 %v3176
        %v3287 = vunpack.c.l.b16 %v3177
        %v3288 = vunpack.c.h.b16 %v3177
        %v3289 = vpack.c.b16 %v3227, %v3225
        %v3290 = vpack.c.b16 %v3228, %v3226
        %v3291 = vpack.c.b16 %v3231, %v3229
        %v3292 = vpack.c.b16 %v3232, %v3230
        %v3293 = vpack.c.b16 %v3235, %v3233
        %v3294 = vpack.c.b16 %v3236, %v3234
        %v3295 = vpack.c.b16 %v3239, %v3237
        %v3296 = vpack.c.b16 %v3240, %v3238
        %v3297 = vpack.c.b16 %v3243, %v3241
        %v3298 = vpack.c.b16 %v3244, %v3242
        %v3299 = vpack.c.b16 %v3247, %v3245
        %v3300 = vpack.c.b16 %v3248, %v3246
        %v3301 = vpack.c.b16 %v3251, %v3249
        %v3302 = vpack.c.b16 %v3252, %v3250
        %v3303 = vpack.c.b16 %v3255, %v3253
        %v3304 = vpack.c.b16 %v3256, %v3254
        %v3305 = vpack.c.b16 %v3259, %v3257
        %v3306 = vpack.c.b16 %v3260, %v3258
        %v3307 = vpack.c.b16 %v3263, %v3261
        %v3308 = vpack.c.b16 %v3264, %v3262
        %v3309 = vpack.c.b16 %v3267, %v3265
        %v3310 = vpack.c.b16 %v3268, %v3266
        %v3311 = vpack.c.b16 %v3271, %v3269
        %v3312 = vpack.c.b16 %v3272, %v3270
        %v3313 = vpack.c.b16 %v3275, %v3273
        %v3314 = vpack.c.b16 %v3276, %v3274
        %v3315 = vpack.c.b16 %v3279, %v3277
        %v3316 = vpack.c.b16 %v3280, %v3278
        %v3317 = vpack.c.b16 %v3283, %v3281
        %v3318 = vpack.c.b16 %v3284, %v3282
        %v3319 = vpack.c.b16 %v3287, %v3285
        %v3320 = vpack.c.b16 %v3288, %v3286
        %3353 = vmatprep.subr.bf16.mxu0 %v3304
        %3354 = vmatpush1.bf16.msra.mxu0 %v3303
        %3355 = vmatprep.subr.bf16.mxu0 %v3302
        %3356 = vmatpush1.bf16.msra.mxu0 %v3301
        %3357 = vmatprep.subr.bf16.mxu0 %v3300
        %3358 = vmatpush1.bf16.msra.mxu0 %v3299
        %3359 = vmatprep.subr.bf16.mxu0 %v3298
        %3360 = vmatpush1.bf16.msra.mxu0 %v3297
        %3361 = vmatprep.subr.bf16.mxu0 %v3296
        %3362 = vmatpush1.bf16.msra.mxu0 %v3295
        %3363 = vmatprep.subr.bf16.mxu0 %v3294
        %3364 = vmatpush1.bf16.msra.mxu0 %v3293
        %3365 = vmatprep.subr.bf16.mxu0 %v3292
        %3366 = vmatpush1.bf16.msra.mxu0 %v3291
        %3367 = vmatprep.subr.bf16.mxu0 %v3290
        %3368 = vmatpush1.bf16.msra.mxu0 %v3289
        %3369 = vmatprep.subr.bf16.mxu0 %v3320
        %3370 = vmatpush2.bf16.msra.mxu0 %v3319
        %3371 = vmatprep.subr.bf16.mxu0 %v3318
        %3372 = vmatpush2.bf16.msra.mxu0 %v3317
        %3373 = vmatprep.subr.bf16.mxu0 %v3316
        %3374 = vmatpush2.bf16.msra.mxu0 %v3315
        %3375 = vmatprep.subr.bf16.mxu0 %v3314
        %3376 = vmatpush2.bf16.msra.mxu0 %v3313
        %3377 = vmatprep.subr.bf16.mxu0 %v3312
        %3378 = vmatpush2.bf16.msra.mxu0 %v3311
        %3379 = vmatprep.subr.bf16.mxu0 %v3310
        %3380 = vmatpush2.bf16.msra.mxu0 %v3309
        %3381 = vmatprep.subr.bf16.mxu0 %v3308
        %3382 = vmatpush2.bf16.msra.mxu0 %v3307
        %3383 = vmatprep.subr.bf16.mxu0 %v3306
        %3384 = vmatpush2.bf16.msra.mxu0 %v3305
        %3385 = vmatprep.mubr.bf16.mxu0 %v3179
        %3386 = vmatmul.mubr.bf16.gmra.mxu0 %v3178
        %v3387 = vpop.f32.mrf.mxu0
        %v3388 = vadd.f32 %v3186, %v3387
        %v3389 = vpop.f32.mrf.mxu0
        %v3390 = vadd.f32 %v3190, %v3389
        %v3391 = vpop.f32.mrf.mxu0
        %v3392 = vpop.f32.mrf.mxu0
        %3393 = vdwg.mxu0
        %v3394 = vmax.f32 %v3388, 0.0
        %v3395 = vmax.f32 %v3390, 0.0
        %v3396 = vadd.f32 %v3394, %v2892
        %v3397 = vadd.f32 %v3395, %v2893
        %s3398 = scalar_lea.vmem %s399, 19 [#allocation12]
        %v3399 = vld [vmem:[%s3398] ss:$8 sm:$0x3]
        %v3400 = vld [vmem:[%s399 + $0x14] ss:$0 sm:$0xff]
        %v3401 = vld [vmem:[%s8] sm:$0xff]
        %v3403 = vlaneseq
        %v3404 = vshrl.u32 %v3403, 7
        %v3405 = vsub.s32 0, %v3404
        %v3406 = vrot.slane %v3399, %v3405
        %v3407 = vlaneseq
        %v3408 = vshrl.u32 %v3407, 7
        %v3409 = vsub.s32 1, %v3408
        %v3410 = vrot.slane %v3399, %v3409
        %v3413 = vmul.f32 %v3396, %v3406
        %v3414 = vmul.f32 %v3397, %v3410
        %v3415 = vadd.f32 %v3413, %v3414
        %3416 = vadd.xlane.f32.xlu0 %v3415
        %v3417 = vpop.xlane.xlu0 %3416
        %v3418 = vadd.f32 %v3417, %v3400
        %v3419 = vadd.f32 %v3401, %v3418
        %vm3420 = vcmask 7168
        %3421 = vst.msk [vmem:[%s8] sm:$0xff] %vm3420, %v3419
        // Predicated region
        $region85: #{phase_dnn_forward.1} parent=51 // pred_check
          %p3422 = pneg %p218
        $region86: #{phase_dnn_forward.1} parent=51 // pred_check_branch
          %3424 = sbr.rel (%p3422) target = $region88
        $region87: #{phase_dnn_forward.1} parent=51 // pred_region
          _
        $region88: #{phase_dnn_forward.1} parent=51 // pred_fallthru
          _
        // Predicated region
        $region89: #{phase_dnn_forward.1} parent=51 // pred_check
          %p3425 = pneg %p218
        $region90: #{phase_dnn_forward.1} parent=51 // pred_check_branch
          %3427 = sbr.rel (%p3425) target = $region92
        $region91: #{phase_dnn_forward.1} parent=51 // pred_region
          _
        $region92: #{phase_dnn_forward.1} parent=51 // pred_fallthru
          _
      $region52: #{phase_dnn_forward.1} parent=5 // pred_fallthru
        _
      %p3428 = scmp.le.s32.totalorder 2, %s17
      // Predicated region
      $region93: #{phase_dnn_forward.1} parent=5 // pred_check
        %p3429 = pneg %p3428
      $region94: #{phase_dnn_forward.1} parent=5 // pred_check_branch
        %3431 = sbr.rel (%p3429) target = $region96
      $region95: #{phase_dnn_forward.1} parent=5 // pred_region
        %s3432 = ssub.s32 %s17, 2
      $region96: #{phase_dnn_forward.1} parent=5 // pred_fallthru
        _
    $region6: #{phase_dnn_forward.1} parent=1 // loop_footer
      %s21 = sadd.s32 1, %s17
    $region7: #{phase_dnn_forward.1} parent=1 // loop_footer_branch
      %16 = sbr.rel target = $region3
    $region8: #{phase_dnn_forward.1} parent=1 // loop_exit
      _
    %3433 = vsyncpa [#allocation4], 1
    %s3434 = scalar_lea.sflag [#allocation4], 1
    %3435 = vsyncpa %s3434, 1
    %3436 = vsyncpa [#allocation6], 1
    %3437 = vsyncpa [#allocation9], 1

</llo_original>
